<compile_context>
chip_gen: v7x
topology: tpu7x:2x2x1
jax: 0.10.0
libtpu: 0.0.40
codegen_flags: <defaults>
</compile_context>

<pallas_src>
import math
import functools

import jax
import jax.numpy as jnp
from jax.experimental import pallas as pl
from jax.experimental.pallas import tpu as pltpu


def _erf_f32(x):
    # XLA's float32 erf rational approximation — mul/add/div only, lowers cleanly in Mosaic.
    x = jnp.clip(x, -4.0, 4.0)
    x2 = x * x
    alpha = (-2.72614225801306e-10, 2.77068142495902e-08, -2.10102402082508e-06,
             -5.69250639462346e-05, -7.34990630326855e-04, -2.95459980854025e-03,
             -1.60960333262415e-02)
    beta = (-1.45660718464996e-05, -2.13374055278905e-04, -1.68282697438203e-03,
            -7.37332916720468e-03, -1.42647390514189e-02)
    p = jnp.full_like(x2, alpha[0])
    for c in alpha[1:]:
        p = p * x2 + c
    q = jnp.full_like(x2, beta[0])
    for c in beta[1:]:
        q = q * x2 + c
    return x * p / q


def _gelu_exact(x):
    # torch.nn.functional.gelu (approximate='none'): 0.5*x*(1+erf(x/sqrt(2)))
    return 0.5 * x * (1.0 + _erf_f32(x * (1.0 / math.sqrt(2.0))))


def _cross_attn_stack_kernel(num_layers, nhead,
                             tgt_ref, qpos_ref, kin_ref, mem_ref,
                             wm_ref, bv_ref, o_ref, ctx_scratch):
    """One grid step = one batch row, all layers fused.
    wm_ref: (L, 6, E, E) bf16 = [Wq*s, Wk, Wv, Wo^T, W1^T, W2^T] in (in,out) layout.
    bv_ref: (L, 8, E) f32     = [bq*s, bk, bv, bo, b1, b2, gamma, beta].
    ctx_scratch: (Lq, E) f32 VMEM slab holding the concatenated per-head contexts."""
    x = tgt_ref[...].astype(jnp.float32)                 # (Lq, E) running activation
    qpos = qpos_ref[...].astype(jnp.float32)             # (Lq, E) fixed across layers
    Lq, E = x.shape
    dh = E // nhead

    # Layer-invariant K/V inputs (k_in = memory + pos precomputed in wrapper); bf16 once.
    k_in = kin_ref[...].astype(jnp.bfloat16)             # (Lm, E)
    v_in = mem_ref[...].astype(jnp.bfloat16)              # (Lm, E)

    for l in range(num_layers):                           # fused layer stack (static loop)
        bb = bv_ref[l]                                    # (8, E) f32 packed vectors
        bq, bk, bvv = bb[0:1], bb[1:2], bb[2:3]
        bo, b1, b2 = bb[3:4], bb[4:5], bb[5:6]
        gamma, beta = bb[6:7], bb[7:8]

        # Input projections: bf16 operands, f32 accumulation. Scale already folded into Wq/bq.
        q_in = (x + qpos).astype(jnp.bfloat16)
        q = jnp.dot(q_in, wm_ref[l, 0], preferred_element_type=jnp.float32) + bq
        k = jnp.dot(k_in, wm_ref[l, 1], preferred_element_type=jnp.float32) + bk
        v = jnp.dot(v_in, wm_ref[l, 2], preferred_element_type=jnp.float32) + bvv

        # Cast once; slice the bf16 tensors per head (no per-head converts).
        qb = q.astype(jnp.bfloat16)
        kb = k.astype(jnp.bfloat16)
        vb = v.astype(jnp.bfloat16)

        # Per-head scaled-dot-product attention; contexts written into the (Lq, E)
        # scratch slab at their head offsets so the output projection is ONE K=E dot.
        for h in range(nhead):
            sl = slice(h * dh, (h + 1) * dh)
            s = jnp.einsum('qd,kd->qk', qb[:, sl], kb[:, sl],
                           preferred_element_type=jnp.float32)          # (Lq, Lm)
            s = s - jnp.max(s, axis=-1, keepdims=True)
            p = jnp.exp(s)
            p = p * pl.reciprocal(jnp.sum(p, axis=-1, keepdims=True), approx=True)
            ctx_scratch[:, sl] = jnp.dot(p.astype(jnp.bfloat16), vb[:, sl],
                                         preferred_element_type=jnp.float32)

        # Output projection against the un-split Wo^T (single full-width dot).
        ctx = ctx_scratch[...].astype(jnp.bfloat16)
        attn_out = jnp.dot(ctx, wm_ref[l, 3], preferred_element_type=jnp.float32) + bo

        # Feed-forward: linear2(dropout(gelu(linear1(.)))) — dropout = identity (eval).
        h1 = jnp.dot(attn_out.astype(jnp.bfloat16), wm_ref[l, 4],
                     preferred_element_type=jnp.float32) + b1
        h1 = _gelu_exact(h1)
        src2 = jnp.dot(h1.astype(jnp.bfloat16), wm_ref[l, 5],
                       preferred_element_type=jnp.float32) + b2

        # Residual + LayerNorm (norm2); all elementwise math stays in f32.
        y = x + src2
        mean = jnp.mean(y, axis=-1, keepdims=True)
        var = jnp.mean((y - mean) ** 2, axis=-1, keepdims=True)
        x = (y - mean) * jax.lax.rsqrt(var + 1e-5) * gamma + beta

    o_ref[...] = x.astype(o_ref.dtype)


def prepare_params(params, nhead):
    """One-time weight prep, hoisted out of the forward path.
    Splits in_proj, folds the 1/sqrt(dh) attention scale into Wq/bq, transposes all
    matmul weights to (in, out) layout, casts them to bf16, packs the eight per-layer
    (E,) vectors into one (8, E) f32 slab, and stacks everything over layers."""
    w_mats, b_vecs = [], []
    for (w_in, b_in, w_out, b_out, w1, b1, w2, b2, gamma, beta) in params:
        E = w_out.shape[0]
        dh = E // nhead
        scale = 1.0 / math.sqrt(dh)
        wq = (w_in[0 * E:1 * E] * scale).T            # scale folded into the weight
        wk = w_in[1 * E:2 * E].T
        wv = w_in[2 * E:3 * E].T
        w_mats.append(jnp.stack([wq, wk, wv, w_out.T, w1.T, w2.T]).astype(jnp.bfloat16))
        b_vecs.append(jnp.stack([b_in[0 * E:1 * E] * scale, b_in[1 * E:2 * E],
                                 b_in[2 * E:3 * E], b_out, b1, b2,
                                 gamma, beta]).astype(jnp.float32))
    return jnp.stack(w_mats), jnp.stack(b_vecs)       # (L,6,E,E) bf16, (L,8,E) f32


def cross_attention_forward(tgt, memory, prepped, nhead, pos=None, query_pos=None):
    """tgt: (Lq, N, E), memory: (Lm, N, E)  ->  (Lq, N, E) after the fused layer stack."""
    w_mats, b_vecs = prepped
    num_layers = int(w_mats.shape[0])
    E = int(w_mats.shape[-1])

    # Batch-major once for the whole stack (grid iterates over batch);
    # k_in = memory + pos is layer-invariant so it is hoisted here too.
    x = jnp.transpose(tgt, (1, 0, 2))                                   # (N, Lq, E)
    qp = jnp.zeros_like(x) if query_pos is None else jnp.transpose(query_pos, (1, 0, 2))
    mem = jnp.transpose(memory, (1, 0, 2))                              # (N, Lm, E)
    k_in = mem if pos is None else mem + jnp.transpose(pos, (1, 0, 2))
    N, Lq, _ = x.shape
    Lm = mem.shape[1]

    def seq_spec(L):
        return pl.BlockSpec((None, L, E), lambda b: (b, 0, 0))          # squeeze batch dim

    def const_spec(arr):
        nd = arr.ndim
        return pl.BlockSpec(arr.shape, lambda b, _nd=nd: (0,) * _nd)    # resident weights

    kernel = functools.partial(_cross_attn_stack_kernel, num_layers, nhead)
    out = pl.pallas_call(
        kernel,
        out_shape=jax.ShapeDtypeStruct((N, Lq, E), x.dtype),
        grid=(N,),
        in_specs=[seq_spec(Lq), seq_spec(Lq), seq_spec(Lm), seq_spec(Lm),
                  const_spec(w_mats), const_spec(b_vecs)],
        out_specs=pl.BlockSpec((None, Lq, E), lambda b: (b, 0, 0)),
        scratch_shapes=[pltpu.VMEM((Lq, E), jnp.float32)],
        compiler_params=pltpu.CompilerParams(
            dimension_semantics=("parallel",),
            vmem_limit_bytes=32 * 1024 * 1024),
    )(x, qp, k_in, mem, w_mats, b_vecs)
    return jnp.transpose(out, (1, 0, 2))


def init_params(key, d_model, num_layers):
    """Deterministic synthetic parameters matching the nn.Module shapes.
    Note: LECCR's CrossAttentionLayer uses linear1/linear2 of width d_model (not 2048)."""
    params = []
    scale = 1.0 / math.sqrt(d_model)
    for i in range(num_layers):
        ks = jax.random.split(jax.random.fold_in(key, i), 6)
        w_in = jax.random.uniform(ks[0], (3 * d_model, d_model), jnp.float32, -scale, scale)
        b_in = jnp.zeros((3 * d_model,), jnp.float32)
        w_out = jax.random.uniform(ks[1], (d_model, d_model), jnp.float32, -scale, scale)
        b_out = jnp.zeros((d_model,), jnp.float32)
        w1 = jax.random.uniform(ks[2], (d_model, d_model), jnp.float32, -scale, scale)
        b1 = jax.random.uniform(ks[3], (d_model,), jnp.float32, -scale, scale)
        w2 = jax.random.uniform(ks[4], (d_model, d_model), jnp.float32, -scale, scale)
        b2 = jax.random.uniform(ks[5], (d_model,), jnp.float32, -scale, scale)
        gamma = jnp.ones((d_model,), jnp.float32)    # norm2 weight
        beta = jnp.zeros((d_model,), jnp.float32)    # norm2 bias
        params.append((w_in, b_in, w_out, b_out, w1, b1, w2, b2, gamma, beta))
    return params


if __name__ == "__main__":
    d_model, nhead, num_layers = 32, 4, 2
    Lq, Lm, N = 8, 16, 2          # (tgt seq, memory seq, batch)

    key = jax.random.PRNGKey(0)
    tgt = jax.random.normal(jax.random.fold_in(key, 100), (Lq, N, d_model), jnp.float32)
    memory = jax.random.normal(jax.random.fold_in(key, 101), (Lm, N, d_model), jnp.float32)
    pos = jax.random.normal(jax.random.fold_in(key, 102), (Lm, N, d_model), jnp.float32)
    query_pos = jax.random.normal(jax.random.fold_in(key, 103), (Lq, N, d_model), jnp.float32)

    params = init_params(key, d_model, num_layers)
    prepped = prepare_params(params, nhead)      # one-time weight prep, hoisted out of forward

    out = cross_attention_forward(tgt, memory, prepped, nhead=nhead,
                                  pos=pos, query_pos=query_pos)
    out = jax.block_until_ready(out)
    assert out.shape == (Lq, N, d_model) and bool(jnp.all(jnp.isfinite(out)))
    print("KERNEL_OK")
</pallas_src>

<mosaic_0001>
module attributes {stable_mosaic.version = 11 : i64} {
  func.func @_cross_attn_stack_kernel(%arg0: i32, %arg1: memref<1x8x32xf32, #tpu.memory_space<vmem>>, %arg2: memref<1x8x32xf32, #tpu.memory_space<vmem>>, %arg3: memref<1x16x32xf32, #tpu.memory_space<vmem>>, %arg4: memref<1x16x32xf32, #tpu.memory_space<vmem>>, %arg5: memref<2x6x32x32xbf16, #tpu.memory_space<vmem>>, %arg6: memref<2x8x32xf32, #tpu.memory_space<vmem>>, %arg7: memref<1x8x32xf32, #tpu.memory_space<vmem>>, %arg8: memref<8x32xf32, #tpu.memory_space<vmem>>) attributes {dimension_semantics = [#tpu.dimension_semantics<parallel>], iteration_bounds = array<i64: 2>, scalar_prefetch = 0 : i64, scratch_operands = 1 : i64, tpu.core_type = #tpu.core_type<tc>, window_params = [{transform_indices = @transform_0, window_bounds = array<i64: 1, 8, 32>}, {transform_indices = @transform_1, window_bounds = array<i64: 1, 8, 32>}, {transform_indices = @transform_2, window_bounds = array<i64: 1, 16, 32>}, {transform_indices = @transform_3, window_bounds = array<i64: 1, 16, 32>}, {pipeline_mode = #tpu.pipeline_mode<synchronous>, transform_indices = @transform_4, window_bounds = array<i64: 2, 6, 32, 32>}, {pipeline_mode = #tpu.pipeline_mode<synchronous>, transform_indices = @transform_5, window_bounds = array<i64: 2, 8, 32>}, {transform_indices = @transform_6, window_bounds = array<i64: 1, 8, 32>}]} {
    %c0 = arith.constant 0 : index
    %c0_0 = arith.constant 0 : index
    %c0_1 = arith.constant 0 : index
    %0 = vector.load %arg1[%c0, %c0_0, %c0_1] : memref<1x8x32xf32, #tpu.memory_space<vmem>>, vector<1x8x32xf32>
    %1 = vector.shape_cast %0 : vector<1x8x32xf32> to vector<8x32xf32>
    %c0_2 = arith.constant 0 : index
    %c0_3 = arith.constant 0 : index
    %c0_4 = arith.constant 0 : index
    %2 = vector.load %arg2[%c0_2, %c0_3, %c0_4] : memref<1x8x32xf32, #tpu.memory_space<vmem>>, vector<1x8x32xf32>
    %3 = vector.shape_cast %2 : vector<1x8x32xf32> to vector<8x32xf32>
    %c0_5 = arith.constant 0 : index
    %c0_6 = arith.constant 0 : index
    %c0_7 = arith.constant 0 : index
    %4 = vector.load %arg3[%c0_5, %c0_6, %c0_7] : memref<1x16x32xf32, #tpu.memory_space<vmem>>, vector<1x16x32xf32>
    %5 = vector.shape_cast %4 : vector<1x16x32xf32> to vector<16x32xf32>
    %6 = arith.truncf %5 : vector<16x32xf32> to vector<16x32xbf16>
    %c0_8 = arith.constant 0 : index
    %c0_9 = arith.constant 0 : index
    %c0_10 = arith.constant 0 : index
    %7 = vector.load %arg4[%c0_8, %c0_9, %c0_10] : memref<1x16x32xf32, #tpu.memory_space<vmem>>, vector<1x16x32xf32>
    %8 = vector.shape_cast %7 : vector<1x16x32xf32> to vector<16x32xf32>
    %9 = arith.truncf %8 : vector<16x32xf32> to vector<16x32xbf16>
    %c0_11 = arith.constant 0 : index
    %c0_12 = arith.constant 0 : index
    %c0_13 = arith.constant 0 : index
    %10 = vector.load %arg6[%c0_11, %c0_12, %c0_13] : memref<2x8x32xf32, #tpu.memory_space<vmem>>, vector<1x8x32xf32>
    %11 = vector.shape_cast %10 : vector<1x8x32xf32> to vector<8x32xf32>
    %12 = vector.extract_strided_slice %11 {offsets = [0, 0], sizes = [1, 32], strides = [1, 1]} : vector<8x32xf32> to vector<1x32xf32>
    %13 = vector.extract_strided_slice %11 {offsets = [1, 0], sizes = [1, 32], strides = [1, 1]} : vector<8x32xf32> to vector<1x32xf32>
    %14 = vector.extract_strided_slice %11 {offsets = [2, 0], sizes = [1, 32], strides = [1, 1]} : vector<8x32xf32> to vector<1x32xf32>
    %15 = vector.extract_strided_slice %11 {offsets = [3, 0], sizes = [1, 32], strides = [1, 1]} : vector<8x32xf32> to vector<1x32xf32>
    %16 = vector.extract_strided_slice %11 {offsets = [4, 0], sizes = [1, 32], strides = [1, 1]} : vector<8x32xf32> to vector<1x32xf32>
    %17 = vector.extract_strided_slice %11 {offsets = [5, 0], sizes = [1, 32], strides = [1, 1]} : vector<8x32xf32> to vector<1x32xf32>
    %18 = vector.extract_strided_slice %11 {offsets = [6, 0], sizes = [1, 32], strides = [1, 1]} : vector<8x32xf32> to vector<1x32xf32>
    %19 = vector.extract_strided_slice %11 {offsets = [7, 0], sizes = [1, 32], strides = [1, 1]} : vector<8x32xf32> to vector<1x32xf32>
    %20 = arith.addf %1, %3 : vector<8x32xf32>
    %21 = arith.truncf %20 : vector<8x32xf32> to vector<8x32xbf16>
    %c0_14 = arith.constant 0 : index
    %c0_15 = arith.constant 0 : index
    %c0_16 = arith.constant 0 : index
    %c0_17 = arith.constant 0 : index
    %22 = vector.load %arg5[%c0_14, %c0_15, %c0_16, %c0_17] : memref<2x6x32x32xbf16, #tpu.memory_space<vmem>>, vector<1x1x32x32xbf16>
    %23 = vector.shape_cast %22 : vector<1x1x32x32xbf16> to vector<32x32xbf16>
    %cst = arith.constant dense<0.000000e+00> : vector<8x32xf32>
    %24 = tpu.matmul %21, %23, %cst {dimension_numbers = #tpu.dot_dimension_numbers<[1], [0], [0], [1], [0, 0, 1, 1], [], []>} : vector<8x32xbf16>, vector<32x32xbf16>, vector<8x32xf32> -> vector<8x32xf32>
    %25 = vector.broadcast %12 : vector<1x32xf32> to vector<8x32xf32>
    %26 = arith.addf %24, %25 : vector<8x32xf32>
    %c0_18 = arith.constant 0 : index
    %c1 = arith.constant 1 : index
    %c0_19 = arith.constant 0 : index
    %c0_20 = arith.constant 0 : index
    %27 = vector.load %arg5[%c0_18, %c1, %c0_19, %c0_20] : memref<2x6x32x32xbf16, #tpu.memory_space<vmem>>, vector<1x1x32x32xbf16>
    %28 = vector.shape_cast %27 : vector<1x1x32x32xbf16> to vector<32x32xbf16>
    %cst_21 = arith.constant dense<0.000000e+00> : vector<16x32xf32>
    %29 = tpu.matmul %6, %28, %cst_21 {dimension_numbers = #tpu.dot_dimension_numbers<[1], [0], [0], [1], [0, 0, 1, 1], [], []>} : vector<16x32xbf16>, vector<32x32xbf16>, vector<16x32xf32> -> vector<16x32xf32>
    %30 = vector.broadcast %13 : vector<1x32xf32> to vector<16x32xf32>
    %31 = arith.addf %29, %30 : vector<16x32xf32>
    %c0_22 = arith.constant 0 : index
    %c2 = arith.constant 2 : index
    %c0_23 = arith.constant 0 : index
    %c0_24 = arith.constant 0 : index
    %32 = vector.load %arg5[%c0_22, %c2, %c0_23, %c0_24] : memref<2x6x32x32xbf16, #tpu.memory_space<vmem>>, vector<1x1x32x32xbf16>
    %33 = vector.shape_cast %32 : vector<1x1x32x32xbf16> to vector<32x32xbf16>
    %cst_25 = arith.constant dense<0.000000e+00> : vector<16x32xf32>
    %34 = tpu.matmul %9, %33, %cst_25 {dimension_numbers = #tpu.dot_dimension_numbers<[1], [0], [0], [1], [0, 0, 1, 1], [], []>} : vector<16x32xbf16>, vector<32x32xbf16>, vector<16x32xf32> -> vector<16x32xf32>
    %35 = vector.broadcast %14 : vector<1x32xf32> to vector<16x32xf32>
    %36 = arith.addf %34, %35 : vector<16x32xf32>
    %37 = arith.truncf %26 : vector<8x32xf32> to vector<8x32xbf16>
    %38 = arith.truncf %31 : vector<16x32xf32> to vector<16x32xbf16>
    %39 = arith.truncf %36 : vector<16x32xf32> to vector<16x32xbf16>
    %40 = vector.extract_strided_slice %37 {offsets = [0, 0], sizes = [8, 8], strides = [1, 1]} : vector<8x32xbf16> to vector<8x8xbf16>
    %41 = vector.extract_strided_slice %38 {offsets = [0, 0], sizes = [16, 8], strides = [1, 1]} : vector<16x32xbf16> to vector<16x8xbf16>
    "tpu.trace_start"() <{level = 10 : i32, message = "qd,kd->qk"}> : () -> ()
    %cst_26 = arith.constant dense<0.000000e+00> : vector<8x16xf32>
    %42 = tpu.matmul %40, %41, %cst_26 {dimension_numbers = #tpu.dot_dimension_numbers<[1], [1], [0], [0], [0, 0, 1, 0], [], []>} : vector<8x8xbf16>, vector<16x8xbf16>, vector<8x16xf32> -> vector<8x16xf32>
    "tpu.trace_stop"() : () -> ()
    %cst_27 = arith.constant dense<0xFF800000> : vector<8xf32>
    %43 = vector.multi_reduction <maximumf>, %42, %cst_27 [1] : vector<8x16xf32> to vector<8xf32>
    %44 = vector.shape_cast %43 : vector<8xf32> to vector<8x1xf32>
    %45 = vector.broadcast %44 : vector<8x1xf32> to vector<8x16xf32>
    %46 = arith.subf %42, %45 : vector<8x16xf32>
    %47 = math.exp %46 : vector<8x16xf32>
    %cst_28 = arith.constant dense<0.000000e+00> : vector<8xf32>
    %48 = vector.multi_reduction <add>, %47, %cst_28 [1] : vector<8x16xf32> to vector<8xf32>
    %49 = vector.shape_cast %48 : vector<8xf32> to vector<8x1xf32>
    %50 = tpu.reciprocal %49 {approx = true} : vector<8x1xf32> -> vector<8x1xf32>
    %51 = vector.broadcast %50 : vector<8x1xf32> to vector<8x16xf32>
    %52 = arith.mulf %47, %51 : vector<8x16xf32>
    %53 = arith.truncf %52 : vector<8x16xf32> to vector<8x16xbf16>
    %54 = vector.extract_strided_slice %39 {offsets = [0, 0], sizes = [16, 8], strides = [1, 1]} : vector<16x32xbf16> to vector<16x8xbf16>
    %cst_29 = arith.constant dense<0.000000e+00> : vector<8x8xf32>
    %55 = tpu.matmul %53, %54, %cst_29 {dimension_numbers = #tpu.dot_dimension_numbers<[1], [0], [0], [1], [0, 0, 1, 1], [], []>} : vector<8x16xbf16>, vector<16x8xbf16>, vector<8x8xf32> -> vector<8x8xf32>
    %c0_30 = arith.constant 0 : index
    %c0_31 = arith.constant 0 : index
    %56 = vector.load %arg8[%c0_30, %c0_31] : memref<8x32xf32, #tpu.memory_space<vmem>>, vector<8x8xf32>
    tpu.vector_store %arg8[%c0_30, %c0_31], %55 {strides = array<i32>} : memref<8x32xf32, #tpu.memory_space<vmem>>, vector<8x8xf32>,
    %57 = vector.extract_strided_slice %37 {offsets = [0, 8], sizes = [8, 8], strides = [1, 1]} : vector<8x32xbf16> to vector<8x8xbf16>
    %58 = vector.extract_strided_slice %38 {offsets = [0, 8], sizes = [16, 8], strides = [1, 1]} : vector<16x32xbf16> to vector<16x8xbf16>
    "tpu.trace_start"() <{level = 10 : i32, message = "qd,kd->qk"}> : () -> ()
    %cst_32 = arith.constant dense<0.000000e+00> : vector<8x16xf32>
    %59 = tpu.matmul %57, %58, %cst_32 {dimension_numbers = #tpu.dot_dimension_numbers<[1], [1], [0], [0], [0, 0, 1, 0], [], []>} : vector<8x8xbf16>, vector<16x8xbf16>, vector<8x16xf32> -> vector<8x16xf32>
    "tpu.trace_stop"() : () -> ()
    %cst_33 = arith.constant dense<0xFF800000> : vector<8xf32>
    %60 = vector.multi_reduction <maximumf>, %59, %cst_33 [1] : vector<8x16xf32> to vector<8xf32>
    %61 = vector.shape_cast %60 : vector<8xf32> to vector<8x1xf32>
    %62 = vector.broadcast %61 : vector<8x1xf32> to vector<8x16xf32>
    %63 = arith.subf %59, %62 : vector<8x16xf32>
    %64 = math.exp %63 : vector<8x16xf32>
    %cst_34 = arith.constant dense<0.000000e+00> : vector<8xf32>
    %65 = vector.multi_reduction <add>, %64, %cst_34 [1] : vector<8x16xf32> to vector<8xf32>
    %66 = vector.shape_cast %65 : vector<8xf32> to vector<8x1xf32>
    %67 = tpu.reciprocal %66 {approx = true} : vector<8x1xf32> -> vector<8x1xf32>
    %68 = vector.broadcast %67 : vector<8x1xf32> to vector<8x16xf32>
    %69 = arith.mulf %64, %68 : vector<8x16xf32>
    %70 = arith.truncf %69 : vector<8x16xf32> to vector<8x16xbf16>
    %71 = vector.extract_strided_slice %39 {offsets = [0, 8], sizes = [16, 8], strides = [1, 1]} : vector<16x32xbf16> to vector<16x8xbf16>
    %cst_35 = arith.constant dense<0.000000e+00> : vector<8x8xf32>
    %72 = tpu.matmul %70, %71, %cst_35 {dimension_numbers = #tpu.dot_dimension_numbers<[1], [0], [0], [1], [0, 0, 1, 1], [], []>} : vector<8x16xbf16>, vector<16x8xbf16>, vector<8x8xf32> -> vector<8x8xf32>
    %c0_36 = arith.constant 0 : index
    %c8 = arith.constant 8 : index
    %73 = vector.load %arg8[%c0_36, %c8] : memref<8x32xf32, #tpu.memory_space<vmem>>, vector<8x8xf32>
    tpu.vector_store %arg8[%c0_36, %c8], %72 {strides = array<i32>} : memref<8x32xf32, #tpu.memory_space<vmem>>, vector<8x8xf32>,
    %74 = vector.extract_strided_slice %37 {offsets = [0, 16], sizes = [8, 8], strides = [1, 1]} : vector<8x32xbf16> to vector<8x8xbf16>
    %75 = vector.extract_strided_slice %38 {offsets = [0, 16], sizes = [16, 8], strides = [1, 1]} : vector<16x32xbf16> to vector<16x8xbf16>
    "tpu.trace_start"() <{level = 10 : i32, message = "qd,kd->qk"}> : () -> ()
    %cst_37 = arith.constant dense<0.000000e+00> : vector<8x16xf32>
    %76 = tpu.matmul %74, %75, %cst_37 {dimension_numbers = #tpu.dot_dimension_numbers<[1], [1], [0], [0], [0, 0, 1, 0], [], []>} : vector<8x8xbf16>, vector<16x8xbf16>, vector<8x16xf32> -> vector<8x16xf32>
    "tpu.trace_stop"() : () -> ()
    %cst_38 = arith.constant dense<0xFF800000> : vector<8xf32>
    %77 = vector.multi_reduction <maximumf>, %76, %cst_38 [1] : vector<8x16xf32> to vector<8xf32>
    %78 = vector.shape_cast %77 : vector<8xf32> to vector<8x1xf32>
    %79 = vector.broadcast %78 : vector<8x1xf32> to vector<8x16xf32>
    %80 = arith.subf %76, %79 : vector<8x16xf32>
    %81 = math.exp %80 : vector<8x16xf32>
    %cst_39 = arith.constant dense<0.000000e+00> : vector<8xf32>
    %82 = vector.multi_reduction <add>, %81, %cst_39 [1] : vector<8x16xf32> to vector<8xf32>
    %83 = vector.shape_cast %82 : vector<8xf32> to vector<8x1xf32>
    %84 = tpu.reciprocal %83 {approx = true} : vector<8x1xf32> -> vector<8x1xf32>
    %85 = vector.broadcast %84 : vector<8x1xf32> to vector<8x16xf32>
    %86 = arith.mulf %81, %85 : vector<8x16xf32>
    %87 = arith.truncf %86 : vector<8x16xf32> to vector<8x16xbf16>
    %88 = vector.extract_strided_slice %39 {offsets = [0, 16], sizes = [16, 8], strides = [1, 1]} : vector<16x32xbf16> to vector<16x8xbf16>
    %cst_40 = arith.constant dense<0.000000e+00> : vector<8x8xf32>
    %89 = tpu.matmul %87, %88, %cst_40 {dimension_numbers = #tpu.dot_dimension_numbers<[1], [0], [0], [1], [0, 0, 1, 1], [], []>} : vector<8x16xbf16>, vector<16x8xbf16>, vector<8x8xf32> -> vector<8x8xf32>
    %c0_41 = arith.constant 0 : index
    %c16 = arith.constant 16 : index
    %90 = vector.load %arg8[%c0_41, %c16] : memref<8x32xf32, #tpu.memory_space<vmem>>, vector<8x8xf32>
    tpu.vector_store %arg8[%c0_41, %c16], %89 {strides = array<i32>} : memref<8x32xf32, #tpu.memory_space<vmem>>, vector<8x8xf32>,
    %91 = vector.extract_strided_slice %37 {offsets = [0, 24], sizes = [8, 8], strides = [1, 1]} : vector<8x32xbf16> to vector<8x8xbf16>
    %92 = vector.extract_strided_slice %38 {offsets = [0, 24], sizes = [16, 8], strides = [1, 1]} : vector<16x32xbf16> to vector<16x8xbf16>
    "tpu.trace_start"() <{level = 10 : i32, message = "qd,kd->qk"}> : () -> ()
    %cst_42 = arith.constant dense<0.000000e+00> : vector<8x16xf32>
    %93 = tpu.matmul %91, %92, %cst_42 {dimension_numbers = #tpu.dot_dimension_numbers<[1], [1], [0], [0], [0, 0, 1, 0], [], []>} : vector<8x8xbf16>, vector<16x8xbf16>, vector<8x16xf32> -> vector<8x16xf32>
    "tpu.trace_stop"() : () -> ()
    %cst_43 = arith.constant dense<0xFF800000> : vector<8xf32>
    %94 = vector.multi_reduction <maximumf>, %93, %cst_43 [1] : vector<8x16xf32> to vector<8xf32>
    %95 = vector.shape_cast %94 : vector<8xf32> to vector<8x1xf32>
    %96 = vector.broadcast %95 : vector<8x1xf32> to vector<8x16xf32>
    %97 = arith.subf %93, %96 : vector<8x16xf32>
    %98 = math.exp %97 : vector<8x16xf32>
    %cst_44 = arith.constant dense<0.000000e+00> : vector<8xf32>
    %99 = vector.multi_reduction <add>, %98, %cst_44 [1] : vector<8x16xf32> to vector<8xf32>
    %100 = vector.shape_cast %99 : vector<8xf32> to vector<8x1xf32>
    %101 = tpu.reciprocal %100 {approx = true} : vector<8x1xf32> -> vector<8x1xf32>
    %102 = vector.broadcast %101 : vector<8x1xf32> to vector<8x16xf32>
    %103 = arith.mulf %98, %102 : vector<8x16xf32>
    %104 = arith.truncf %103 : vector<8x16xf32> to vector<8x16xbf16>
    %105 = vector.extract_strided_slice %39 {offsets = [0, 24], sizes = [16, 8], strides = [1, 1]} : vector<16x32xbf16> to vector<16x8xbf16>
    %cst_45 = arith.constant dense<0.000000e+00> : vector<8x8xf32>
    %106 = tpu.matmul %104, %105, %cst_45 {dimension_numbers = #tpu.dot_dimension_numbers<[1], [0], [0], [1], [0, 0, 1, 1], [], []>} : vector<8x16xbf16>, vector<16x8xbf16>, vector<8x8xf32> -> vector<8x8xf32>
    %c0_46 = arith.constant 0 : index
    %c24 = arith.constant 24 : index
    %107 = vector.load %arg8[%c0_46, %c24] : memref<8x32xf32, #tpu.memory_space<vmem>>, vector<8x8xf32>
    tpu.vector_store %arg8[%c0_46, %c24], %106 {strides = array<i32>} : memref<8x32xf32, #tpu.memory_space<vmem>>, vector<8x8xf32>,
    %c0_47 = arith.constant 0 : index
    %c0_48 = arith.constant 0 : index
    %108 = vector.load %arg8[%c0_47, %c0_48] : memref<8x32xf32, #tpu.memory_space<vmem>>, vector<8x32xf32>
    %109 = arith.truncf %108 : vector<8x32xf32> to vector<8x32xbf16>
    %c0_49 = arith.constant 0 : index
    %c3 = arith.constant 3 : index
    %c0_50 = arith.constant 0 : index
    %c0_51 = arith.constant 0 : index
    %110 = vector.load %arg5[%c0_49, %c3, %c0_50, %c0_51] : memref<2x6x32x32xbf16, #tpu.memory_space<vmem>>, vector<1x1x32x32xbf16>
    %111 = vector.shape_cast %110 : vector<1x1x32x32xbf16> to vector<32x32xbf16>
    %cst_52 = arith.constant dense<0.000000e+00> : vector<8x32xf32>
    %112 = tpu.matmul %109, %111, %cst_52 {dimension_numbers = #tpu.dot_dimension_numbers<[1], [0], [0], [1], [0, 0, 1, 1], [], []>} : vector<8x32xbf16>, vector<32x32xbf16>, vector<8x32xf32> -> vector<8x32xf32>
    %113 = vector.broadcast %15 : vector<1x32xf32> to vector<8x32xf32>
    %114 = arith.addf %112, %113 : vector<8x32xf32>
    %115 = arith.truncf %114 : vector<8x32xf32> to vector<8x32xbf16>
    %c0_53 = arith.constant 0 : index
    %c4 = arith.constant 4 : index
    %c0_54 = arith.constant 0 : index
    %c0_55 = arith.constant 0 : index
    %116 = vector.load %arg5[%c0_53, %c4, %c0_54, %c0_55] : memref<2x6x32x32xbf16, #tpu.memory_space<vmem>>, vector<1x1x32x32xbf16>
    %117 = vector.shape_cast %116 : vector<1x1x32x32xbf16> to vector<32x32xbf16>
    %cst_56 = arith.constant dense<0.000000e+00> : vector<8x32xf32>
    %118 = tpu.matmul %115, %117, %cst_56 {dimension_numbers = #tpu.dot_dimension_numbers<[1], [0], [0], [1], [0, 0, 1, 1], [], []>} : vector<8x32xbf16>, vector<32x32xbf16>, vector<8x32xf32> -> vector<8x32xf32>
    %119 = vector.broadcast %16 : vector<1x32xf32> to vector<8x32xf32>
    %120 = arith.addf %118, %119 : vector<8x32xf32>
    %cst_57 = arith.constant 5.000000e-01 : f32
    %121 = vector.broadcast %cst_57 : f32 to vector<8x32xf32>
    %122 = arith.mulf %121, %120 : vector<8x32xf32>
    %cst_58 = arith.constant 0.707106769 : f32
    %123 = vector.broadcast %cst_58 : f32 to vector<8x32xf32>
    %124 = arith.mulf %120, %123 : vector<8x32xf32>
    %cst_59 = arith.constant -4.000000e+00 : f32
    %cst_60 = arith.constant 4.000000e+00 : f32
    %125 = vector.broadcast %cst_59 : f32 to vector<8x32xf32>
    %126 = arith.maximumf %125, %124 : vector<8x32xf32>
    %127 = vector.broadcast %cst_60 : f32 to vector<8x32xf32>
    %128 = arith.minimumf %127, %126 : vector<8x32xf32>
    %129 = arith.mulf %128, %128 : vector<8x32xf32>
    %cst_61 = arith.constant -2.72614237E-10 : f32
    %130 = vector.broadcast %cst_61 : f32 to vector<8x32xf32>
    %131 = arith.mulf %130, %129 : vector<8x32xf32>
    %cst_62 = arith.constant 2.77068146E-8 : f32
    %132 = vector.broadcast %cst_62 : f32 to vector<8x32xf32>
    %133 = arith.addf %131, %132 : vector<8x32xf32>
    %134 = arith.mulf %133, %129 : vector<8x32xf32>
    %cst_63 = arith.constant -2.10102394E-6 : f32
    %135 = vector.broadcast %cst_63 : f32 to vector<8x32xf32>
    %136 = arith.addf %134, %135 : vector<8x32xf32>
    %137 = arith.mulf %136, %129 : vector<8x32xf32>
    %cst_64 = arith.constant -5.69250624E-5 : f32
    %138 = vector.broadcast %cst_64 : f32 to vector<8x32xf32>
    %139 = arith.addf %137, %138 : vector<8x32xf32>
    %140 = arith.mulf %139, %129 : vector<8x32xf32>
    %cst_65 = arith.constant -7.34990637E-4 : f32
    %141 = vector.broadcast %cst_65 : f32 to vector<8x32xf32>
    %142 = arith.addf %140, %141 : vector<8x32xf32>
    %143 = arith.mulf %142, %129 : vector<8x32xf32>
    %cst_66 = arith.constant -2.954600e-03 : f32
    %144 = vector.broadcast %cst_66 : f32 to vector<8x32xf32>
    %145 = arith.addf %143, %144 : vector<8x32xf32>
    %146 = arith.mulf %145, %129 : vector<8x32xf32>
    %cst_67 = arith.constant -0.0160960332 : f32
    %147 = vector.broadcast %cst_67 : f32 to vector<8x32xf32>
    %148 = arith.addf %146, %147 : vector<8x32xf32>
    %cst_68 = arith.constant -1.45660715E-5 : f32
    %149 = vector.broadcast %cst_68 : f32 to vector<8x32xf32>
    %150 = arith.mulf %149, %129 : vector<8x32xf32>
    %cst_69 = arith.constant -2.13374049E-4 : f32
    %151 = vector.broadcast %cst_69 : f32 to vector<8x32xf32>
    %152 = arith.addf %150, %151 : vector<8x32xf32>
    %153 = arith.mulf %152, %129 : vector<8x32xf32>
    %cst_70 = arith.constant -0.00168282702 : f32
    %154 = vector.broadcast %cst_70 : f32 to vector<8x32xf32>
    %155 = arith.addf %153, %154 : vector<8x32xf32>
    %156 = arith.mulf %155, %129 : vector<8x32xf32>
    %cst_71 = arith.constant -0.00737332925 : f32
    %157 = vector.broadcast %cst_71 : f32 to vector<8x32xf32>
    %158 = arith.addf %156, %157 : vector<8x32xf32>
    %159 = arith.mulf %158, %129 : vector<8x32xf32>
    %cst_72 = arith.constant -0.0142647391 : f32
    %160 = vector.broadcast %cst_72 : f32 to vector<8x32xf32>
    %161 = arith.addf %159, %160 : vector<8x32xf32>
    %162 = arith.mulf %128, %148 : vector<8x32xf32>
    %163 = arith.divf %162, %161 : vector<8x32xf32>
    %cst_73 = arith.constant 1.000000e+00 : f32
    %164 = vector.broadcast %cst_73 : f32 to vector<8x32xf32>
    %165 = arith.addf %164, %163 : vector<8x32xf32>
    %166 = arith.mulf %122, %165 : vector<8x32xf32>
    %167 = arith.truncf %166 : vector<8x32xf32> to vector<8x32xbf16>
    %c0_74 = arith.constant 0 : index
    %c5 = arith.constant 5 : index
    %c0_75 = arith.constant 0 : index
    %c0_76 = arith.constant 0 : index
    %168 = vector.load %arg5[%c0_74, %c5, %c0_75, %c0_76] : memref<2x6x32x32xbf16, #tpu.memory_space<vmem>>, vector<1x1x32x32xbf16>
    %169 = vector.shape_cast %168 : vector<1x1x32x32xbf16> to vector<32x32xbf16>
    %cst_77 = arith.constant dense<0.000000e+00> : vector<8x32xf32>
    %170 = tpu.matmul %167, %169, %cst_77 {dimension_numbers = #tpu.dot_dimension_numbers<[1], [0], [0], [1], [0, 0, 1, 1], [], []>} : vector<8x32xbf16>, vector<32x32xbf16>, vector<8x32xf32> -> vector<8x32xf32>
    %171 = vector.broadcast %17 : vector<1x32xf32> to vector<8x32xf32>
    %172 = arith.addf %170, %171 : vector<8x32xf32>
    %173 = arith.addf %1, %172 : vector<8x32xf32>
    %cst_78 = arith.constant dense<0.000000e+00> : vector<8xf32>
    %174 = vector.multi_reduction <add>, %173, %cst_78 [1] : vector<8x32xf32> to vector<8xf32>
    %175 = vector.shape_cast %174 : vector<8xf32> to vector<8x1xf32>
    %cst_79 = arith.constant 3.200000e+01 : f32
    %176 = vector.broadcast %cst_79 : f32 to vector<8x1xf32>
    %177 = arith.divf %175, %176 : vector<8x1xf32>
    %178 = vector.broadcast %177 : vector<8x1xf32> to vector<8x32xf32>
    %179 = arith.subf %173, %178 : vector<8x32xf32>
    %180 = arith.mulf %179, %179 : vector<8x32xf32>
    %cst_80 = arith.constant dense<0.000000e+00> : vector<8xf32>
    %181 = vector.multi_reduction <add>, %180, %cst_80 [1] : vector<8x32xf32> to vector<8xf32>
    %182 = vector.shape_cast %181 : vector<8xf32> to vector<8x1xf32>
    %cst_81 = arith.constant 3.200000e+01 : f32
    %183 = vector.broadcast %cst_81 : f32 to vector<8x1xf32>
    %184 = arith.divf %182, %183 : vector<8x1xf32>
    %185 = vector.broadcast %177 : vector<8x1xf32> to vector<8x32xf32>
    %186 = arith.subf %173, %185 : vector<8x32xf32>
    %cst_82 = arith.constant 9.99999974E-6 : f32
    %187 = vector.broadcast %cst_82 : f32 to vector<8x1xf32>
    %188 = arith.addf %184, %187 : vector<8x1xf32>
    %189 = math.rsqrt %188 : vector<8x1xf32>
    %190 = vector.broadcast %189 : vector<8x1xf32> to vector<8x32xf32>
    %191 = arith.mulf %186, %190 : vector<8x32xf32>
    %192 = vector.broadcast %18 : vector<1x32xf32> to vector<8x32xf32>
    %193 = arith.mulf %191, %192 : vector<8x32xf32>
    %194 = vector.broadcast %19 : vector<1x32xf32> to vector<8x32xf32>
    %195 = arith.addf %193, %194 : vector<8x32xf32>
    %c1_83 = arith.constant 1 : index
    %c0_84 = arith.constant 0 : index
    %c0_85 = arith.constant 0 : index
    %196 = vector.load %arg6[%c1_83, %c0_84, %c0_85] : memref<2x8x32xf32, #tpu.memory_space<vmem>>, vector<1x8x32xf32>
    %197 = vector.shape_cast %196 : vector<1x8x32xf32> to vector<8x32xf32>
    %198 = vector.extract_strided_slice %197 {offsets = [0, 0], sizes = [1, 32], strides = [1, 1]} : vector<8x32xf32> to vector<1x32xf32>
    %199 = vector.extract_strided_slice %197 {offsets = [1, 0], sizes = [1, 32], strides = [1, 1]} : vector<8x32xf32> to vector<1x32xf32>
    %200 = vector.extract_strided_slice %197 {offsets = [2, 0], sizes = [1, 32], strides = [1, 1]} : vector<8x32xf32> to vector<1x32xf32>
    %201 = vector.extract_strided_slice %197 {offsets = [3, 0], sizes = [1, 32], strides = [1, 1]} : vector<8x32xf32> to vector<1x32xf32>
    %202 = vector.extract_strided_slice %197 {offsets = [4, 0], sizes = [1, 32], strides = [1, 1]} : vector<8x32xf32> to vector<1x32xf32>
    %203 = vector.extract_strided_slice %197 {offsets = [5, 0], sizes = [1, 32], strides = [1, 1]} : vector<8x32xf32> to vector<1x32xf32>
    %204 = vector.extract_strided_slice %197 {offsets = [6, 0], sizes = [1, 32], strides = [1, 1]} : vector<8x32xf32> to vector<1x32xf32>
    %205 = vector.extract_strided_slice %197 {offsets = [7, 0], sizes = [1, 32], strides = [1, 1]} : vector<8x32xf32> to vector<1x32xf32>
    %206 = arith.addf %195, %3 : vector<8x32xf32>
    %207 = arith.truncf %206 : vector<8x32xf32> to vector<8x32xbf16>
    %c1_86 = arith.constant 1 : index
    %c0_87 = arith.constant 0 : index
    %c0_88 = arith.constant 0 : index
    %c0_89 = arith.constant 0 : index
    %208 = vector.load %arg5[%c1_86, %c0_87, %c0_88, %c0_89] : memref<2x6x32x32xbf16, #tpu.memory_space<vmem>>, vector<1x1x32x32xbf16>
    %209 = vector.shape_cast %208 : vector<1x1x32x32xbf16> to vector<32x32xbf16>
    %cst_90 = arith.constant dense<0.000000e+00> : vector<8x32xf32>
    %210 = tpu.matmul %207, %209, %cst_90 {dimension_numbers = #tpu.dot_dimension_numbers<[1], [0], [0], [1], [0, 0, 1, 1], [], []>} : vector<8x32xbf16>, vector<32x32xbf16>, vector<8x32xf32> -> vector<8x32xf32>
    %211 = vector.broadcast %198 : vector<1x32xf32> to vector<8x32xf32>
    %212 = arith.addf %210, %211 : vector<8x32xf32>
    %c1_91 = arith.constant 1 : index
    %c1_92 = arith.constant 1 : index
    %c0_93 = arith.constant 0 : index
    %c0_94 = arith.constant 0 : index
    %213 = vector.load %arg5[%c1_91, %c1_92, %c0_93, %c0_94] : memref<2x6x32x32xbf16, #tpu.memory_space<vmem>>, vector<1x1x32x32xbf16>
    %214 = vector.shape_cast %213 : vector<1x1x32x32xbf16> to vector<32x32xbf16>
    %cst_95 = arith.constant dense<0.000000e+00> : vector<16x32xf32>
    %215 = tpu.matmul %6, %214, %cst_95 {dimension_numbers = #tpu.dot_dimension_numbers<[1], [0], [0], [1], [0, 0, 1, 1], [], []>} : vector<16x32xbf16>, vector<32x32xbf16>, vector<16x32xf32> -> vector<16x32xf32>
    %216 = vector.broadcast %199 : vector<1x32xf32> to vector<16x32xf32>
    %217 = arith.addf %215, %216 : vector<16x32xf32>
    %c1_96 = arith.constant 1 : index
    %c2_97 = arith.constant 2 : index
    %c0_98 = arith.constant 0 : index
    %c0_99 = arith.constant 0 : index
    %218 = vector.load %arg5[%c1_96, %c2_97, %c0_98, %c0_99] : memref<2x6x32x32xbf16, #tpu.memory_space<vmem>>, vector<1x1x32x32xbf16>
    %219 = vector.shape_cast %218 : vector<1x1x32x32xbf16> to vector<32x32xbf16>
    %cst_100 = arith.constant dense<0.000000e+00> : vector<16x32xf32>
    %220 = tpu.matmul %9, %219, %cst_100 {dimension_numbers = #tpu.dot_dimension_numbers<[1], [0], [0], [1], [0, 0, 1, 1], [], []>} : vector<16x32xbf16>, vector<32x32xbf16>, vector<16x32xf32> -> vector<16x32xf32>
    %221 = vector.broadcast %200 : vector<1x32xf32> to vector<16x32xf32>
    %222 = arith.addf %220, %221 : vector<16x32xf32>
    %223 = arith.truncf %212 : vector<8x32xf32> to vector<8x32xbf16>
    %224 = arith.truncf %217 : vector<16x32xf32> to vector<16x32xbf16>
    %225 = arith.truncf %222 : vector<16x32xf32> to vector<16x32xbf16>
    %226 = vector.extract_strided_slice %223 {offsets = [0, 0], sizes = [8, 8], strides = [1, 1]} : vector<8x32xbf16> to vector<8x8xbf16>
    %227 = vector.extract_strided_slice %224 {offsets = [0, 0], sizes = [16, 8], strides = [1, 1]} : vector<16x32xbf16> to vector<16x8xbf16>
    "tpu.trace_start"() <{level = 10 : i32, message = "qd,kd->qk"}> : () -> ()
    %cst_101 = arith.constant dense<0.000000e+00> : vector<8x16xf32>
    %228 = tpu.matmul %226, %227, %cst_101 {dimension_numbers = #tpu.dot_dimension_numbers<[1], [1], [0], [0], [0, 0, 1, 0], [], []>} : vector<8x8xbf16>, vector<16x8xbf16>, vector<8x16xf32> -> vector<8x16xf32>
    "tpu.trace_stop"() : () -> ()
    %cst_102 = arith.constant dense<0xFF800000> : vector<8xf32>
    %229 = vector.multi_reduction <maximumf>, %228, %cst_102 [1] : vector<8x16xf32> to vector<8xf32>
    %230 = vector.shape_cast %229 : vector<8xf32> to vector<8x1xf32>
    %231 = vector.broadcast %230 : vector<8x1xf32> to vector<8x16xf32>
    %232 = arith.subf %228, %231 : vector<8x16xf32>
    %233 = math.exp %232 : vector<8x16xf32>
    %cst_103 = arith.constant dense<0.000000e+00> : vector<8xf32>
    %234 = vector.multi_reduction <add>, %233, %cst_103 [1] : vector<8x16xf32> to vector<8xf32>
    %235 = vector.shape_cast %234 : vector<8xf32> to vector<8x1xf32>
    %236 = tpu.reciprocal %235 {approx = true} : vector<8x1xf32> -> vector<8x1xf32>
    %237 = vector.broadcast %236 : vector<8x1xf32> to vector<8x16xf32>
    %238 = arith.mulf %233, %237 : vector<8x16xf32>
    %239 = arith.truncf %238 : vector<8x16xf32> to vector<8x16xbf16>
    %240 = vector.extract_strided_slice %225 {offsets = [0, 0], sizes = [16, 8], strides = [1, 1]} : vector<16x32xbf16> to vector<16x8xbf16>
    %cst_104 = arith.constant dense<0.000000e+00> : vector<8x8xf32>
    %241 = tpu.matmul %239, %240, %cst_104 {dimension_numbers = #tpu.dot_dimension_numbers<[1], [0], [0], [1], [0, 0, 1, 1], [], []>} : vector<8x16xbf16>, vector<16x8xbf16>, vector<8x8xf32> -> vector<8x8xf32>
    %c0_105 = arith.constant 0 : index
    %c0_106 = arith.constant 0 : index
    %242 = vector.load %arg8[%c0_105, %c0_106] : memref<8x32xf32, #tpu.memory_space<vmem>>, vector<8x8xf32>
    tpu.vector_store %arg8[%c0_105, %c0_106], %241 {strides = array<i32>} : memref<8x32xf32, #tpu.memory_space<vmem>>, vector<8x8xf32>,
    %243 = vector.extract_strided_slice %223 {offsets = [0, 8], sizes = [8, 8], strides = [1, 1]} : vector<8x32xbf16> to vector<8x8xbf16>
    %244 = vector.extract_strided_slice %224 {offsets = [0, 8], sizes = [16, 8], strides = [1, 1]} : vector<16x32xbf16> to vector<16x8xbf16>
    "tpu.trace_start"() <{level = 10 : i32, message = "qd,kd->qk"}> : () -> ()
    %cst_107 = arith.constant dense<0.000000e+00> : vector<8x16xf32>
    %245 = tpu.matmul %243, %244, %cst_107 {dimension_numbers = #tpu.dot_dimension_numbers<[1], [1], [0], [0], [0, 0, 1, 0], [], []>} : vector<8x8xbf16>, vector<16x8xbf16>, vector<8x16xf32> -> vector<8x16xf32>
    "tpu.trace_stop"() : () -> ()
    %cst_108 = arith.constant dense<0xFF800000> : vector<8xf32>
    %246 = vector.multi_reduction <maximumf>, %245, %cst_108 [1] : vector<8x16xf32> to vector<8xf32>
    %247 = vector.shape_cast %246 : vector<8xf32> to vector<8x1xf32>
    %248 = vector.broadcast %247 : vector<8x1xf32> to vector<8x16xf32>
    %249 = arith.subf %245, %248 : vector<8x16xf32>
    %250 = math.exp %249 : vector<8x16xf32>
    %cst_109 = arith.constant dense<0.000000e+00> : vector<8xf32>
    %251 = vector.multi_reduction <add>, %250, %cst_109 [1] : vector<8x16xf32> to vector<8xf32>
    %252 = vector.shape_cast %251 : vector<8xf32> to vector<8x1xf32>
    %253 = tpu.reciprocal %252 {approx = true} : vector<8x1xf32> -> vector<8x1xf32>
    %254 = vector.broadcast %253 : vector<8x1xf32> to vector<8x16xf32>
    %255 = arith.mulf %250, %254 : vector<8x16xf32>
    %256 = arith.truncf %255 : vector<8x16xf32> to vector<8x16xbf16>
    %257 = vector.extract_strided_slice %225 {offsets = [0, 8], sizes = [16, 8], strides = [1, 1]} : vector<16x32xbf16> to vector<16x8xbf16>
    %cst_110 = arith.constant dense<0.000000e+00> : vector<8x8xf32>
    %258 = tpu.matmul %256, %257, %cst_110 {dimension_numbers = #tpu.dot_dimension_numbers<[1], [0], [0], [1], [0, 0, 1, 1], [], []>} : vector<8x16xbf16>, vector<16x8xbf16>, vector<8x8xf32> -> vector<8x8xf32>
    %c0_111 = arith.constant 0 : index
    %c8_112 = arith.constant 8 : index
    %259 = vector.load %arg8[%c0_111, %c8_112] : memref<8x32xf32, #tpu.memory_space<vmem>>, vector<8x8xf32>
    tpu.vector_store %arg8[%c0_111, %c8_112], %258 {strides = array<i32>} : memref<8x32xf32, #tpu.memory_space<vmem>>, vector<8x8xf32>,
    %260 = vector.extract_strided_slice %223 {offsets = [0, 16], sizes = [8, 8], strides = [1, 1]} : vector<8x32xbf16> to vector<8x8xbf16>
    %261 = vector.extract_strided_slice %224 {offsets = [0, 16], sizes = [16, 8], strides = [1, 1]} : vector<16x32xbf16> to vector<16x8xbf16>
    "tpu.trace_start"() <{level = 10 : i32, message = "qd,kd->qk"}> : () -> ()
    %cst_113 = arith.constant dense<0.000000e+00> : vector<8x16xf32>
    %262 = tpu.matmul %260, %261, %cst_113 {dimension_numbers = #tpu.dot_dimension_numbers<[1], [1], [0], [0], [0, 0, 1, 0], [], []>} : vector<8x8xbf16>, vector<16x8xbf16>, vector<8x16xf32> -> vector<8x16xf32>
    "tpu.trace_stop"() : () -> ()
    %cst_114 = arith.constant dense<0xFF800000> : vector<8xf32>
    %263 = vector.multi_reduction <maximumf>, %262, %cst_114 [1] : vector<8x16xf32> to vector<8xf32>
    %264 = vector.shape_cast %263 : vector<8xf32> to vector<8x1xf32>
    %265 = vector.broadcast %264 : vector<8x1xf32> to vector<8x16xf32>
    %266 = arith.subf %262, %265 : vector<8x16xf32>
    %267 = math.exp %266 : vector<8x16xf32>
    %cst_115 = arith.constant dense<0.000000e+00> : vector<8xf32>
    %268 = vector.multi_reduction <add>, %267, %cst_115 [1] : vector<8x16xf32> to vector<8xf32>
    %269 = vector.shape_cast %268 : vector<8xf32> to vector<8x1xf32>
    %270 = tpu.reciprocal %269 {approx = true} : vector<8x1xf32> -> vector<8x1xf32>
    %271 = vector.broadcast %270 : vector<8x1xf32> to vector<8x16xf32>
    %272 = arith.mulf %267, %271 : vector<8x16xf32>
    %273 = arith.truncf %272 : vector<8x16xf32> to vector<8x16xbf16>
    %274 = vector.extract_strided_slice %225 {offsets = [0, 16], sizes = [16, 8], strides = [1, 1]} : vector<16x32xbf16> to vector<16x8xbf16>
    %cst_116 = arith.constant dense<0.000000e+00> : vector<8x8xf32>
    %275 = tpu.matmul %273, %274, %cst_116 {dimension_numbers = #tpu.dot_dimension_numbers<[1], [0], [0], [1], [0, 0, 1, 1], [], []>} : vector<8x16xbf16>, vector<16x8xbf16>, vector<8x8xf32> -> vector<8x8xf32>
    %c0_117 = arith.constant 0 : index
    %c16_118 = arith.constant 16 : index
    %276 = vector.load %arg8[%c0_117, %c16_118] : memref<8x32xf32, #tpu.memory_space<vmem>>, vector<8x8xf32>
    tpu.vector_store %arg8[%c0_117, %c16_118], %275 {strides = array<i32>} : memref<8x32xf32, #tpu.memory_space<vmem>>, vector<8x8xf32>,
    %277 = vector.extract_strided_slice %223 {offsets = [0, 24], sizes = [8, 8], strides = [1, 1]} : vector<8x32xbf16> to vector<8x8xbf16>
    %278 = vector.extract_strided_slice %224 {offsets = [0, 24], sizes = [16, 8], strides = [1, 1]} : vector<16x32xbf16> to vector<16x8xbf16>
    "tpu.trace_start"() <{level = 10 : i32, message = "qd,kd->qk"}> : () -> ()
    %cst_119 = arith.constant dense<0.000000e+00> : vector<8x16xf32>
    %279 = tpu.matmul %277, %278, %cst_119 {dimension_numbers = #tpu.dot_dimension_numbers<[1], [1], [0], [0], [0, 0, 1, 0], [], []>} : vector<8x8xbf16>, vector<16x8xbf16>, vector<8x16xf32> -> vector<8x16xf32>
    "tpu.trace_stop"() : () -> ()
    %cst_120 = arith.constant dense<0xFF800000> : vector<8xf32>
    %280 = vector.multi_reduction <maximumf>, %279, %cst_120 [1] : vector<8x16xf32> to vector<8xf32>
    %281 = vector.shape_cast %280 : vector<8xf32> to vector<8x1xf32>
    %282 = vector.broadcast %281 : vector<8x1xf32> to vector<8x16xf32>
    %283 = arith.subf %279, %282 : vector<8x16xf32>
    %284 = math.exp %283 : vector<8x16xf32>
    %cst_121 = arith.constant dense<0.000000e+00> : vector<8xf32>
    %285 = vector.multi_reduction <add>, %284, %cst_121 [1] : vector<8x16xf32> to vector<8xf32>
    %286 = vector.shape_cast %285 : vector<8xf32> to vector<8x1xf32>
    %287 = tpu.reciprocal %286 {approx = true} : vector<8x1xf32> -> vector<8x1xf32>
    %288 = vector.broadcast %287 : vector<8x1xf32> to vector<8x16xf32>
    %289 = arith.mulf %284, %288 : vector<8x16xf32>
    %290 = arith.truncf %289 : vector<8x16xf32> to vector<8x16xbf16>
    %291 = vector.extract_strided_slice %225 {offsets = [0, 24], sizes = [16, 8], strides = [1, 1]} : vector<16x32xbf16> to vector<16x8xbf16>
    %cst_122 = arith.constant dense<0.000000e+00> : vector<8x8xf32>
    %292 = tpu.matmul %290, %291, %cst_122 {dimension_numbers = #tpu.dot_dimension_numbers<[1], [0], [0], [1], [0, 0, 1, 1], [], []>} : vector<8x16xbf16>, vector<16x8xbf16>, vector<8x8xf32> -> vector<8x8xf32>
    %c0_123 = arith.constant 0 : index
    %c24_124 = arith.constant 24 : index
    %293 = vector.load %arg8[%c0_123, %c24_124] : memref<8x32xf32, #tpu.memory_space<vmem>>, vector<8x8xf32>
    tpu.vector_store %arg8[%c0_123, %c24_124], %292 {strides = array<i32>} : memref<8x32xf32, #tpu.memory_space<vmem>>, vector<8x8xf32>,
    %c0_125 = arith.constant 0 : index
    %c0_126 = arith.constant 0 : index
    %294 = vector.load %arg8[%c0_125, %c0_126] : memref<8x32xf32, #tpu.memory_space<vmem>>, vector<8x32xf32>
    %295 = arith.truncf %294 : vector<8x32xf32> to vector<8x32xbf16>
    %c1_127 = arith.constant 1 : index
    %c3_128 = arith.constant 3 : index
    %c0_129 = arith.constant 0 : index
    %c0_130 = arith.constant 0 : index
    %296 = vector.load %arg5[%c1_127, %c3_128, %c0_129, %c0_130] : memref<2x6x32x32xbf16, #tpu.memory_space<vmem>>, vector<1x1x32x32xbf16>
    %297 = vector.shape_cast %296 : vector<1x1x32x32xbf16> to vector<32x32xbf16>
    %cst_131 = arith.constant dense<0.000000e+00> : vector<8x32xf32>
    %298 = tpu.matmul %295, %297, %cst_131 {dimension_numbers = #tpu.dot_dimension_numbers<[1], [0], [0], [1], [0, 0, 1, 1], [], []>} : vector<8x32xbf16>, vector<32x32xbf16>, vector<8x32xf32> -> vector<8x32xf32>
    %299 = vector.broadcast %201 : vector<1x32xf32> to vector<8x32xf32>
    %300 = arith.addf %298, %299 : vector<8x32xf32>
    %301 = arith.truncf %300 : vector<8x32xf32> to vector<8x32xbf16>
    %c1_132 = arith.constant 1 : index
    %c4_133 = arith.constant 4 : index
    %c0_134 = arith.constant 0 : index
    %c0_135 = arith.constant 0 : index
    %302 = vector.load %arg5[%c1_132, %c4_133, %c0_134, %c0_135] : memref<2x6x32x32xbf16, #tpu.memory_space<vmem>>, vector<1x1x32x32xbf16>
    %303 = vector.shape_cast %302 : vector<1x1x32x32xbf16> to vector<32x32xbf16>
    %cst_136 = arith.constant dense<0.000000e+00> : vector<8x32xf32>
    %304 = tpu.matmul %301, %303, %cst_136 {dimension_numbers = #tpu.dot_dimension_numbers<[1], [0], [0], [1], [0, 0, 1, 1], [], []>} : vector<8x32xbf16>, vector<32x32xbf16>, vector<8x32xf32> -> vector<8x32xf32>
    %305 = vector.broadcast %202 : vector<1x32xf32> to vector<8x32xf32>
    %306 = arith.addf %304, %305 : vector<8x32xf32>
    %cst_137 = arith.constant 5.000000e-01 : f32
    %307 = vector.broadcast %cst_137 : f32 to vector<8x32xf32>
    %308 = arith.mulf %307, %306 : vector<8x32xf32>
    %cst_138 = arith.constant 0.707106769 : f32
    %309 = vector.broadcast %cst_138 : f32 to vector<8x32xf32>
    %310 = arith.mulf %306, %309 : vector<8x32xf32>
    %cst_139 = arith.constant -4.000000e+00 : f32
    %cst_140 = arith.constant 4.000000e+00 : f32
    %311 = vector.broadcast %cst_139 : f32 to vector<8x32xf32>
    %312 = arith.maximumf %311, %310 : vector<8x32xf32>
    %313 = vector.broadcast %cst_140 : f32 to vector<8x32xf32>
    %314 = arith.minimumf %313, %312 : vector<8x32xf32>
    %315 = arith.mulf %314, %314 : vector<8x32xf32>
    %cst_141 = arith.constant -2.72614237E-10 : f32
    %316 = vector.broadcast %cst_141 : f32 to vector<8x32xf32>
    %317 = arith.mulf %316, %315 : vector<8x32xf32>
    %cst_142 = arith.constant 2.77068146E-8 : f32
    %318 = vector.broadcast %cst_142 : f32 to vector<8x32xf32>
    %319 = arith.addf %317, %318 : vector<8x32xf32>
    %320 = arith.mulf %319, %315 : vector<8x32xf32>
    %cst_143 = arith.constant -2.10102394E-6 : f32
    %321 = vector.broadcast %cst_143 : f32 to vector<8x32xf32>
    %322 = arith.addf %320, %321 : vector<8x32xf32>
    %323 = arith.mulf %322, %315 : vector<8x32xf32>
    %cst_144 = arith.constant -5.69250624E-5 : f32
    %324 = vector.broadcast %cst_144 : f32 to vector<8x32xf32>
    %325 = arith.addf %323, %324 : vector<8x32xf32>
    %326 = arith.mulf %325, %315 : vector<8x32xf32>
    %cst_145 = arith.constant -7.34990637E-4 : f32
    %327 = vector.broadcast %cst_145 : f32 to vector<8x32xf32>
    %328 = arith.addf %326, %327 : vector<8x32xf32>
    %329 = arith.mulf %328, %315 : vector<8x32xf32>
    %cst_146 = arith.constant -2.954600e-03 : f32
    %330 = vector.broadcast %cst_146 : f32 to vector<8x32xf32>
    %331 = arith.addf %329, %330 : vector<8x32xf32>
    %332 = arith.mulf %331, %315 : vector<8x32xf32>
    %cst_147 = arith.constant -0.0160960332 : f32
    %333 = vector.broadcast %cst_147 : f32 to vector<8x32xf32>
    %334 = arith.addf %332, %333 : vector<8x32xf32>
    %cst_148 = arith.constant -1.45660715E-5 : f32
    %335 = vector.broadcast %cst_148 : f32 to vector<8x32xf32>
    %336 = arith.mulf %335, %315 : vector<8x32xf32>
    %cst_149 = arith.constant -2.13374049E-4 : f32
    %337 = vector.broadcast %cst_149 : f32 to vector<8x32xf32>
    %338 = arith.addf %336, %337 : vector<8x32xf32>
    %339 = arith.mulf %338, %315 : vector<8x32xf32>
    %cst_150 = arith.constant -0.00168282702 : f32
    %340 = vector.broadcast %cst_150 : f32 to vector<8x32xf32>
    %341 = arith.addf %339, %340 : vector<8x32xf32>
    %342 = arith.mulf %341, %315 : vector<8x32xf32>
    %cst_151 = arith.constant -0.00737332925 : f32
    %343 = vector.broadcast %cst_151 : f32 to vector<8x32xf32>
    %344 = arith.addf %342, %343 : vector<8x32xf32>
    %345 = arith.mulf %344, %315 : vector<8x32xf32>
    %cst_152 = arith.constant -0.0142647391 : f32
    %346 = vector.broadcast %cst_152 : f32 to vector<8x32xf32>
    %347 = arith.addf %345, %346 : vector<8x32xf32>
    %348 = arith.mulf %314, %334 : vector<8x32xf32>
    %349 = arith.divf %348, %347 : vector<8x32xf32>
    %cst_153 = arith.constant 1.000000e+00 : f32
    %350 = vector.broadcast %cst_153 : f32 to vector<8x32xf32>
    %351 = arith.addf %350, %349 : vector<8x32xf32>
    %352 = arith.mulf %308, %351 : vector<8x32xf32>
    %353 = arith.truncf %352 : vector<8x32xf32> to vector<8x32xbf16>
    %c1_154 = arith.constant 1 : index
    %c5_155 = arith.constant 5 : index
    %c0_156 = arith.constant 0 : index
    %c0_157 = arith.constant 0 : index
    %354 = vector.load %arg5[%c1_154, %c5_155, %c0_156, %c0_157] : memref<2x6x32x32xbf16, #tpu.memory_space<vmem>>, vector<1x1x32x32xbf16>
    %355 = vector.shape_cast %354 : vector<1x1x32x32xbf16> to vector<32x32xbf16>
    %cst_158 = arith.constant dense<0.000000e+00> : vector<8x32xf32>
    %356 = tpu.matmul %353, %355, %cst_158 {dimension_numbers = #tpu.dot_dimension_numbers<[1], [0], [0], [1], [0, 0, 1, 1], [], []>} : vector<8x32xbf16>, vector<32x32xbf16>, vector<8x32xf32> -> vector<8x32xf32>
    %357 = vector.broadcast %203 : vector<1x32xf32> to vector<8x32xf32>
    %358 = arith.addf %356, %357 : vector<8x32xf32>
    %359 = arith.addf %195, %358 : vector<8x32xf32>
    %cst_159 = arith.constant dense<0.000000e+00> : vector<8xf32>
    %360 = vector.multi_reduction <add>, %359, %cst_159 [1] : vector<8x32xf32> to vector<8xf32>
    %361 = vector.shape_cast %360 : vector<8xf32> to vector<8x1xf32>
    %cst_160 = arith.constant 3.200000e+01 : f32
    %362 = vector.broadcast %cst_160 : f32 to vector<8x1xf32>
    %363 = arith.divf %361, %362 : vector<8x1xf32>
    %364 = vector.broadcast %363 : vector<8x1xf32> to vector<8x32xf32>
    %365 = arith.subf %359, %364 : vector<8x32xf32>
    %366 = arith.mulf %365, %365 : vector<8x32xf32>
    %cst_161 = arith.constant dense<0.000000e+00> : vector<8xf32>
    %367 = vector.multi_reduction <add>, %366, %cst_161 [1] : vector<8x32xf32> to vector<8xf32>
    %368 = vector.shape_cast %367 : vector<8xf32> to vector<8x1xf32>
    %cst_162 = arith.constant 3.200000e+01 : f32
    %369 = vector.broadcast %cst_162 : f32 to vector<8x1xf32>
    %370 = arith.divf %368, %369 : vector<8x1xf32>
    %371 = vector.broadcast %363 : vector<8x1xf32> to vector<8x32xf32>
    %372 = arith.subf %359, %371 : vector<8x32xf32>
    %cst_163 = arith.constant 9.99999974E-6 : f32
    %373 = vector.broadcast %cst_163 : f32 to vector<8x1xf32>
    %374 = arith.addf %370, %373 : vector<8x1xf32>
    %375 = math.rsqrt %374 : vector<8x1xf32>
    %376 = vector.broadcast %375 : vector<8x1xf32> to vector<8x32xf32>
    %377 = arith.mulf %372, %376 : vector<8x32xf32>
    %378 = vector.broadcast %204 : vector<1x32xf32> to vector<8x32xf32>
    %379 = arith.mulf %377, %378 : vector<8x32xf32>
    %380 = vector.broadcast %205 : vector<1x32xf32> to vector<8x32xf32>
    %381 = arith.addf %379, %380 : vector<8x32xf32>
    %c0_164 = arith.constant 0 : index
    %c0_165 = arith.constant 0 : index
    %c0_166 = arith.constant 0 : index
    %382 = vector.load %arg7[%c0_164, %c0_165, %c0_166] : memref<1x8x32xf32, #tpu.memory_space<vmem>>, vector<1x8x32xf32>
    %383 = vector.shape_cast %382 : vector<1x8x32xf32> to vector<8x32xf32>
    %384 = vector.shape_cast %381 : vector<8x32xf32> to vector<1x8x32xf32>
    tpu.vector_store %arg7[%c0_164, %c0_165, %c0_166], %384 {strides = array<i32>} : memref<1x8x32xf32, #tpu.memory_space<vmem>>, vector<1x8x32xf32>,
    return
  }
  func.func @transform_0(%arg0: i32) -> (i32, i32, i32) {
    %c0_i32 = arith.constant 0 : i32
    %c0_i32_0 = arith.constant 0 : i32
    %c0_i32_1 = arith.constant 0 : i32
    return %arg0, %c0_i32, %c0_i32_0 : i32, i32, i32
  }
  func.func @transform_1(%arg0: i32) -> (i32, i32, i32) {
    %c0_i32 = arith.constant 0 : i32
    %c0_i32_0 = arith.constant 0 : i32
    %c0_i32_1 = arith.constant 0 : i32
    return %arg0, %c0_i32, %c0_i32_0 : i32, i32, i32
  }
  func.func @transform_2(%arg0: i32) -> (i32, i32, i32) {
    %c0_i32 = arith.constant 0 : i32
    %c0_i32_0 = arith.constant 0 : i32
    %c0_i32_1 = arith.constant 0 : i32
    return %arg0, %c0_i32, %c0_i32_0 : i32, i32, i32
  }
  func.func @transform_3(%arg0: i32) -> (i32, i32, i32) {
    %c0_i32 = arith.constant 0 : i32
    %c0_i32_0 = arith.constant 0 : i32
    %c0_i32_1 = arith.constant 0 : i32
    return %arg0, %c0_i32, %c0_i32_0 : i32, i32, i32
  }
  func.func @transform_4(%arg0: i32) -> (i32, i32, i32, i32) {
    %c0_i32 = arith.constant 0 : i32
    %c0_i32_0 = arith.constant 0 : i32
    %c0_i32_1 = arith.constant 0 : i32
    %c0_i32_2 = arith.constant 0 : i32
    %c0_i32_3 = arith.constant 0 : i32
    return %c0_i32, %c0_i32_0, %c0_i32_1, %c0_i32_2 : i32, i32, i32, i32
  }
  func.func @transform_5(%arg0: i32) -> (i32, i32, i32) {
    %c0_i32 = arith.constant 0 : i32
    %c0_i32_0 = arith.constant 0 : i32
    %c0_i32_1 = arith.constant 0 : i32
    %c0_i32_2 = arith.constant 0 : i32
    return %c0_i32, %c0_i32_0, %c0_i32_1 : i32, i32, i32
  }
  func.func @transform_6(%arg0: i32) -> (i32, i32, i32) {
    %c0_i32 = arith.constant 0 : i32
    %c0_i32_0 = arith.constant 0 : i32
    %c0_i32_1 = arith.constant 0 : i32
    return %arg0, %c0_i32, %c0_i32_0 : i32, i32, i32
  }
}

</mosaic_0001>

<llo_original>
// kernel: tpu_custom_call.1
$region0: #{tpu_custom_call.1}
  #allocation0 [shape = 'u32[]', space=smem, size = 0x4, offset = 0x4, fixed_abs, tag = 'smem constant byte address 0x4 - core index']
  #allocation1 [shape = 'u32[144,128]{1,0:T(1,128)}', space=vmem, size = 0x12000, scoped, tag = 'internal scratch']
  #allocation2 [shape = 'f32[8,32]{1,0:T(8,128)}', space=vmem, size = 0x1000, scoped, tag = 'scratch operand']
  %s0 = inlined_call_operand.hbm [shape: f32[2,8,32], index: 0, kind: input, shape index: {}]
  %s1 = inlined_call_operand.hbm [shape: f32[2,8,32], index: 1, kind: input, shape index: {}]
  %s2 = inlined_call_operand.hbm [shape: f32[2,16,32], index: 2, kind: input, shape index: {}]
  %s3 = inlined_call_operand.hbm [shape: f32[2,16,32], index: 3, kind: input, shape index: {}]
  %s4 = inlined_call_operand.hbm [shape: bf16[2,6,32,32], index: 4, kind: input, shape index: {}]
  %s5 = inlined_call_operand.vmem [shape: f32[2,8,32], index: 5, kind: input, shape index: {}]
  %s6 = inlined_call_operand.hbm [shape: f32[2,8,32], index: 6, kind: output, shape index: {}]
  %s7 = sld [smem:[#allocation0]]
  $region77: #{tpu_custom_call.1} parent=0
    _
  %s9 = ssub.s32 1, %s7
  %s10 = scalar_select 0, %s9, %s7
  $region1: #{tpu_custom_call.1} parent=0
    #allocation3 [shape = 'u8[8192]{0}', space=vmem, size = 0x2000, scoped, tag = 'input window, operand 0']
    #allocation4 [shape = 's32[2]{0}', space=sflag, size = 0x8, scoped, tag = 'scoped memory for tpu_custom_call.1']
    #allocation5 [shape = 's32[2]{0}', space=sflag, size = 0x8, scoped, tag = 'scoped memory for tpu_custom_call.1']
    #allocation6 [shape = 'u8[8192]{0}', space=vmem, size = 0x2000, scoped, tag = 'input window, operand 1']
    #allocation7 [shape = 's32[2]{0}', space=sflag, size = 0x8, scoped, tag = 'scoped memory for tpu_custom_call.1']
    #allocation8 [shape = 'u8[16384]{0}', space=vmem, size = 0x4000, scoped, tag = 'input window, operand 2']
    #allocation9 [shape = 'u8[16384]{0}', space=vmem, size = 0x4000, scoped, tag = 'input window, operand 3']
    #allocation10 [shape = 's32[2]{0}', space=sflag, size = 0x8, scoped, tag = 'scoped memory for tpu_custom_call.1']
    #allocation11 [shape = 'u8[98304]{0}', space=vmem, size = 0x18000, scoped, tag = 'input window, operand 4, single buffered']
    #allocation12 [shape = 'u8[8192]{0}', space=vmem, size = 0x2000, scoped, tag = 'output window, operand 0']
    %11 = vsyncpa [#allocation4], 0
    %s12 = scalar_lea.sflag [#allocation4], 1
    %13 = vsyncpa %s12, 0
    %14 = vsyncpa [#allocation7], 0
    %s15 = scalar_lea.sflag [#allocation7], 1
    %16 = vsyncpa %s15, 0
    %17 = vsyncpa [#allocation10], 0
    %s18 = scalar_lea.sflag [#allocation10], 1
    %19 = vsyncpa %s18, 0
    %20 = vsyncpa [#allocation5], 0
    %s21 = scalar_lea.sflag [#allocation5], 1
    %22 = vsyncpa %s21, 0
    loop: start=0, step=1, limit=4
    $region2: #{tpu_custom_call.1} parent=1 // loop_pre_header
      _
    $region3: #{tpu_custom_call.1} parent=1 // loop_header
      %s24 = sphi 0, %s28
      %p25 = scmp.ge.s32.totalorder %s24, 4
      %s34 = sphi 0, %s36
      %s37 = sphi 0, %s34
      %s38 = sphi 0, %s37
      %s54 = sphi 0, %s38
      %s60 = sphi 0, %s62
      %s63 = sphi 0, %s60
      %s64 = sphi 0, %s63
      %s80 = sphi 0, %s64
      %s86 = sphi 0, %s88
      %s89 = sphi 0, %s86
      %s90 = sphi 0, %s89
      %s106 = sphi 0, %s90
      %s112 = sphi 0, %s114
      %s115 = sphi 0, %s112
      %s116 = sphi 0, %s115
      %s132 = sphi 0, %s116
      %s136 = sphi 0, %s136
      %s138 = sphi 0, %s136
      %s139 = sphi 0, %s138
      %s153 = sphi 0, %s139
      %s157 = sphi 0, %s157
      %s159 = sphi 0, %s157
      %s160 = sphi 0, %s159
      %s174 = sphi 0, %s160
      %s180 = sphi 0, %s182
      %s183 = sphi 0, %s180
      %s184 = sphi 0, %s183
      %s200 = sphi 0, %s184
    $region4: #{tpu_custom_call.1} parent=1 // loop_header_branch
      %27 = sbr.rel (%p25) target = $region8
    $region5: #{tpu_custom_call.1} parent=1 // loop_body
      %s29 = ssub.s32 %s24, 1
      %s30 = ssub.s32 %s24, 2
      %s31 = sadd.s32 %s24, 1
      %s32 = ssub.s32 %s24, %s31
      %p33 = scmp.eq.s32.totalorder %s32, 0
      %s35 = sadd.s32 %s34, 1
      %s36 = scalar_select %p33, %s34, %s35
      %p39 = pneg %p33
      %p40 = scmp.eq.s32.totalorder %s24, 1
      %p41 = por %p39, %p40
      %p42 = scmp.ne.s32.totalorder %s34, %s37
      %p43 = scmp.eq.s32.totalorder %s24, 0
      %p44 = por %p42, %p43
      %p45 = scmp.ne.s32.totalorder %s34, %s37
      %p46 = scmp.eq.s32.totalorder %s29, 1
      %p47 = por %p45, %p46
      %p48 = scmp.ne.s32.totalorder %s37, %s38
      %p49 = scmp.eq.s32.totalorder %s29, 0
      %p50 = por %p48, %p49
      %p51 = scmp.ne.s32.totalorder %s37, %s38
      %p52 = scmp.eq.s32.totalorder %s30, 1
      %p53 = por %p51, %p52
      %p55 = scmp.ne.s32.totalorder %s38, %s54
      %p56 = scmp.eq.s32.totalorder %s30, 0
      %p57 = por %p55, %p56
      %s58 = ssub.s32 %s24, %s31
      %p59 = scmp.eq.s32.totalorder %s58, 0
      %s61 = sadd.s32 %s60, 1
      %s62 = scalar_select %p59, %s60, %s61
      %p65 = pneg %p59
      %p66 = scmp.eq.s32.totalorder %s24, 1
      %p67 = por %p65, %p66
      %p68 = scmp.ne.s32.totalorder %s60, %s63
      %p69 = scmp.eq.s32.totalorder %s24, 0
      %p70 = por %p68, %p69
      %p71 = scmp.ne.s32.totalorder %s60, %s63
      %p72 = scmp.eq.s32.totalorder %s29, 1
      %p73 = por %p71, %p72
      %p74 = scmp.ne.s32.totalorder %s63, %s64
      %p75 = scmp.eq.s32.totalorder %s29, 0
      %p76 = por %p74, %p75
      %p77 = scmp.ne.s32.totalorder %s63, %s64
      %p78 = scmp.eq.s32.totalorder %s30, 1
      %p79 = por %p77, %p78
      %p81 = scmp.ne.s32.totalorder %s64, %s80
      %p82 = scmp.eq.s32.totalorder %s30, 0
      %p83 = por %p81, %p82
      %s84 = ssub.s32 %s24, %s31
      %p85 = scmp.eq.s32.totalorder %s84, 0
      %s87 = sadd.s32 %s86, 1
      %s88 = scalar_select %p85, %s86, %s87
      %p91 = pneg %p85
      %p92 = scmp.eq.s32.totalorder %s24, 1
      %p93 = por %p91, %p92
      %p94 = scmp.ne.s32.totalorder %s86, %s89
      %p95 = scmp.eq.s32.totalorder %s24, 0
      %p96 = por %p94, %p95
      %p97 = scmp.ne.s32.totalorder %s86, %s89
      %p98 = scmp.eq.s32.totalorder %s29, 1
      %p99 = por %p97, %p98
      %p100 = scmp.ne.s32.totalorder %s89, %s90
      %p101 = scmp.eq.s32.totalorder %s29, 0
      %p102 = por %p100, %p101
      %p103 = scmp.ne.s32.totalorder %s89, %s90
      %p104 = scmp.eq.s32.totalorder %s30, 1
      %p105 = por %p103, %p104
      %p107 = scmp.ne.s32.totalorder %s90, %s106
      %p108 = scmp.eq.s32.totalorder %s30, 0
      %p109 = por %p107, %p108
      %s110 = ssub.s32 %s24, %s31
      %p111 = scmp.eq.s32.totalorder %s110, 0
      %s113 = sadd.s32 %s112, 1
      %s114 = scalar_select %p111, %s112, %s113
      %p117 = pneg %p111
      %p118 = scmp.eq.s32.totalorder %s24, 1
      %p119 = por %p117, %p118
      %p120 = scmp.ne.s32.totalorder %s112, %s115
      %p121 = scmp.eq.s32.totalorder %s24, 0
      %p122 = por %p120, %p121
      %p123 = scmp.ne.s32.totalorder %s112, %s115
      %p124 = scmp.eq.s32.totalorder %s29, 1
      %p125 = por %p123, %p124
      %p126 = scmp.ne.s32.totalorder %s115, %s116
      %p127 = scmp.eq.s32.totalorder %s29, 0
      %p128 = por %p126, %p127
      %p129 = scmp.ne.s32.totalorder %s115, %s116
      %p130 = scmp.eq.s32.totalorder %s30, 1
      %p131 = por %p129, %p130
      %p133 = scmp.ne.s32.totalorder %s116, %s132
      %p134 = scmp.eq.s32.totalorder %s30, 0
      %p135 = por %p133, %p134
      %s137 = sadd.s32 %s136, 1
      %p140 = scmp.eq.s32.totalorder %s24, 1
      %p141 = scmp.ne.s32.totalorder %s136, %s138
      %p142 = scmp.eq.s32.totalorder %s24, 0
      %p143 = por %p141, %p142
      %p144 = scmp.ne.s32.totalorder %s136, %s138
      %p145 = scmp.eq.s32.totalorder %s29, 1
      %p146 = por %p144, %p145
      %p147 = scmp.ne.s32.totalorder %s138, %s139
      %p148 = scmp.eq.s32.totalorder %s29, 0
      %p149 = por %p147, %p148
      %p150 = scmp.ne.s32.totalorder %s138, %s139
      %p151 = scmp.eq.s32.totalorder %s30, 1
      %p152 = por %p150, %p151
      %p154 = scmp.ne.s32.totalorder %s139, %s153
      %p155 = scmp.eq.s32.totalorder %s30, 0
      %p156 = por %p154, %p155
      %s158 = sadd.s32 %s157, 1
      %p161 = scmp.eq.s32.totalorder %s24, 1
      %p162 = scmp.ne.s32.totalorder %s157, %s159
      %p163 = scmp.eq.s32.totalorder %s24, 0
      %p164 = por %p162, %p163
      %p165 = scmp.ne.s32.totalorder %s157, %s159
      %p166 = scmp.eq.s32.totalorder %s29, 1
      %p167 = por %p165, %p166
      %p168 = scmp.ne.s32.totalorder %s159, %s160
      %p169 = scmp.eq.s32.totalorder %s29, 0
      %p170 = por %p168, %p169
      %p171 = scmp.ne.s32.totalorder %s159, %s160
      %p172 = scmp.eq.s32.totalorder %s30, 1
      %p173 = por %p171, %p172
      %p175 = scmp.ne.s32.totalorder %s160, %s174
      %p176 = scmp.eq.s32.totalorder %s30, 0
      %p177 = por %p175, %p176
      %s178 = ssub.s32 %s24, %s31
      %p179 = scmp.eq.s32.totalorder %s178, 0
      %s181 = sadd.s32 %s180, 1
      %s182 = scalar_select %p179, %s180, %s181
      %p185 = pneg %p179
      %p186 = scmp.eq.s32.totalorder %s24, 1
      %p187 = por %p185, %p186
      %p188 = scmp.ne.s32.totalorder %s180, %s183
      %p189 = scmp.eq.s32.totalorder %s24, 0
      %p190 = por %p188, %p189
      %p191 = scmp.ne.s32.totalorder %s180, %s183
      %p192 = scmp.eq.s32.totalorder %s29, 1
      %p193 = por %p191, %p192
      %p194 = scmp.ne.s32.totalorder %s183, %s184
      %p195 = scmp.eq.s32.totalorder %s29, 0
      %p196 = por %p194, %p195
      %p197 = scmp.ne.s32.totalorder %s183, %s184
      %p198 = scmp.eq.s32.totalorder %s30, 1
      %p199 = por %p197, %p198
      %p201 = scmp.ne.s32.totalorder %s184, %s200
      %p202 = scmp.eq.s32.totalorder %s30, 0
      %p203 = por %p201, %p202
      %p204 = scmp.le.s32.totalorder 1, %s24
      %p205 = scmp.lt.s32.totalorder %s24, 3
      %p206 = pnand %p204, %p205
      %p207 = pneg %p206
      // Predicated region
      $region9: #{tpu_custom_call.1} parent=5 // pred_check
        _
      $region10: #{tpu_custom_call.1} parent=5 // pred_check_branch
        %209 = sbr.rel (%p206) target = $region12
      $region11: #{tpu_custom_call.1} parent=5 // pred_region
        %s210 = ssub.s32 %s24, 1
        // Predicated region
        $region13: #{tpu_custom_call.1} parent=11 // pred_check
          %p211 = pneg %p149
        $region14: #{tpu_custom_call.1} parent=11 // pred_check_branch
          %213 = sbr.rel (%p211) target = $region16
        $region15: #{tpu_custom_call.1} parent=11 // pred_region
          %s215 = ssub.s32 3072, 3072
          %216 = vsyncadd [#allocation10], %s215
          %s217 = sshll.u32 [#allocation11], 4
          %s218 = int_to_ptr.vmem [resolvable:$true] %s217
          %223 = dma.hbm_to_vmem [thread:$0]  %s4, 3072, %s218, [#allocation10], 64, 64, 4
        $region16: #{tpu_custom_call.1} parent=11 // pred_fallthru
          _
        // Predicated region
        $region17: #{tpu_custom_call.1} parent=11 // pred_check
          %p224 = pneg %p170
        $region18: #{tpu_custom_call.1} parent=11 // pred_check_branch
          %226 = sbr.rel (%p224) target = $region20
        $region19: #{tpu_custom_call.1} parent=11 // pred_region
          _
        $region20: #{tpu_custom_call.1} parent=11 // pred_fallthru
          _
      $region12: #{tpu_custom_call.1} parent=5 // pred_fallthru
        _
      %p227 = scmp.lt.s32.totalorder %s24, 2
      // Predicated region
      $region21: #{tpu_custom_call.1} parent=5 // pred_check
        %p228 = pneg %p227
      $region22: #{tpu_custom_call.1} parent=5 // pred_check_branch
        %230 = sbr.rel (%p228) target = $region24
      $region23: #{tpu_custom_call.1} parent=5 // pred_region
        // Predicated region
        $region25: #{tpu_custom_call.1} parent=23 // pred_check
          %p231 = pneg %p44
        $region26: #{tpu_custom_call.1} parent=23 // pred_check_branch
          %233 = sbr.rel (%p231) target = $region28
        $region27: #{tpu_custom_call.1} parent=23 // pred_region
          %s234 = sand.u32 %s34, 1
          %s235 = scalar_lea.sflag [#allocation4], %s234
          %s236 = sand.u32 %s34, 1
          %s237 = smul.addr %s236, 8
          %s238 = scalar_lea.vmem [#allocation3], %s237
          %s240 = ssub.s32 128, 128
          %241 = vsyncadd %s235, %s240
          %s242 = smul.addr %s24, 128
          %s243 = scalar_lea.hbm %s0, %s242
          %s245 = sshll.u32 %s238, 4
          %s246 = int_to_ptr.vmem [resolvable:$true] %s245
          %248 = dma.hbm_to_vmem [thread:$0]  %s243, 128, %s246, %s235
        $region28: #{tpu_custom_call.1} parent=23 // pred_fallthru
          _
        // Predicated region
        $region29: #{tpu_custom_call.1} parent=23 // pred_check
          %p249 = pneg %p70
        $region30: #{tpu_custom_call.1} parent=23 // pred_check_branch
          %251 = sbr.rel (%p249) target = $region32
        $region31: #{tpu_custom_call.1} parent=23 // pred_region
          %s252 = sand.u32 %s24, 1
          %s253 = scalar_lea.sflag [#allocation7], %s252
          %s254 = sand.u32 %s60, 1
          %s255 = smul.addr %s254, 8
          %s256 = scalar_lea.vmem [#allocation6], %s255
          %s258 = ssub.s32 128, 128
          %259 = vsyncadd %s253, %s258
          %s260 = smul.addr %s24, 128
          %s261 = scalar_lea.hbm %s1, %s260
          %s263 = sshll.u32 %s256, 4
          %s264 = int_to_ptr.vmem [resolvable:$true] %s263
          %266 = dma.hbm_to_vmem [thread:$0]  %s261, 128, %s264, %s253
        $region32: #{tpu_custom_call.1} parent=23 // pred_fallthru
          _
        // Predicated region
        $region33: #{tpu_custom_call.1} parent=23 // pred_check
          %p267 = pneg %p96
        $region34: #{tpu_custom_call.1} parent=23 // pred_check_branch
          %269 = sbr.rel (%p267) target = $region36
        $region35: #{tpu_custom_call.1} parent=23 // pred_region
          %s270 = sand.u32 %s24, 1
          %s271 = scalar_lea.sflag [#allocation7], %s270
          %s272 = sand.u32 %s86, 1
          %s273 = smul.addr %s272, 16
          %s274 = scalar_lea.vmem [#allocation8], %s273
          %s276 = ssub.s32 256, 256
          %277 = vsyncadd %s271, %s276
          %s278 = smul.addr %s24, 2
          %s279 = smul.addr %s278, 128
          %s280 = scalar_lea.hbm %s2, %s279
          %s281 = sshll.u32 %s274, 4
          %s282 = int_to_ptr.vmem [resolvable:$true] %s281
          %287 = dma.hbm_to_vmem [thread:$0]  %s280, 256, %s282, %s271, 128, 128, 8
        $region36: #{tpu_custom_call.1} parent=23 // pred_fallthru
          _
        // Predicated region
        $region37: #{tpu_custom_call.1} parent=23 // pred_check
          %p288 = pneg %p122
        $region38: #{tpu_custom_call.1} parent=23 // pred_check_branch
          %290 = sbr.rel (%p288) target = $region40
        $region39: #{tpu_custom_call.1} parent=23 // pred_region
          %s291 = sand.u32 %s24, 1
          %s292 = scalar_lea.sflag [#allocation10], %s291
          %s293 = sand.u32 %s112, 1
          %s294 = smul.addr %s293, 16
          %s295 = scalar_lea.vmem [#allocation9], %s294
          %s297 = ssub.s32 256, 256
          %298 = vsyncadd %s292, %s297
          %s299 = smul.addr %s24, 2
          %s300 = smul.addr %s299, 128
          %s301 = scalar_lea.hbm %s3, %s300
          %s302 = sshll.u32 %s295, 4
          %s303 = int_to_ptr.vmem [resolvable:$true] %s302
          %308 = dma.hbm_to_vmem [thread:$0]  %s301, 256, %s303, %s292, 128, 128, 8
        $region40: #{tpu_custom_call.1} parent=23 // pred_fallthru
          _
      $region24: #{tpu_custom_call.1} parent=5 // pred_fallthru
        _
      %p309 = scmp.le.s32.totalorder 1, %s24
      %p310 = scmp.lt.s32.totalorder %s24, 3
      %p311 = pnand %p309, %p310
      %p312 = pneg %p311
      // Predicated region
      $region41: #{tpu_custom_call.1} parent=5 // pred_check
        _
      $region42: #{tpu_custom_call.1} parent=5 // pred_check_branch
        %314 = sbr.rel (%p311) target = $region44
      $region43: #{tpu_custom_call.1} parent=5 // pred_region
        %s315 = ssub.s32 %s24, 1
        %s316 = sand.u32 %s37, 1
        %s317 = scalar_lea.sflag [#allocation4], %s316
        %s318 = sand.u32 %s37, 1
        %s319 = smul.addr %s318, 8
        %s320 = scalar_lea.vmem [#allocation3], %s319
        // Predicated region
        $region45: #{tpu_custom_call.1} parent=43 // pred_check
          %p321 = pneg %p50
        $region46: #{tpu_custom_call.1} parent=43 // pred_check_branch
          %323 = sbr.rel (%p321) target = $region48
        $region47: #{tpu_custom_call.1} parent=43 // pred_region
          %324 = dma.done %s317, 128
        $region48: #{tpu_custom_call.1} parent=43 // pred_fallthru
          _
        %s325 = sand.u32 %s29, 1
        %s326 = scalar_lea.sflag [#allocation7], %s325
        %s327 = sand.u32 %s63, 1
        %s328 = smul.addr %s327, 8
        %s329 = scalar_lea.vmem [#allocation6], %s328
        // Predicated region
        $region49: #{tpu_custom_call.1} parent=43 // pred_check
          %p330 = pneg %p76
        $region50: #{tpu_custom_call.1} parent=43 // pred_check_branch
          %332 = sbr.rel (%p330) target = $region52
        $region51: #{tpu_custom_call.1} parent=43 // pred_region
          %333 = dma.done %s326, 128
        $region52: #{tpu_custom_call.1} parent=43 // pred_fallthru
          _
        %s334 = sand.u32 %s29, 1
        %s335 = scalar_lea.sflag [#allocation7], %s334
        %s336 = sand.u32 %s89, 1
        %s337 = smul.addr %s336, 16
        %s338 = scalar_lea.vmem [#allocation8], %s337
        // Predicated region
        $region53: #{tpu_custom_call.1} parent=43 // pred_check
          %p339 = pneg %p102
        $region54: #{tpu_custom_call.1} parent=43 // pred_check_branch
          %341 = sbr.rel (%p339) target = $region56
        $region55: #{tpu_custom_call.1} parent=43 // pred_region
          %342 = dma.done %s335, 256
        $region56: #{tpu_custom_call.1} parent=43 // pred_fallthru
          _
        %s343 = sand.u32 %s29, 1
        %s344 = scalar_lea.sflag [#allocation10], %s343
        %s345 = sand.u32 %s115, 1
        %s346 = smul.addr %s345, 16
        %s347 = scalar_lea.vmem [#allocation9], %s346
        // Predicated region
        $region57: #{tpu_custom_call.1} parent=43 // pred_check
          %p348 = pneg %p128
        $region58: #{tpu_custom_call.1} parent=43 // pred_check_branch
          %350 = sbr.rel (%p348) target = $region60
        $region59: #{tpu_custom_call.1} parent=43 // pred_region
          %351 = dma.done %s344, 256
        $region60: #{tpu_custom_call.1} parent=43 // pred_fallthru
          _
        // Predicated region
        $region61: #{tpu_custom_call.1} parent=43 // pred_check
          %p352 = pneg %p149
        $region62: #{tpu_custom_call.1} parent=43 // pred_check_branch
          %354 = sbr.rel (%p352) target = $region64
        $region63: #{tpu_custom_call.1} parent=43 // pred_region
          %355 = dma.done [#allocation10], 3072
        $region64: #{tpu_custom_call.1} parent=43 // pred_fallthru
          _
        %s356 = sand.u32 %s37, 1
        %s357 = scalar_lea.sflag [#allocation4], %s356
        %s358 = sand.u32 %s37, 1
        %s359 = smul.addr %s358, 8
        %s360 = scalar_lea.vmem [#allocation3], %s359
        %p361 = pneg %p50
        %p362 = pneg %p47
        %s363 = sand.u32 %s29, 1
        %s364 = scalar_lea.sflag [#allocation7], %s363
        %s365 = sand.u32 %s63, 1
        %s366 = smul.addr %s365, 8
        %s367 = scalar_lea.vmem [#allocation6], %s366
        %p368 = pneg %p76
        %p369 = pneg %p73
        %s370 = sand.u32 %s29, 1
        %s371 = scalar_lea.sflag [#allocation7], %s370
        %s372 = sand.u32 %s89, 1
        %s373 = smul.addr %s372, 16
        %s374 = scalar_lea.vmem [#allocation8], %s373
        %p375 = pneg %p102
        %p376 = pneg %p99
        %s377 = sand.u32 %s29, 1
        %s378 = scalar_lea.sflag [#allocation10], %s377
        %s379 = sand.u32 %s115, 1
        %s380 = smul.addr %s379, 16
        %s381 = scalar_lea.vmem [#allocation9], %s380
        %p382 = pneg %p128
        %p383 = pneg %p125
        %p384 = pneg %p149
        %p385 = pneg %p146
        %p386 = pneg %p170
        %p387 = pneg %p167
        %p388 = pneg %p196
        %p389 = pneg %p193
        %s390 = sand.u32 %s183, 1
        %s391 = scalar_lea.sflag [#allocation5], %s390
        %s392 = sand.u32 %s183, 1
        %s393 = smul.addr %s392, 8
        %s394 = scalar_lea.vmem [#allocation12], %s393
        %v396 = vld [vmem:[%s320] sm:$0xff]
        %v397 = vld [vmem:[%s329] sm:$0xff]
        %v398 = vld [vmem:[%s338] sm:$0xff]
        %v399 = vld [vmem:[%s338 + $0x8] sm:$0xff]
        %v400 = vpack.c.bf16 %v399, %v398
        %v401 = vld [vmem:[%s347] sm:$0xff]
        %v402 = vld [vmem:[%s347 + $0x8] sm:$0xff]
        %v403 = vpack.c.bf16 %v402, %v401
        %v404 = vld [vmem:[%s5] sm:$0xff]
        %v405 = vadd.f32 %v396, %v397
        %v406 = vpack.c.bf16 %v405, %v405
        %v407 = vld [vmem:[#allocation11] sm:$0xf]
        %v408 = vld [vmem:[#allocation11 + $0x4] sm:$0xf]
        %v409 = vld [vmem:[#allocation11 + $0x8] sm:$0xf]
        %v410 = vld [vmem:[#allocation11 + $0xc] sm:$0xf]
        %v411 = vlaneseq
        %v412 = vshrl.u32 %v411, 7
        %v413 = vsub.s32 0, %v412
        %v414 = vrot.slane %v404, %v413
        %v419 = vunpack.c.l.b16 %v407
        %v420 = vunpack.c.l.b16 %v408
        %v421 = vunpack.c.l.b16 %v409
        %v422 = vunpack.c.l.b16 %v410
        %v423 = vpack.c.b16 %v420, %v419
        %v424 = vpack.c.b16 %v422, %v421
        %vm427 = vcmask 261120
        %v429 = vsel %vm427, %v406, 0
        %431 = vmatprep.subr.bf16.mxu0 0
        %432 = vmatpush1.bf16.msra.mxu0 %v423
        %433 = vmatprep.subr.bf16.mxu0 0
        %434 = vmatpush1.bf16.msra.mxu0 %v424
        %435 = vmatprep.subr.bf16.mxu0 0
        %436 = vmatpush1.bf16.msra.mxu0 0
        %437 = vmatprep.subr.bf16.mxu0 0
        %438 = vmatpush1.bf16.msra.mxu0 0
        %439 = vmatprep.subr.bf16.mxu0 0
        %440 = vmatpush1.bf16.msra.mxu0 0
        %441 = vmatprep.subr.bf16.mxu0 0
        %442 = vmatpush1.bf16.msra.mxu0 0
        %443 = vmatprep.subr.bf16.mxu0 0
        %444 = vmatpush1.bf16.msra.mxu0 0
        %445 = vmatprep.subr.bf16.mxu0 0
        %446 = vmatpush1.bf16.msra.mxu0 0
        %447 = vmatprep.subr.bf16.mxu0 0
        %448 = vmatpush1.bf16.msra.mxu0 0
        %449 = vmatprep.subr.bf16.mxu0 0
        %450 = vmatpush1.bf16.msra.mxu0 0
        %451 = vmatprep.subr.bf16.mxu0 0
        %452 = vmatpush1.bf16.msra.mxu0 0
        %453 = vmatprep.subr.bf16.mxu0 0
        %454 = vmatpush1.bf16.msra.mxu0 0
        %455 = vmatprep.subr.bf16.mxu0 0
        %456 = vmatpush1.bf16.msra.mxu0 0
        %457 = vmatprep.subr.bf16.mxu0 0
        %458 = vmatpush1.bf16.msra.mxu0 0
        %459 = vmatprep.subr.bf16.mxu0 0
        %460 = vmatpush1.bf16.msra.mxu0 0
        %461 = vmatprep.subr.bf16.mxu0 0
        %462 = vmatpush1.bf16.msra.mxu0 0
        %463 = vmatprep.mubr.bf16.mxu0 0
        %464 = vmatmul.mubr.bf16.gmra.mrb[0].mxu0 %v429
        %v465 = vpop.f32.mrb[0].mxu0
        %v466 = vadd.f32 %v414, %v465
        %v467 = vpop.f32.mrb[0].mxu0
        %v468 = vpop.f32.mrb[0].mxu0
        %v469 = vpop.f32.mrb[0].mxu0
        %470 = vdwg.mxu0
        %s471 = scalar_lea.vmem [#allocation11], 16
        %v472 = vld [vmem:[%s471] sm:$0xf]
        %v473 = vld [vmem:[%s471 + $0x4] sm:$0xf]
        %v474 = vld [vmem:[%s471 + $0x8] sm:$0xf]
        %v475 = vld [vmem:[%s471 + $0xc] sm:$0xf]
        %v476 = vlaneseq
        %v477 = vshrl.u32 %v476, 7
        %v478 = vsub.s32 1, %v477
        %v479 = vrot.slane %v404, %v478
        %v484 = vunpack.c.l.b16 %v472
        %v485 = vunpack.c.l.b16 %v473
        %v486 = vunpack.c.l.b16 %v474
        %v487 = vunpack.c.l.b16 %v475
        %v488 = vpack.c.b16 %v485, %v484
        %v489 = vpack.c.b16 %v487, %v486
        %v493 = vsel %vm427, %v400, 0
        %495 = vmatprep.subr.bf16.mxu0 0
        %496 = vmatpush1.bf16.msra.mxu0 %v488
        %497 = vmatprep.subr.bf16.mxu0 0
        %498 = vmatpush1.bf16.msra.mxu0 %v489
        %499 = vmatprep.subr.bf16.mxu0 0
        %500 = vmatpush1.bf16.msra.mxu0 0
        %501 = vmatprep.subr.bf16.mxu0 0
        %502 = vmatpush1.bf16.msra.mxu0 0
        %503 = vmatprep.subr.bf16.mxu0 0
        %504 = vmatpush1.bf16.msra.mxu0 0
        %505 = vmatprep.subr.bf16.mxu0 0
        %506 = vmatpush1.bf16.msra.mxu0 0
        %507 = vmatprep.subr.bf16.mxu0 0
        %508 = vmatpush1.bf16.msra.mxu0 0
        %509 = vmatprep.subr.bf16.mxu0 0
        %510 = vmatpush1.bf16.msra.mxu0 0
        %511 = vmatprep.subr.bf16.mxu0 0
        %512 = vmatpush1.bf16.msra.mxu0 0
        %513 = vmatprep.subr.bf16.mxu0 0
        %514 = vmatpush1.bf16.msra.mxu0 0
        %515 = vmatprep.subr.bf16.mxu0 0
        %516 = vmatpush1.bf16.msra.mxu0 0
        %517 = vmatprep.subr.bf16.mxu0 0
        %518 = vmatpush1.bf16.msra.mxu0 0
        %519 = vmatprep.subr.bf16.mxu0 0
        %520 = vmatpush1.bf16.msra.mxu0 0
        %521 = vmatprep.subr.bf16.mxu0 0
        %522 = vmatpush1.bf16.msra.mxu0 0
        %523 = vmatprep.subr.bf16.mxu0 0
        %524 = vmatpush1.bf16.msra.mxu0 0
        %525 = vmatprep.subr.bf16.mxu0 0
        %526 = vmatpush1.bf16.msra.mxu0 0
        %527 = vmatprep.mubr.bf16.mxu0 0
        %528 = vmatmul.mubr.bf16.gmra.mrb[0].mxu0 %v493
        %v529 = vpop.f32.mrb[0].mxu0
        %v530 = vadd.f32 %v479, %v529
        %v531 = vpop.f32.mrb[0].mxu0
        %v532 = vpop.f32.mrb[0].mxu0
        %v533 = vadd.f32 %v479, %v532
        %v534 = vpop.f32.mrb[0].mxu0
        %535 = vdwg.mxu0
        %s536 = scalar_lea.vmem [#allocation11], 32
        %v537 = vld [vmem:[%s536] sm:$0xf]
        %v538 = vld [vmem:[%s536 + $0x4] sm:$0xf]
        %v539 = vld [vmem:[%s536 + $0x8] sm:$0xf]
        %v540 = vld [vmem:[%s536 + $0xc] sm:$0xf]
        %v541 = vlaneseq
        %v542 = vshrl.u32 %v541, 7
        %v543 = vsub.s32 2, %v542
        %v544 = vrot.slane %v404, %v543
        %v549 = vunpack.c.l.b16 %v537
        %v550 = vunpack.c.l.b16 %v538
        %v551 = vunpack.c.l.b16 %v539
        %v552 = vunpack.c.l.b16 %v540
        %v553 = vpack.c.b16 %v550, %v549
        %v554 = vpack.c.b16 %v552, %v551
        %v558 = vsel %vm427, %v403, 0
        %560 = vmatprep.subr.bf16.mxu0 0
        %561 = vmatpush1.bf16.msra.mxu0 %v553
        %562 = vmatprep.subr.bf16.mxu0 0
        %563 = vmatpush1.bf16.msra.mxu0 %v554
        %564 = vmatprep.subr.bf16.mxu0 0
        %565 = vmatpush1.bf16.msra.mxu0 0
        %566 = vmatprep.subr.bf16.mxu0 0
        %567 = vmatpush1.bf16.msra.mxu0 0
        %568 = vmatprep.subr.bf16.mxu0 0
        %569 = vmatpush1.bf16.msra.mxu0 0
        %570 = vmatprep.subr.bf16.mxu0 0
        %571 = vmatpush1.bf16.msra.mxu0 0
        %572 = vmatprep.subr.bf16.mxu0 0
        %573 = vmatpush1.bf16.msra.mxu0 0
        %574 = vmatprep.subr.bf16.mxu0 0
        %575 = vmatpush1.bf16.msra.mxu0 0
        %576 = vmatprep.subr.bf16.mxu0 0
        %577 = vmatpush1.bf16.msra.mxu0 0
        %578 = vmatprep.subr.bf16.mxu0 0
        %579 = vmatpush1.bf16.msra.mxu0 0
        %580 = vmatprep.subr.bf16.mxu0 0
        %581 = vmatpush1.bf16.msra.mxu0 0
        %582 = vmatprep.subr.bf16.mxu0 0
        %583 = vmatpush1.bf16.msra.mxu0 0
        %584 = vmatprep.subr.bf16.mxu0 0
        %585 = vmatpush1.bf16.msra.mxu0 0
        %586 = vmatprep.subr.bf16.mxu0 0
        %587 = vmatpush1.bf16.msra.mxu0 0
        %588 = vmatprep.subr.bf16.mxu0 0
        %589 = vmatpush1.bf16.msra.mxu0 0
        %590 = vmatprep.subr.bf16.mxu0 0
        %591 = vmatpush1.bf16.msra.mxu0 0
        %592 = vmatprep.mubr.bf16.mxu0 0
        %593 = vmatmul.mubr.bf16.gmra.mrb[0].mxu0 %v558
        %v594 = vpop.f32.mrb[0].mxu0
        %v595 = vadd.f32 %v544, %v594
        %v596 = vpop.f32.mrb[0].mxu0
        %v597 = vpop.f32.mrb[0].mxu0
        %v598 = vadd.f32 %v544, %v597
        %v599 = vpop.f32.mrb[0].mxu0
        %600 = vdwg.mxu0
        %v601 = vpack.c.bf16 %v466, %v466
        %v602 = vpack.c.bf16 %v533, %v530
        %v603 = vpack.c.bf16 %v598, %v595
        %vm604 = vcmask 64512
        %v606 = vsel %vm604, %v601, 0
        %v609 = vsel %vm604, %v602, 0
        %611 = vmatprep.subr.bf16.mxu0 0
        %612 = vmatpush1.bf16.xpose.msra.mxu0 %v609
        %613 = vmatprep.subr.bf16.mxu0 0
        %614 = vmatpush1.bf16.xpose.msra.mxu0 0
        %615 = vmatprep.subr.bf16.mxu0 0
        %616 = vmatpush1.bf16.xpose.msra.mxu0 0
        %617 = vmatprep.subr.bf16.mxu0 0
        %618 = vmatpush1.bf16.xpose.msra.mxu0 0
        %619 = vmatprep.subr.bf16.mxu0 0
        %620 = vmatpush1.bf16.xpose.msra.mxu0 0
        %621 = vmatprep.subr.bf16.mxu0 0
        %622 = vmatpush1.bf16.xpose.msra.mxu0 0
        %623 = vmatprep.subr.bf16.mxu0 0
        %624 = vmatpush1.bf16.xpose.msra.mxu0 0
        %625 = vmatprep.subr.bf16.mxu0 0
        %626 = vmatpush1.bf16.xpose.msra.mxu0 0
        %627 = vmatprep.subr.bf16.mxu0 0
        %628 = vmatpush1.bf16.xpose.msra.mxu0 0
        %629 = vmatprep.subr.bf16.mxu0 0
        %630 = vmatpush1.bf16.xpose.msra.mxu0 0
        %631 = vmatprep.subr.bf16.mxu0 0
        %632 = vmatpush1.bf16.xpose.msra.mxu0 0
        %633 = vmatprep.subr.bf16.mxu0 0
        %634 = vmatpush1.bf16.xpose.msra.mxu0 0
        %635 = vmatprep.subr.bf16.mxu0 0
        %636 = vmatpush1.bf16.xpose.msra.mxu0 0
        %637 = vmatprep.subr.bf16.mxu0 0
        %638 = vmatpush1.bf16.xpose.msra.mxu0 0
        %639 = vmatprep.subr.bf16.mxu0 0
        %640 = vmatpush1.bf16.xpose.msra.mxu0 0
        %641 = vmatprep.subr.bf16.mxu0 0
        %642 = vmatpush1.bf16.xpose.msra.mxu0 0
        %643 = vmatprep.mubr.bf16.mxu0 0
        %644 = vmatmul.mubr.bf16.gmra.mrb[0].mxu0 %v606
        %v645 = vpop.f32.mrb[0].mxu0
        %v646 = vadd.f32 0.0, %v645
        %v647 = vpop.f32.mrb[0].mxu0
        %v648 = vpop.f32.mrb[0].mxu0
        %v649 = vpop.f32.mrb[0].mxu0
        %650 = vdwg.mxu0
        %vm651 = vcmask 130048
        %v652 = vsel %vm651, %v646, -inf
        %653 = vmax.xlane.f32.xlu0 %v652
        %v654 = vpop.xlane.xlu0 %653
        %v655 = vsub.f32 %v646, %v654
        %v656 = vmul.f32 %v655, 1.442695
        %v657 = vpow.pop %v656
        %v658 = vsel %vm651, %v657, 0.0
        %659 = vadd.xlane.f32.xlu0 %v658
        %v660 = vpop.xlane.xlu0 %659
        %v661 = vrcp.pop %v660
        %v662 = vmul.f32 %v657, %v661
        %v663 = vpack.c.bf16 %v662, %v662
        %v665 = vsel %vm651, %v663, 0
        %667 = vmatprep.subr.bf16.mxu0 0
        %668 = vmatpush1.bf16.msra.mxu0 %v603
        %669 = vmatprep.subr.bf16.mxu0 0
        %670 = vmatpush1.bf16.msra.mxu0 0
        %671 = vmatprep.subr.bf16.mxu0 0
        %672 = vmatpush1.bf16.msra.mxu0 0
        %673 = vmatprep.subr.bf16.mxu0 0
        %674 = vmatpush1.bf16.msra.mxu0 0
        %675 = vmatprep.subr.bf16.mxu0 0
        %676 = vmatpush1.bf16.msra.mxu0 0
        %677 = vmatprep.subr.bf16.mxu0 0
        %678 = vmatpush1.bf16.msra.mxu0 0
        %679 = vmatprep.subr.bf16.mxu0 0
        %680 = vmatpush1.bf16.msra.mxu0 0
        %681 = vmatprep.subr.bf16.mxu0 0
        %682 = vmatpush1.bf16.msra.mxu0 0
        %683 = vmatprep.subr.bf16.mxu0 0
        %684 = vmatpush1.bf16.msra.mxu0 0
        %685 = vmatprep.subr.bf16.mxu0 0
        %686 = vmatpush1.bf16.msra.mxu0 0
        %687 = vmatprep.subr.bf16.mxu0 0
        %688 = vmatpush1.bf16.msra.mxu0 0
        %689 = vmatprep.subr.bf16.mxu0 0
        %690 = vmatpush1.bf16.msra.mxu0 0
        %691 = vmatprep.subr.bf16.mxu0 0
        %692 = vmatpush1.bf16.msra.mxu0 0
        %693 = vmatprep.subr.bf16.mxu0 0
        %694 = vmatpush1.bf16.msra.mxu0 0
        %695 = vmatprep.subr.bf16.mxu0 0
        %696 = vmatpush1.bf16.msra.mxu0 0
        %697 = vmatprep.subr.bf16.mxu0 0
        %698 = vmatpush1.bf16.msra.mxu0 0
        %699 = vmatprep.mubr.bf16.mxu0 0
        %700 = vmatmul.mubr.bf16.gmra.mrb[0].mxu0 %v665
        %v701 = vpop.f32.mrb[0].mxu0
        %v702 = vadd.f32 0.0, %v701
        %v703 = vpop.f32.mrb[0].mxu0
        %v704 = vpop.f32.mrb[0].mxu0
        %v705 = vpop.f32.mrb[0].mxu0
        %706 = vdwg.mxu0
        %707 = vst.msk [vmem:[#allocation2] sm:$0xff] %vm604, %v702
        %709 = vrot.lane.b32.xlu0 %v601, 120
        %v710 = vpop.permute.xlu0 %709
        %712 = vrot.lane.b32.xlu0 %v602, 120
        %v713 = vpop.permute.xlu0 %712
        %v715 = vsel %vm604, %v710, 0
        %v718 = vsel %vm604, %v713, 0
        %720 = vmatprep.subr.bf16.mxu0 0
        %721 = vmatpush1.bf16.xpose.msra.mxu0 %v718
        %722 = vmatprep.subr.bf16.mxu0 0
        %723 = vmatpush1.bf16.xpose.msra.mxu0 0
        %724 = vmatprep.subr.bf16.mxu0 0
        %725 = vmatpush1.bf16.xpose.msra.mxu0 0
        %726 = vmatprep.subr.bf16.mxu0 0
        %727 = vmatpush1.bf16.xpose.msra.mxu0 0
        %728 = vmatprep.subr.bf16.mxu0 0
        %729 = vmatpush1.bf16.xpose.msra.mxu0 0
        %730 = vmatprep.subr.bf16.mxu0 0
        %731 = vmatpush1.bf16.xpose.msra.mxu0 0
        %732 = vmatprep.subr.bf16.mxu0 0
        %733 = vmatpush1.bf16.xpose.msra.mxu0 0
        %734 = vmatprep.subr.bf16.mxu0 0
        %735 = vmatpush1.bf16.xpose.msra.mxu0 0
        %736 = vmatprep.subr.bf16.mxu0 0
        %737 = vmatpush1.bf16.xpose.msra.mxu0 0
        %738 = vmatprep.subr.bf16.mxu0 0
        %739 = vmatpush1.bf16.xpose.msra.mxu0 0
        %740 = vmatprep.subr.bf16.mxu0 0
        %741 = vmatpush1.bf16.xpose.msra.mxu0 0
        %742 = vmatprep.subr.bf16.mxu0 0
        %743 = vmatpush1.bf16.xpose.msra.mxu0 0
        %744 = vmatprep.subr.bf16.mxu0 0
        %745 = vmatpush1.bf16.xpose.msra.mxu0 0
        %746 = vmatprep.subr.bf16.mxu0 0
        %747 = vmatpush1.bf16.xpose.msra.mxu0 0
        %748 = vmatprep.subr.bf16.mxu0 0
        %749 = vmatpush1.bf16.xpose.msra.mxu0 0
        %750 = vmatprep.subr.bf16.mxu0 0
        %751 = vmatpush1.bf16.xpose.msra.mxu0 0
        %752 = vmatprep.mubr.bf16.mxu0 0
        %753 = vmatmul.mubr.bf16.gmra.mrb[0].mxu0 %v715
        %v754 = vpop.f32.mrb[0].mxu0
        %v755 = vadd.f32 0.0, %v754
        %v756 = vpop.f32.mrb[0].mxu0
        %v757 = vpop.f32.mrb[0].mxu0
        %v758 = vpop.f32.mrb[0].mxu0
        %759 = vdwg.mxu0
        %v760 = vsel %vm651, %v755, -inf
        %761 = vmax.xlane.f32.xlu0 %v760
        %v762 = vpop.xlane.xlu0 %761
        %v763 = vsub.f32 %v755, %v762
        %v764 = vmul.f32 %v763, 1.442695
        %v765 = vpow.pop %v764
        %v766 = vsel %vm651, %v765, 0.0
        %767 = vadd.xlane.f32.xlu0 %v766
        %v768 = vpop.xlane.xlu0 %767
        %v769 = vrcp.pop %v768
        %v770 = vmul.f32 %v765, %v769
        %v771 = vpack.c.bf16 %v770, %v770
        %773 = vrot.lane.b32.xlu0 %v603, 120
        %v774 = vpop.permute.xlu0 %773
        %v777 = vsel %vm651, %v771, 0
        %779 = vmatprep.subr.bf16.mxu0 0
        %780 = vmatpush1.bf16.msra.mxu0 %v774
        %781 = vmatprep.subr.bf16.mxu0 0
        %782 = vmatpush1.bf16.msra.mxu0 0
        %783 = vmatprep.subr.bf16.mxu0 0
        %784 = vmatpush1.bf16.msra.mxu0 0
        %785 = vmatprep.subr.bf16.mxu0 0
        %786 = vmatpush1.bf16.msra.mxu0 0
        %787 = vmatprep.subr.bf16.mxu0 0
        %788 = vmatpush1.bf16.msra.mxu0 0
        %789 = vmatprep.subr.bf16.mxu0 0
        %790 = vmatpush1.bf16.msra.mxu0 0
        %791 = vmatprep.subr.bf16.mxu0 0
        %792 = vmatpush1.bf16.msra.mxu0 0
        %793 = vmatprep.subr.bf16.mxu0 0
        %794 = vmatpush1.bf16.msra.mxu0 0
        %795 = vmatprep.subr.bf16.mxu0 0
        %796 = vmatpush1.bf16.msra.mxu0 0
        %797 = vmatprep.subr.bf16.mxu0 0
        %798 = vmatpush1.bf16.msra.mxu0 0
        %799 = vmatprep.subr.bf16.mxu0 0
        %800 = vmatpush1.bf16.msra.mxu0 0
        %801 = vmatprep.subr.bf16.mxu0 0
        %802 = vmatpush1.bf16.msra.mxu0 0
        %803 = vmatprep.subr.bf16.mxu0 0
        %804 = vmatpush1.bf16.msra.mxu0 0
        %805 = vmatprep.subr.bf16.mxu0 0
        %806 = vmatpush1.bf16.msra.mxu0 0
        %807 = vmatprep.subr.bf16.mxu0 0
        %808 = vmatpush1.bf16.msra.mxu0 0
        %809 = vmatprep.subr.bf16.mxu0 0
        %810 = vmatpush1.bf16.msra.mxu0 0
        %811 = vmatprep.mubr.bf16.mxu0 0
        %812 = vmatmul.mubr.bf16.gmra.mrb[0].mxu0 %v777
        %v813 = vpop.f32.mrb[0].mxu0
        %v814 = vadd.f32 0.0, %v813
        %v815 = vpop.f32.mrb[0].mxu0
        %v816 = vpop.f32.mrb[0].mxu0
        %v817 = vpop.f32.mrb[0].mxu0
        %818 = vdwg.mxu0
        %820 = vrot.lane.b32.xlu0 %v814, 8
        %v821 = vpop.permute.xlu0 %820
        %vm823 = vcmask 130112
        %824 = vst.msk [vmem:[#allocation2] sm:$0xff] %vm823, %v821
        %825 = vrot.lane.b32.xlu0 %v601, 112
        %v826 = vpop.permute.xlu0 %825
        %827 = vrot.lane.b32.xlu0 %v602, 112
        %v828 = vpop.permute.xlu0 %827
        %v830 = vsel %vm604, %v826, 0
        %v833 = vsel %vm604, %v828, 0
        %835 = vmatprep.subr.bf16.mxu0 0
        %836 = vmatpush1.bf16.xpose.msra.mxu0 %v833
        %837 = vmatprep.subr.bf16.mxu0 0
        %838 = vmatpush1.bf16.xpose.msra.mxu0 0
        %839 = vmatprep.subr.bf16.mxu0 0
        %840 = vmatpush1.bf16.xpose.msra.mxu0 0
        %841 = vmatprep.subr.bf16.mxu0 0
        %842 = vmatpush1.bf16.xpose.msra.mxu0 0
        %843 = vmatprep.subr.bf16.mxu0 0
        %844 = vmatpush1.bf16.xpose.msra.mxu0 0
        %845 = vmatprep.subr.bf16.mxu0 0
        %846 = vmatpush1.bf16.xpose.msra.mxu0 0
        %847 = vmatprep.subr.bf16.mxu0 0
        %848 = vmatpush1.bf16.xpose.msra.mxu0 0
        %849 = vmatprep.subr.bf16.mxu0 0
        %850 = vmatpush1.bf16.xpose.msra.mxu0 0
        %851 = vmatprep.subr.bf16.mxu0 0
        %852 = vmatpush1.bf16.xpose.msra.mxu0 0
        %853 = vmatprep.subr.bf16.mxu0 0
        %854 = vmatpush1.bf16.xpose.msra.mxu0 0
        %855 = vmatprep.subr.bf16.mxu0 0
        %856 = vmatpush1.bf16.xpose.msra.mxu0 0
        %857 = vmatprep.subr.bf16.mxu0 0
        %858 = vmatpush1.bf16.xpose.msra.mxu0 0
        %859 = vmatprep.subr.bf16.mxu0 0
        %860 = vmatpush1.bf16.xpose.msra.mxu0 0
        %861 = vmatprep.subr.bf16.mxu0 0
        %862 = vmatpush1.bf16.xpose.msra.mxu0 0
        %863 = vmatprep.subr.bf16.mxu0 0
        %864 = vmatpush1.bf16.xpose.msra.mxu0 0
        %865 = vmatprep.subr.bf16.mxu0 0
        %866 = vmatpush1.bf16.xpose.msra.mxu0 0
        %867 = vmatprep.mubr.bf16.mxu0 0
        %868 = vmatmul.mubr.bf16.gmra.mrb[0].mxu0 %v830
        %v869 = vpop.f32.mrb[0].mxu0
        %v870 = vadd.f32 0.0, %v869
        %v871 = vpop.f32.mrb[0].mxu0
        %v872 = vpop.f32.mrb[0].mxu0
        %v873 = vpop.f32.mrb[0].mxu0
        %874 = vdwg.mxu0
        %v875 = vsel %vm651, %v870, -inf
        %876 = vmax.xlane.f32.xlu0 %v875
        %v877 = vpop.xlane.xlu0 %876
        %v878 = vsub.f32 %v870, %v877
        %v879 = vmul.f32 %v878, 1.442695
        %v880 = vpow.pop %v879
        %v881 = vsel %vm651, %v880, 0.0
        %882 = vadd.xlane.f32.xlu0 %v881
        %v883 = vpop.xlane.xlu0 %882
        %v884 = vrcp.pop %v883
        %v885 = vmul.f32 %v880, %v884
        %v886 = vpack.c.bf16 %v885, %v885
        %887 = vrot.lane.b32.xlu0 %v603, 112
        %v888 = vpop.permute.xlu0 %887
        %v891 = vsel %vm651, %v886, 0
        %893 = vmatprep.subr.bf16.mxu0 0
        %894 = vmatpush1.bf16.msra.mxu0 %v888
        %895 = vmatprep.subr.bf16.mxu0 0
        %896 = vmatpush1.bf16.msra.mxu0 0
        %897 = vmatprep.subr.bf16.mxu0 0
        %898 = vmatpush1.bf16.msra.mxu0 0
        %899 = vmatprep.subr.bf16.mxu0 0
        %900 = vmatpush1.bf16.msra.mxu0 0
        %901 = vmatprep.subr.bf16.mxu0 0
        %902 = vmatpush1.bf16.msra.mxu0 0
        %903 = vmatprep.subr.bf16.mxu0 0
        %904 = vmatpush1.bf16.msra.mxu0 0
        %905 = vmatprep.subr.bf16.mxu0 0
        %906 = vmatpush1.bf16.msra.mxu0 0
        %907 = vmatprep.subr.bf16.mxu0 0
        %908 = vmatpush1.bf16.msra.mxu0 0
        %909 = vmatprep.subr.bf16.mxu0 0
        %910 = vmatpush1.bf16.msra.mxu0 0
        %911 = vmatprep.subr.bf16.mxu0 0
        %912 = vmatpush1.bf16.msra.mxu0 0
        %913 = vmatprep.subr.bf16.mxu0 0
        %914 = vmatpush1.bf16.msra.mxu0 0
        %915 = vmatprep.subr.bf16.mxu0 0
        %916 = vmatpush1.bf16.msra.mxu0 0
        %917 = vmatprep.subr.bf16.mxu0 0
        %918 = vmatpush1.bf16.msra.mxu0 0
        %919 = vmatprep.subr.bf16.mxu0 0
        %920 = vmatpush1.bf16.msra.mxu0 0
        %921 = vmatprep.subr.bf16.mxu0 0
        %922 = vmatpush1.bf16.msra.mxu0 0
        %923 = vmatprep.subr.bf16.mxu0 0
        %924 = vmatpush1.bf16.msra.mxu0 0
        %925 = vmatprep.mubr.bf16.mxu0 0
        %926 = vmatmul.mubr.bf16.gmra.mrb[0].mxu0 %v891
        %v927 = vpop.f32.mrb[0].mxu0
        %v928 = vadd.f32 0.0, %v927
        %v929 = vpop.f32.mrb[0].mxu0
        %v930 = vpop.f32.mrb[0].mxu0
        %v931 = vpop.f32.mrb[0].mxu0
        %932 = vdwg.mxu0
        %934 = vrot.lane.b32.xlu0 %v928, 16
        %v935 = vpop.permute.xlu0 %934
        %vm937 = vcmask 195712
        %938 = vst.msk [vmem:[#allocation2] sm:$0xff] %vm937, %v935
        %939 = vrot.lane.b32.xlu0 %v601, 104
        %v940 = vpop.permute.xlu0 %939
        %941 = vrot.lane.b32.xlu0 %v602, 104
        %v942 = vpop.permute.xlu0 %941
        %v944 = vsel %vm604, %v940, 0
        %v947 = vsel %vm604, %v942, 0
        %949 = vmatprep.subr.bf16.mxu0 0
        %950 = vmatpush1.bf16.xpose.msra.mxu0 %v947
        %951 = vmatprep.subr.bf16.mxu0 0
        %952 = vmatpush1.bf16.xpose.msra.mxu0 0
        %953 = vmatprep.subr.bf16.mxu0 0
        %954 = vmatpush1.bf16.xpose.msra.mxu0 0
        %955 = vmatprep.subr.bf16.mxu0 0
        %956 = vmatpush1.bf16.xpose.msra.mxu0 0
        %957 = vmatprep.subr.bf16.mxu0 0
        %958 = vmatpush1.bf16.xpose.msra.mxu0 0
        %959 = vmatprep.subr.bf16.mxu0 0
        %960 = vmatpush1.bf16.xpose.msra.mxu0 0
        %961 = vmatprep.subr.bf16.mxu0 0
        %962 = vmatpush1.bf16.xpose.msra.mxu0 0
        %963 = vmatprep.subr.bf16.mxu0 0
        %964 = vmatpush1.bf16.xpose.msra.mxu0 0
        %965 = vmatprep.subr.bf16.mxu0 0
        %966 = vmatpush1.bf16.xpose.msra.mxu0 0
        %967 = vmatprep.subr.bf16.mxu0 0
        %968 = vmatpush1.bf16.xpose.msra.mxu0 0
        %969 = vmatprep.subr.bf16.mxu0 0
        %970 = vmatpush1.bf16.xpose.msra.mxu0 0
        %971 = vmatprep.subr.bf16.mxu0 0
        %972 = vmatpush1.bf16.xpose.msra.mxu0 0
        %973 = vmatprep.subr.bf16.mxu0 0
        %974 = vmatpush1.bf16.xpose.msra.mxu0 0
        %975 = vmatprep.subr.bf16.mxu0 0
        %976 = vmatpush1.bf16.xpose.msra.mxu0 0
        %977 = vmatprep.subr.bf16.mxu0 0
        %978 = vmatpush1.bf16.xpose.msra.mxu0 0
        %979 = vmatprep.subr.bf16.mxu0 0
        %980 = vmatpush1.bf16.xpose.msra.mxu0 0
        %981 = vmatprep.mubr.bf16.mxu0 0
        %982 = vmatmul.mubr.bf16.gmra.mrb[0].mxu0 %v944
        %v983 = vpop.f32.mrb[0].mxu0
        %v984 = vadd.f32 0.0, %v983
        %v985 = vpop.f32.mrb[0].mxu0
        %v986 = vpop.f32.mrb[0].mxu0
        %v987 = vpop.f32.mrb[0].mxu0
        %988 = vdwg.mxu0
        %v989 = vsel %vm651, %v984, -inf
        %990 = vmax.xlane.f32.xlu0 %v989
        %v991 = vpop.xlane.xlu0 %990
        %v992 = vsub.f32 %v984, %v991
        %v993 = vmul.f32 %v992, 1.442695
        %v994 = vpow.pop %v993
        %v995 = vsel %vm651, %v994, 0.0
        %996 = vadd.xlane.f32.xlu0 %v995
        %v997 = vpop.xlane.xlu0 %996
        %v998 = vrcp.pop %v997
        %v999 = vmul.f32 %v994, %v998
        %v1000 = vpack.c.bf16 %v999, %v999
        %1001 = vrot.lane.b32.xlu0 %v603, 104
        %v1002 = vpop.permute.xlu0 %1001
        %v1005 = vsel %vm651, %v1000, 0
        %1007 = vmatprep.subr.bf16.mxu0 0
        %1008 = vmatpush1.bf16.msra.mxu0 %v1002
        %1009 = vmatprep.subr.bf16.mxu0 0
        %1010 = vmatpush1.bf16.msra.mxu0 0
        %1011 = vmatprep.subr.bf16.mxu0 0
        %1012 = vmatpush1.bf16.msra.mxu0 0
        %1013 = vmatprep.subr.bf16.mxu0 0
        %1014 = vmatpush1.bf16.msra.mxu0 0
        %1015 = vmatprep.subr.bf16.mxu0 0
        %1016 = vmatpush1.bf16.msra.mxu0 0
        %1017 = vmatprep.subr.bf16.mxu0 0
        %1018 = vmatpush1.bf16.msra.mxu0 0
        %1019 = vmatprep.subr.bf16.mxu0 0
        %1020 = vmatpush1.bf16.msra.mxu0 0
        %1021 = vmatprep.subr.bf16.mxu0 0
        %1022 = vmatpush1.bf16.msra.mxu0 0
        %1023 = vmatprep.subr.bf16.mxu0 0
        %1024 = vmatpush1.bf16.msra.mxu0 0
        %1025 = vmatprep.subr.bf16.mxu0 0
        %1026 = vmatpush1.bf16.msra.mxu0 0
        %1027 = vmatprep.subr.bf16.mxu0 0
        %1028 = vmatpush1.bf16.msra.mxu0 0
        %1029 = vmatprep.subr.bf16.mxu0 0
        %1030 = vmatpush1.bf16.msra.mxu0 0
        %1031 = vmatprep.subr.bf16.mxu0 0
        %1032 = vmatpush1.bf16.msra.mxu0 0
        %1033 = vmatprep.subr.bf16.mxu0 0
        %1034 = vmatpush1.bf16.msra.mxu0 0
        %1035 = vmatprep.subr.bf16.mxu0 0
        %1036 = vmatpush1.bf16.msra.mxu0 0
        %1037 = vmatprep.subr.bf16.mxu0 0
        %1038 = vmatpush1.bf16.msra.mxu0 0
        %1039 = vmatprep.mubr.bf16.mxu0 0
        %1040 = vmatmul.mubr.bf16.gmra.mrb[0].mxu0 %v1005
        %v1041 = vpop.f32.mrb[0].mxu0
        %v1042 = vadd.f32 0.0, %v1041
        %v1043 = vpop.f32.mrb[0].mxu0
        %v1044 = vpop.f32.mrb[0].mxu0
        %v1045 = vpop.f32.mrb[0].mxu0
        %1046 = vdwg.mxu0
        %1048 = vrot.lane.b32.xlu0 %v1042, 24
        %v1049 = vpop.permute.xlu0 %1048
        %vm1051 = vcmask 261312
        %1052 = vst.msk [vmem:[#allocation2] sm:$0xff] %vm1051, %v1049
        %v1053 = vld [vmem:[#allocation2] sm:$0xff]
        %v1054 = vpack.c.bf16 %v1053, %v1053
        %s1055 = scalar_lea.vmem [#allocation11], 48
        %v1056 = vld [vmem:[%s1055] sm:$0xf]
        %v1057 = vld [vmem:[%s1055 + $0x4] sm:$0xf]
        %v1058 = vld [vmem:[%s1055 + $0x8] sm:$0xf]
        %v1059 = vld [vmem:[%s1055 + $0xc] sm:$0xf]
        %v1060 = vlaneseq
        %v1061 = vshrl.u32 %v1060, 7
        %v1062 = vsub.s32 3, %v1061
        %v1063 = vrot.slane %v404, %v1062
        %v1068 = vunpack.c.l.b16 %v1056
        %v1069 = vunpack.c.l.b16 %v1057
        %v1070 = vunpack.c.l.b16 %v1058
        %v1071 = vunpack.c.l.b16 %v1059
        %v1072 = vpack.c.b16 %v1069, %v1068
        %v1073 = vpack.c.b16 %v1071, %v1070
        %v1077 = vsel %vm427, %v1054, 0
        %1079 = vmatprep.subr.bf16.mxu0 0
        %1080 = vmatpush1.bf16.msra.mxu0 %v1072
        %1081 = vmatprep.subr.bf16.mxu0 0
        %1082 = vmatpush1.bf16.msra.mxu0 %v1073
        %1083 = vmatprep.subr.bf16.mxu0 0
        %1084 = vmatpush1.bf16.msra.mxu0 0
        %1085 = vmatprep.subr.bf16.mxu0 0
        %1086 = vmatpush1.bf16.msra.mxu0 0
        %1087 = vmatprep.subr.bf16.mxu0 0
        %1088 = vmatpush1.bf16.msra.mxu0 0
        %1089 = vmatprep.subr.bf16.mxu0 0
        %1090 = vmatpush1.bf16.msra.mxu0 0
        %1091 = vmatprep.subr.bf16.mxu0 0
        %1092 = vmatpush1.bf16.msra.mxu0 0
        %1093 = vmatprep.subr.bf16.mxu0 0
        %1094 = vmatpush1.bf16.msra.mxu0 0
        %1095 = vmatprep.subr.bf16.mxu0 0
        %1096 = vmatpush1.bf16.msra.mxu0 0
        %1097 = vmatprep.subr.bf16.mxu0 0
        %1098 = vmatpush1.bf16.msra.mxu0 0
        %1099 = vmatprep.subr.bf16.mxu0 0
        %1100 = vmatpush1.bf16.msra.mxu0 0
        %1101 = vmatprep.subr.bf16.mxu0 0
        %1102 = vmatpush1.bf16.msra.mxu0 0
        %1103 = vmatprep.subr.bf16.mxu0 0
        %1104 = vmatpush1.bf16.msra.mxu0 0
        %1105 = vmatprep.subr.bf16.mxu0 0
        %1106 = vmatpush1.bf16.msra.mxu0 0
        %1107 = vmatprep.subr.bf16.mxu0 0
        %1108 = vmatpush1.bf16.msra.mxu0 0
        %1109 = vmatprep.subr.bf16.mxu0 0
        %1110 = vmatpush1.bf16.msra.mxu0 0
        %1111 = vmatprep.mubr.bf16.mxu0 0
        %1112 = vmatmul.mubr.bf16.gmra.mrb[0].mxu0 %v1077
        %v1113 = vpop.f32.mrb[0].mxu0
        %v1114 = vadd.f32 %v1063, %v1113
        %v1115 = vpop.f32.mrb[0].mxu0
        %v1116 = vpop.f32.mrb[0].mxu0
        %v1117 = vpop.f32.mrb[0].mxu0
        %1118 = vdwg.mxu0
        %v1119 = vpack.c.bf16 %v1114, %v1114
        %s1120 = scalar_lea.vmem [#allocation11], 64
        %v1121 = vld [vmem:[%s1120] sm:$0xf]
        %v1122 = vld [vmem:[%s1120 + $0x4] sm:$0xf]
        %v1123 = vld [vmem:[%s1120 + $0x8] sm:$0xf]
        %v1124 = vld [vmem:[%s1120 + $0xc] sm:$0xf]
        %v1125 = vlaneseq
        %v1126 = vshrl.u32 %v1125, 7
        %v1127 = vsub.s32 4, %v1126
        %v1128 = vrot.slane %v404, %v1127
        %v1133 = vunpack.c.l.b16 %v1121
        %v1134 = vunpack.c.l.b16 %v1122
        %v1135 = vunpack.c.l.b16 %v1123
        %v1136 = vunpack.c.l.b16 %v1124
        %v1137 = vpack.c.b16 %v1134, %v1133
        %v1138 = vpack.c.b16 %v1136, %v1135
        %v1142 = vsel %vm427, %v1119, 0
        %1144 = vmatprep.subr.bf16.mxu0 0
        %1145 = vmatpush1.bf16.msra.mxu0 %v1137
        %1146 = vmatprep.subr.bf16.mxu0 0
        %1147 = vmatpush1.bf16.msra.mxu0 %v1138
        %1148 = vmatprep.subr.bf16.mxu0 0
        %1149 = vmatpush1.bf16.msra.mxu0 0
        %1150 = vmatprep.subr.bf16.mxu0 0
        %1151 = vmatpush1.bf16.msra.mxu0 0
        %1152 = vmatprep.subr.bf16.mxu0 0
        %1153 = vmatpush1.bf16.msra.mxu0 0
        %1154 = vmatprep.subr.bf16.mxu0 0
        %1155 = vmatpush1.bf16.msra.mxu0 0
        %1156 = vmatprep.subr.bf16.mxu0 0
        %1157 = vmatpush1.bf16.msra.mxu0 0
        %1158 = vmatprep.subr.bf16.mxu0 0
        %1159 = vmatpush1.bf16.msra.mxu0 0
        %1160 = vmatprep.subr.bf16.mxu0 0
        %1161 = vmatpush1.bf16.msra.mxu0 0
        %1162 = vmatprep.subr.bf16.mxu0 0
        %1163 = vmatpush1.bf16.msra.mxu0 0
        %1164 = vmatprep.subr.bf16.mxu0 0
        %1165 = vmatpush1.bf16.msra.mxu0 0
        %1166 = vmatprep.subr.bf16.mxu0 0
        %1167 = vmatpush1.bf16.msra.mxu0 0
        %1168 = vmatprep.subr.bf16.mxu0 0
        %1169 = vmatpush1.bf16.msra.mxu0 0
        %1170 = vmatprep.subr.bf16.mxu0 0
        %1171 = vmatpush1.bf16.msra.mxu0 0
        %1172 = vmatprep.subr.bf16.mxu0 0
        %1173 = vmatpush1.bf16.msra.mxu0 0
        %1174 = vmatprep.subr.bf16.mxu0 0
        %1175 = vmatpush1.bf16.msra.mxu0 0
        %1176 = vmatprep.mubr.bf16.mxu0 0
        %1177 = vmatmul.mubr.bf16.gmra.mrb[0].mxu0 %v1142
        %v1178 = vpop.f32.mrb[0].mxu0
        %v1179 = vadd.f32 %v1128, %v1178
        %v1180 = vpop.f32.mrb[0].mxu0
        %v1181 = vpop.f32.mrb[0].mxu0
        %v1182 = vpop.f32.mrb[0].mxu0
        %1183 = vdwg.mxu0
        %v1184 = vmul.f32 %v1179, 0.5
        %v1185 = vmul.f32 %v1179, 0.70710677
        %v1186 = vmax.f32 %v1185, -4.0
        %v1187 = vmin.f32 %v1186, 4.0
        %v1188 = vmul.f32 %v1187, %v1187
        %v1189 = vmul.f32 %v1188, -2.7261424e-10
        %v1190 = vadd.f32 %v1189, 2.7706815e-08
        %v1191 = vmul.f32 %v1190, %v1188
        %v1192 = vadd.f32 %v1191, -2.101024e-06
        %v1193 = vmul.f32 %v1192, %v1188
        %v1194 = vadd.f32 %v1193, -5.6925062e-05
        %v1195 = vmul.f32 %v1194, %v1188
        %v1196 = vadd.f32 %v1195, -0.00073499064
        %v1197 = vmul.f32 %v1196, %v1188
        %v1198 = vadd.f32 %v1197, -0.0029546
        %v1199 = vmul.f32 %v1198, %v1188
        %v1200 = vadd.f32 %v1199, -0.016096033
        %v1201 = vmul.f32 %v1188, -1.45660715e-05
        %v1202 = vadd.f32 %v1201, -0.00021337405
        %v1203 = vmul.f32 %v1202, %v1188
        %v1204 = vadd.f32 %v1203, -0.001682827
        %v1205 = vmul.f32 %v1204, %v1188
        %v1206 = vadd.f32 %v1205, -0.0073733293
        %v1207 = vmul.f32 %v1206, %v1188
        %v1208 = vadd.f32 %v1207, -0.014264739
        %v1209 = vmul.f32 %v1187, %v1200
        %v1210 = vrcp.pop %v1208
        %v1211 = vmul.f32 %v1209, %v1210
        %v1212 = vadd.f32 %v1211, 1.0
        %v1213 = vmul.f32 %v1184, %v1212
        %v1214 = vpack.c.bf16 %v1213, %v1213
        %s1215 = scalar_lea.vmem [#allocation11], 80
        %v1216 = vld [vmem:[%s1215] sm:$0xf]
        %v1217 = vld [vmem:[%s1215 + $0x4] sm:$0xf]
        %v1218 = vld [vmem:[%s1215 + $0x8] sm:$0xf]
        %v1219 = vld [vmem:[%s1215 + $0xc] sm:$0xf]
        %v1220 = vlaneseq
        %v1221 = vshrl.u32 %v1220, 7
        %v1222 = vsub.s32 5, %v1221
        %v1223 = vrot.slane %v404, %v1222
        %v1228 = vunpack.c.l.b16 %v1216
        %v1229 = vunpack.c.l.b16 %v1217
        %v1230 = vunpack.c.l.b16 %v1218
        %v1231 = vunpack.c.l.b16 %v1219
        %v1232 = vpack.c.b16 %v1229, %v1228
        %v1233 = vpack.c.b16 %v1231, %v1230
        %v1237 = vsel %vm427, %v1214, 0
        %1239 = vmatprep.subr.bf16.mxu0 0
        %1240 = vmatpush1.bf16.msra.mxu0 %v1232
        %1241 = vmatprep.subr.bf16.mxu0 0
        %1242 = vmatpush1.bf16.msra.mxu0 %v1233
        %1243 = vmatprep.subr.bf16.mxu0 0
        %1244 = vmatpush1.bf16.msra.mxu0 0
        %1245 = vmatprep.subr.bf16.mxu0 0
        %1246 = vmatpush1.bf16.msra.mxu0 0
        %1247 = vmatprep.subr.bf16.mxu0 0
        %1248 = vmatpush1.bf16.msra.mxu0 0
        %1249 = vmatprep.subr.bf16.mxu0 0
        %1250 = vmatpush1.bf16.msra.mxu0 0
        %1251 = vmatprep.subr.bf16.mxu0 0
        %1252 = vmatpush1.bf16.msra.mxu0 0
        %1253 = vmatprep.subr.bf16.mxu0 0
        %1254 = vmatpush1.bf16.msra.mxu0 0
        %1255 = vmatprep.subr.bf16.mxu0 0
        %1256 = vmatpush1.bf16.msra.mxu0 0
        %1257 = vmatprep.subr.bf16.mxu0 0
        %1258 = vmatpush1.bf16.msra.mxu0 0
        %1259 = vmatprep.subr.bf16.mxu0 0
        %1260 = vmatpush1.bf16.msra.mxu0 0
        %1261 = vmatprep.subr.bf16.mxu0 0
        %1262 = vmatpush1.bf16.msra.mxu0 0
        %1263 = vmatprep.subr.bf16.mxu0 0
        %1264 = vmatpush1.bf16.msra.mxu0 0
        %1265 = vmatprep.subr.bf16.mxu0 0
        %1266 = vmatpush1.bf16.msra.mxu0 0
        %1267 = vmatprep.subr.bf16.mxu0 0
        %1268 = vmatpush1.bf16.msra.mxu0 0
        %1269 = vmatprep.subr.bf16.mxu0 0
        %1270 = vmatpush1.bf16.msra.mxu0 0
        %1271 = vmatprep.mubr.bf16.mxu0 0
        %1272 = vmatmul.mubr.bf16.gmra.mrb[0].mxu0 %v1237
        %v1273 = vpop.f32.mrb[0].mxu0
        %v1274 = vadd.f32 %v1223, %v1273
        %v1275 = vpop.f32.mrb[0].mxu0
        %v1276 = vpop.f32.mrb[0].mxu0
        %v1277 = vpop.f32.mrb[0].mxu0
        %1278 = vdwg.mxu0
        %v1279 = vadd.f32 %v396, %v1274
        %v1280 = vsel %vm427, %v1279, 0.0
        %1281 = vadd.xlane.f32.xlu0 %v1280
        %v1282 = vpop.xlane.xlu0 %1281
        %v1283 = vrcp.pop 32.0
        %v1284 = vmul.f32 %v1282, %v1283
        %v1285 = vsub.f32 %v1279, %v1284
        %v1286 = vmul.f32 %v1285, %v1285
        %v1287 = vsel %vm427, %v1286, 0.0
        %1288 = vadd.xlane.f32.xlu0 %v1287
        %v1289 = vpop.xlane.xlu0 %1288
        %v1290 = vmul.f32 %v1289, %v1283
        %v1291 = vadd.f32 %v1290, 1e-05
        %v1292 = vrsqrt.pop %v1291
        %v1293 = vmul.f32 %v1285, %v1292
        %v1294 = vlaneseq
        %v1295 = vshrl.u32 %v1294, 7
        %v1296 = vsub.s32 6, %v1295
        %v1297 = vrot.slane %v404, %v1296
        %v1298 = vmul.f32 %v1293, %v1297
        %v1299 = vlaneseq
        %v1300 = vshrl.u32 %v1299, 7
        %v1301 = vsub.s32 7, %v1300
        %v1302 = vrot.slane %v404, %v1301
        %v1303 = vadd.f32 %v1298, %v1302
        %s1304 = scalar_lea.vmem %s5, 8
        %v1305 = vld [vmem:[%s1304] sm:$0xff]
        %v1306 = vadd.f32 %v1303, %v397
        %v1307 = vpack.c.bf16 %v1306, %v1306
        %s1308 = scalar_lea.vmem [#allocation11], 96
        %v1309 = vld [vmem:[%s1308] sm:$0xf]
        %v1310 = vld [vmem:[%s1308 + $0x4] sm:$0xf]
        %v1311 = vld [vmem:[%s1308 + $0x8] sm:$0xf]
        %v1312 = vld [vmem:[%s1308 + $0xc] sm:$0xf]
        %v1313 = vlaneseq
        %v1314 = vshrl.u32 %v1313, 7
        %v1315 = vsub.s32 0, %v1314
        %v1316 = vrot.slane %v1305, %v1315
        %v1321 = vunpack.c.l.b16 %v1309
        %v1322 = vunpack.c.l.b16 %v1310
        %v1323 = vunpack.c.l.b16 %v1311
        %v1324 = vunpack.c.l.b16 %v1312
        %v1325 = vpack.c.b16 %v1322, %v1321
        %v1326 = vpack.c.b16 %v1324, %v1323
        %v1330 = vsel %vm427, %v1307, 0
        %1332 = vmatprep.subr.bf16.mxu0 0
        %1333 = vmatpush1.bf16.msra.mxu0 %v1325
        %1334 = vmatprep.subr.bf16.mxu0 0
        %1335 = vmatpush1.bf16.msra.mxu0 %v1326
        %1336 = vmatprep.subr.bf16.mxu0 0
        %1337 = vmatpush1.bf16.msra.mxu0 0
        %1338 = vmatprep.subr.bf16.mxu0 0
        %1339 = vmatpush1.bf16.msra.mxu0 0
        %1340 = vmatprep.subr.bf16.mxu0 0
        %1341 = vmatpush1.bf16.msra.mxu0 0
        %1342 = vmatprep.subr.bf16.mxu0 0
        %1343 = vmatpush1.bf16.msra.mxu0 0
        %1344 = vmatprep.subr.bf16.mxu0 0
        %1345 = vmatpush1.bf16.msra.mxu0 0
        %1346 = vmatprep.subr.bf16.mxu0 0
        %1347 = vmatpush1.bf16.msra.mxu0 0
        %1348 = vmatprep.subr.bf16.mxu0 0
        %1349 = vmatpush1.bf16.msra.mxu0 0
        %1350 = vmatprep.subr.bf16.mxu0 0
        %1351 = vmatpush1.bf16.msra.mxu0 0
        %1352 = vmatprep.subr.bf16.mxu0 0
        %1353 = vmatpush1.bf16.msra.mxu0 0
        %1354 = vmatprep.subr.bf16.mxu0 0
        %1355 = vmatpush1.bf16.msra.mxu0 0
        %1356 = vmatprep.subr.bf16.mxu0 0
        %1357 = vmatpush1.bf16.msra.mxu0 0
        %1358 = vmatprep.subr.bf16.mxu0 0
        %1359 = vmatpush1.bf16.msra.mxu0 0
        %1360 = vmatprep.subr.bf16.mxu0 0
        %1361 = vmatpush1.bf16.msra.mxu0 0
        %1362 = vmatprep.subr.bf16.mxu0 0
        %1363 = vmatpush1.bf16.msra.mxu0 0
        %1364 = vmatprep.mubr.bf16.mxu0 0
        %1365 = vmatmul.mubr.bf16.gmra.mrb[0].mxu0 %v1330
        %v1366 = vpop.f32.mrb[0].mxu0
        %v1367 = vadd.f32 %v1316, %v1366
        %v1368 = vpop.f32.mrb[0].mxu0
        %v1369 = vpop.f32.mrb[0].mxu0
        %v1370 = vpop.f32.mrb[0].mxu0
        %1371 = vdwg.mxu0
        %s1372 = scalar_lea.vmem [#allocation11], 112
        %v1373 = vld [vmem:[%s1372] sm:$0xf]
        %v1374 = vld [vmem:[%s1372 + $0x4] sm:$0xf]
        %v1375 = vld [vmem:[%s1372 + $0x8] sm:$0xf]
        %v1376 = vld [vmem:[%s1372 + $0xc] sm:$0xf]
        %v1377 = vlaneseq
        %v1378 = vshrl.u32 %v1377, 7
        %v1379 = vsub.s32 1, %v1378
        %v1380 = vrot.slane %v1305, %v1379
        %v1385 = vunpack.c.l.b16 %v1373
        %v1386 = vunpack.c.l.b16 %v1374
        %v1387 = vunpack.c.l.b16 %v1375
        %v1388 = vunpack.c.l.b16 %v1376
        %v1389 = vpack.c.b16 %v1386, %v1385
        %v1390 = vpack.c.b16 %v1388, %v1387
        %1393 = vmatprep.subr.bf16.mxu0 0
        %1394 = vmatpush1.bf16.msra.mxu0 %v1389
        %1395 = vmatprep.subr.bf16.mxu0 0
        %1396 = vmatpush1.bf16.msra.mxu0 %v1390
        %1397 = vmatprep.subr.bf16.mxu0 0
        %1398 = vmatpush1.bf16.msra.mxu0 0
        %1399 = vmatprep.subr.bf16.mxu0 0
        %1400 = vmatpush1.bf16.msra.mxu0 0
        %1401 = vmatprep.subr.bf16.mxu0 0
        %1402 = vmatpush1.bf16.msra.mxu0 0
        %1403 = vmatprep.subr.bf16.mxu0 0
        %1404 = vmatpush1.bf16.msra.mxu0 0
        %1405 = vmatprep.subr.bf16.mxu0 0
        %1406 = vmatpush1.bf16.msra.mxu0 0
        %1407 = vmatprep.subr.bf16.mxu0 0
        %1408 = vmatpush1.bf16.msra.mxu0 0
        %1409 = vmatprep.subr.bf16.mxu0 0
        %1410 = vmatpush1.bf16.msra.mxu0 0
        %1411 = vmatprep.subr.bf16.mxu0 0
        %1412 = vmatpush1.bf16.msra.mxu0 0
        %1413 = vmatprep.subr.bf16.mxu0 0
        %1414 = vmatpush1.bf16.msra.mxu0 0
        %1415 = vmatprep.subr.bf16.mxu0 0
        %1416 = vmatpush1.bf16.msra.mxu0 0
        %1417 = vmatprep.subr.bf16.mxu0 0
        %1418 = vmatpush1.bf16.msra.mxu0 0
        %1419 = vmatprep.subr.bf16.mxu0 0
        %1420 = vmatpush1.bf16.msra.mxu0 0
        %1421 = vmatprep.subr.bf16.mxu0 0
        %1422 = vmatpush1.bf16.msra.mxu0 0
        %1423 = vmatprep.subr.bf16.mxu0 0
        %1424 = vmatpush1.bf16.msra.mxu0 0
        %1425 = vmatprep.mubr.bf16.mxu0 0
        %1426 = vmatmul.mubr.bf16.gmra.mrb[0].mxu0 %v493
        %v1427 = vpop.f32.mrb[0].mxu0
        %v1428 = vadd.f32 %v1380, %v1427
        %v1429 = vpop.f32.mrb[0].mxu0
        %v1430 = vpop.f32.mrb[0].mxu0
        %v1431 = vadd.f32 %v1380, %v1430
        %v1432 = vpop.f32.mrb[0].mxu0
        %1433 = vdwg.mxu0
        %s1434 = scalar_lea.vmem [#allocation11], 128
        %v1435 = vld [vmem:[%s1434] sm:$0xf]
        %v1436 = vld [vmem:[%s1434 + $0x4] sm:$0xf]
        %v1437 = vld [vmem:[%s1434 + $0x8] sm:$0xf]
        %v1438 = vld [vmem:[%s1434 + $0xc] sm:$0xf]
        %v1439 = vlaneseq
        %v1440 = vshrl.u32 %v1439, 7
        %v1441 = vsub.s32 2, %v1440
        %v1442 = vrot.slane %v1305, %v1441
        %v1447 = vunpack.c.l.b16 %v1435
        %v1448 = vunpack.c.l.b16 %v1436
        %v1449 = vunpack.c.l.b16 %v1437
        %v1450 = vunpack.c.l.b16 %v1438
        %v1451 = vpack.c.b16 %v1448, %v1447
        %v1452 = vpack.c.b16 %v1450, %v1449
        %1455 = vmatprep.subr.bf16.mxu0 0
        %1456 = vmatpush1.bf16.msra.mxu0 %v1451
        %1457 = vmatprep.subr.bf16.mxu0 0
        %1458 = vmatpush1.bf16.msra.mxu0 %v1452
        %1459 = vmatprep.subr.bf16.mxu0 0
        %1460 = vmatpush1.bf16.msra.mxu0 0
        %1461 = vmatprep.subr.bf16.mxu0 0
        %1462 = vmatpush1.bf16.msra.mxu0 0
        %1463 = vmatprep.subr.bf16.mxu0 0
        %1464 = vmatpush1.bf16.msra.mxu0 0
        %1465 = vmatprep.subr.bf16.mxu0 0
        %1466 = vmatpush1.bf16.msra.mxu0 0
        %1467 = vmatprep.subr.bf16.mxu0 0
        %1468 = vmatpush1.bf16.msra.mxu0 0
        %1469 = vmatprep.subr.bf16.mxu0 0
        %1470 = vmatpush1.bf16.msra.mxu0 0
        %1471 = vmatprep.subr.bf16.mxu0 0
        %1472 = vmatpush1.bf16.msra.mxu0 0
        %1473 = vmatprep.subr.bf16.mxu0 0
        %1474 = vmatpush1.bf16.msra.mxu0 0
        %1475 = vmatprep.subr.bf16.mxu0 0
        %1476 = vmatpush1.bf16.msra.mxu0 0
        %1477 = vmatprep.subr.bf16.mxu0 0
        %1478 = vmatpush1.bf16.msra.mxu0 0
        %1479 = vmatprep.subr.bf16.mxu0 0
        %1480 = vmatpush1.bf16.msra.mxu0 0
        %1481 = vmatprep.subr.bf16.mxu0 0
        %1482 = vmatpush1.bf16.msra.mxu0 0
        %1483 = vmatprep.subr.bf16.mxu0 0
        %1484 = vmatpush1.bf16.msra.mxu0 0
        %1485 = vmatprep.subr.bf16.mxu0 0
        %1486 = vmatpush1.bf16.msra.mxu0 0
        %1487 = vmatprep.mubr.bf16.mxu0 0
        %1488 = vmatmul.mubr.bf16.gmra.mrb[0].mxu0 %v558
        %v1489 = vpop.f32.mrb[0].mxu0
        %v1490 = vadd.f32 %v1442, %v1489
        %v1491 = vpop.f32.mrb[0].mxu0
        %v1492 = vpop.f32.mrb[0].mxu0
        %v1493 = vadd.f32 %v1442, %v1492
        %v1494 = vpop.f32.mrb[0].mxu0
        %1495 = vdwg.mxu0
        %v1496 = vpack.c.bf16 %v1367, %v1367
        %v1497 = vpack.c.bf16 %v1431, %v1428
        %v1498 = vpack.c.bf16 %v1493, %v1490
        %v1500 = vsel %vm604, %v1496, 0
        %v1503 = vsel %vm604, %v1497, 0
        %1505 = vmatprep.subr.bf16.mxu0 0
        %1506 = vmatpush1.bf16.xpose.msra.mxu0 %v1503
        %1507 = vmatprep.subr.bf16.mxu0 0
        %1508 = vmatpush1.bf16.xpose.msra.mxu0 0
        %1509 = vmatprep.subr.bf16.mxu0 0
        %1510 = vmatpush1.bf16.xpose.msra.mxu0 0
        %1511 = vmatprep.subr.bf16.mxu0 0
        %1512 = vmatpush1.bf16.xpose.msra.mxu0 0
        %1513 = vmatprep.subr.bf16.mxu0 0
        %1514 = vmatpush1.bf16.xpose.msra.mxu0 0
        %1515 = vmatprep.subr.bf16.mxu0 0
        %1516 = vmatpush1.bf16.xpose.msra.mxu0 0
        %1517 = vmatprep.subr.bf16.mxu0 0
        %1518 = vmatpush1.bf16.xpose.msra.mxu0 0
        %1519 = vmatprep.subr.bf16.mxu0 0
        %1520 = vmatpush1.bf16.xpose.msra.mxu0 0
        %1521 = vmatprep.subr.bf16.mxu0 0
        %1522 = vmatpush1.bf16.xpose.msra.mxu0 0
        %1523 = vmatprep.subr.bf16.mxu0 0
        %1524 = vmatpush1.bf16.xpose.msra.mxu0 0
        %1525 = vmatprep.subr.bf16.mxu0 0
        %1526 = vmatpush1.bf16.xpose.msra.mxu0 0
        %1527 = vmatprep.subr.bf16.mxu0 0
        %1528 = vmatpush1.bf16.xpose.msra.mxu0 0
        %1529 = vmatprep.subr.bf16.mxu0 0
        %1530 = vmatpush1.bf16.xpose.msra.mxu0 0
        %1531 = vmatprep.subr.bf16.mxu0 0
        %1532 = vmatpush1.bf16.xpose.msra.mxu0 0
        %1533 = vmatprep.subr.bf16.mxu0 0
        %1534 = vmatpush1.bf16.xpose.msra.mxu0 0
        %1535 = vmatprep.subr.bf16.mxu0 0
        %1536 = vmatpush1.bf16.xpose.msra.mxu0 0
        %1537 = vmatprep.mubr.bf16.mxu0 0
        %1538 = vmatmul.mubr.bf16.gmra.mrb[0].mxu0 %v1500
        %v1539 = vpop.f32.mrb[0].mxu0
        %v1540 = vadd.f32 0.0, %v1539
        %v1541 = vpop.f32.mrb[0].mxu0
        %v1542 = vpop.f32.mrb[0].mxu0
        %v1543 = vpop.f32.mrb[0].mxu0
        %1544 = vdwg.mxu0
        %v1545 = vsel %vm651, %v1540, -inf
        %1546 = vmax.xlane.f32.xlu0 %v1545
        %v1547 = vpop.xlane.xlu0 %1546
        %v1548 = vsub.f32 %v1540, %v1547
        %v1549 = vmul.f32 %v1548, 1.442695
        %v1550 = vpow.pop %v1549
        %v1551 = vsel %vm651, %v1550, 0.0
        %1552 = vadd.xlane.f32.xlu0 %v1551
        %v1553 = vpop.xlane.xlu0 %1552
        %v1554 = vrcp.pop %v1553
        %v1555 = vmul.f32 %v1550, %v1554
        %v1556 = vpack.c.bf16 %v1555, %v1555
        %v1558 = vsel %vm651, %v1556, 0
        %1560 = vmatprep.subr.bf16.mxu0 0
        %1561 = vmatpush1.bf16.msra.mxu0 %v1498
        %1562 = vmatprep.subr.bf16.mxu0 0
        %1563 = vmatpush1.bf16.msra.mxu0 0
        %1564 = vmatprep.subr.bf16.mxu0 0
        %1565 = vmatpush1.bf16.msra.mxu0 0
        %1566 = vmatprep.subr.bf16.mxu0 0
        %1567 = vmatpush1.bf16.msra.mxu0 0
        %1568 = vmatprep.subr.bf16.mxu0 0
        %1569 = vmatpush1.bf16.msra.mxu0 0
        %1570 = vmatprep.subr.bf16.mxu0 0
        %1571 = vmatpush1.bf16.msra.mxu0 0
        %1572 = vmatprep.subr.bf16.mxu0 0
        %1573 = vmatpush1.bf16.msra.mxu0 0
        %1574 = vmatprep.subr.bf16.mxu0 0
        %1575 = vmatpush1.bf16.msra.mxu0 0
        %1576 = vmatprep.subr.bf16.mxu0 0
        %1577 = vmatpush1.bf16.msra.mxu0 0
        %1578 = vmatprep.subr.bf16.mxu0 0
        %1579 = vmatpush1.bf16.msra.mxu0 0
        %1580 = vmatprep.subr.bf16.mxu0 0
        %1581 = vmatpush1.bf16.msra.mxu0 0
        %1582 = vmatprep.subr.bf16.mxu0 0
        %1583 = vmatpush1.bf16.msra.mxu0 0
        %1584 = vmatprep.subr.bf16.mxu0 0
        %1585 = vmatpush1.bf16.msra.mxu0 0
        %1586 = vmatprep.subr.bf16.mxu0 0
        %1587 = vmatpush1.bf16.msra.mxu0 0
        %1588 = vmatprep.subr.bf16.mxu0 0
        %1589 = vmatpush1.bf16.msra.mxu0 0
        %1590 = vmatprep.subr.bf16.mxu0 0
        %1591 = vmatpush1.bf16.msra.mxu0 0
        %1592 = vmatprep.mubr.bf16.mxu0 0
        %1593 = vmatmul.mubr.bf16.gmra.mrb[0].mxu0 %v1558
        %v1594 = vpop.f32.mrb[0].mxu0
        %v1595 = vadd.f32 0.0, %v1594
        %v1596 = vpop.f32.mrb[0].mxu0
        %v1597 = vpop.f32.mrb[0].mxu0
        %v1598 = vpop.f32.mrb[0].mxu0
        %1599 = vdwg.mxu0
        %1600 = vst.msk [vmem:[#allocation2] sm:$0xff] %vm604, %v1595
        %1602 = vrot.lane.b32.xlu0 %v1496, 120
        %v1603 = vpop.permute.xlu0 %1602
        %1605 = vrot.lane.b32.xlu0 %v1497, 120
        %v1606 = vpop.permute.xlu0 %1605
        %v1608 = vsel %vm604, %v1603, 0
        %v1611 = vsel %vm604, %v1606, 0
        %1613 = vmatprep.subr.bf16.mxu0 0
        %1614 = vmatpush1.bf16.xpose.msra.mxu0 %v1611
        %1615 = vmatprep.subr.bf16.mxu0 0
        %1616 = vmatpush1.bf16.xpose.msra.mxu0 0
        %1617 = vmatprep.subr.bf16.mxu0 0
        %1618 = vmatpush1.bf16.xpose.msra.mxu0 0
        %1619 = vmatprep.subr.bf16.mxu0 0
        %1620 = vmatpush1.bf16.xpose.msra.mxu0 0
        %1621 = vmatprep.subr.bf16.mxu0 0
        %1622 = vmatpush1.bf16.xpose.msra.mxu0 0
        %1623 = vmatprep.subr.bf16.mxu0 0
        %1624 = vmatpush1.bf16.xpose.msra.mxu0 0
        %1625 = vmatprep.subr.bf16.mxu0 0
        %1626 = vmatpush1.bf16.xpose.msra.mxu0 0
        %1627 = vmatprep.subr.bf16.mxu0 0
        %1628 = vmatpush1.bf16.xpose.msra.mxu0 0
        %1629 = vmatprep.subr.bf16.mxu0 0
        %1630 = vmatpush1.bf16.xpose.msra.mxu0 0
        %1631 = vmatprep.subr.bf16.mxu0 0
        %1632 = vmatpush1.bf16.xpose.msra.mxu0 0
        %1633 = vmatprep.subr.bf16.mxu0 0
        %1634 = vmatpush1.bf16.xpose.msra.mxu0 0
        %1635 = vmatprep.subr.bf16.mxu0 0
        %1636 = vmatpush1.bf16.xpose.msra.mxu0 0
        %1637 = vmatprep.subr.bf16.mxu0 0
        %1638 = vmatpush1.bf16.xpose.msra.mxu0 0
        %1639 = vmatprep.subr.bf16.mxu0 0
        %1640 = vmatpush1.bf16.xpose.msra.mxu0 0
        %1641 = vmatprep.subr.bf16.mxu0 0
        %1642 = vmatpush1.bf16.xpose.msra.mxu0 0
        %1643 = vmatprep.subr.bf16.mxu0 0
        %1644 = vmatpush1.bf16.xpose.msra.mxu0 0
        %1645 = vmatprep.mubr.bf16.mxu0 0
        %1646 = vmatmul.mubr.bf16.gmra.mrb[0].mxu0 %v1608
        %v1647 = vpop.f32.mrb[0].mxu0
        %v1648 = vadd.f32 0.0, %v1647
        %v1649 = vpop.f32.mrb[0].mxu0
        %v1650 = vpop.f32.mrb[0].mxu0
        %v1651 = vpop.f32.mrb[0].mxu0
        %1652 = vdwg.mxu0
        %v1653 = vsel %vm651, %v1648, -inf
        %1654 = vmax.xlane.f32.xlu0 %v1653
        %v1655 = vpop.xlane.xlu0 %1654
        %v1656 = vsub.f32 %v1648, %v1655
        %v1657 = vmul.f32 %v1656, 1.442695
        %v1658 = vpow.pop %v1657
        %v1659 = vsel %vm651, %v1658, 0.0
        %1660 = vadd.xlane.f32.xlu0 %v1659
        %v1661 = vpop.xlane.xlu0 %1660
        %v1662 = vrcp.pop %v1661
        %v1663 = vmul.f32 %v1658, %v1662
        %v1664 = vpack.c.bf16 %v1663, %v1663
        %1666 = vrot.lane.b32.xlu0 %v1498, 120
        %v1667 = vpop.permute.xlu0 %1666
        %v1670 = vsel %vm651, %v1664, 0
        %1672 = vmatprep.subr.bf16.mxu0 0
        %1673 = vmatpush1.bf16.msra.mxu0 %v1667
        %1674 = vmatprep.subr.bf16.mxu0 0
        %1675 = vmatpush1.bf16.msra.mxu0 0
        %1676 = vmatprep.subr.bf16.mxu0 0
        %1677 = vmatpush1.bf16.msra.mxu0 0
        %1678 = vmatprep.subr.bf16.mxu0 0
        %1679 = vmatpush1.bf16.msra.mxu0 0
        %1680 = vmatprep.subr.bf16.mxu0 0
        %1681 = vmatpush1.bf16.msra.mxu0 0
        %1682 = vmatprep.subr.bf16.mxu0 0
        %1683 = vmatpush1.bf16.msra.mxu0 0
        %1684 = vmatprep.subr.bf16.mxu0 0
        %1685 = vmatpush1.bf16.msra.mxu0 0
        %1686 = vmatprep.subr.bf16.mxu0 0
        %1687 = vmatpush1.bf16.msra.mxu0 0
        %1688 = vmatprep.subr.bf16.mxu0 0
        %1689 = vmatpush1.bf16.msra.mxu0 0
        %1690 = vmatprep.subr.bf16.mxu0 0
        %1691 = vmatpush1.bf16.msra.mxu0 0
        %1692 = vmatprep.subr.bf16.mxu0 0
        %1693 = vmatpush1.bf16.msra.mxu0 0
        %1694 = vmatprep.subr.bf16.mxu0 0
        %1695 = vmatpush1.bf16.msra.mxu0 0
        %1696 = vmatprep.subr.bf16.mxu0 0
        %1697 = vmatpush1.bf16.msra.mxu0 0
        %1698 = vmatprep.subr.bf16.mxu0 0
        %1699 = vmatpush1.bf16.msra.mxu0 0
        %1700 = vmatprep.subr.bf16.mxu0 0
        %1701 = vmatpush1.bf16.msra.mxu0 0
        %1702 = vmatprep.subr.bf16.mxu0 0
        %1703 = vmatpush1.bf16.msra.mxu0 0
        %1704 = vmatprep.mubr.bf16.mxu0 0
        %1705 = vmatmul.mubr.bf16.gmra.mrb[0].mxu0 %v1670
        %v1706 = vpop.f32.mrb[0].mxu0
        %v1707 = vadd.f32 0.0, %v1706
        %v1708 = vpop.f32.mrb[0].mxu0
        %v1709 = vpop.f32.mrb[0].mxu0
        %v1710 = vpop.f32.mrb[0].mxu0
        %1711 = vdwg.mxu0
        %1713 = vrot.lane.b32.xlu0 %v1707, 8
        %v1714 = vpop.permute.xlu0 %1713
        %1716 = vst.msk [vmem:[#allocation2] sm:$0xff] %vm823, %v1714
        %1717 = vrot.lane.b32.xlu0 %v1496, 112
        %v1718 = vpop.permute.xlu0 %1717
        %1719 = vrot.lane.b32.xlu0 %v1497, 112
        %v1720 = vpop.permute.xlu0 %1719
        %v1722 = vsel %vm604, %v1718, 0
        %v1725 = vsel %vm604, %v1720, 0
        %1727 = vmatprep.subr.bf16.mxu0 0
        %1728 = vmatpush1.bf16.xpose.msra.mxu0 %v1725
        %1729 = vmatprep.subr.bf16.mxu0 0
        %1730 = vmatpush1.bf16.xpose.msra.mxu0 0
        %1731 = vmatprep.subr.bf16.mxu0 0
        %1732 = vmatpush1.bf16.xpose.msra.mxu0 0
        %1733 = vmatprep.subr.bf16.mxu0 0
        %1734 = vmatpush1.bf16.xpose.msra.mxu0 0
        %1735 = vmatprep.subr.bf16.mxu0 0
        %1736 = vmatpush1.bf16.xpose.msra.mxu0 0
        %1737 = vmatprep.subr.bf16.mxu0 0
        %1738 = vmatpush1.bf16.xpose.msra.mxu0 0
        %1739 = vmatprep.subr.bf16.mxu0 0
        %1740 = vmatpush1.bf16.xpose.msra.mxu0 0
        %1741 = vmatprep.subr.bf16.mxu0 0
        %1742 = vmatpush1.bf16.xpose.msra.mxu0 0
        %1743 = vmatprep.subr.bf16.mxu0 0
        %1744 = vmatpush1.bf16.xpose.msra.mxu0 0
        %1745 = vmatprep.subr.bf16.mxu0 0
        %1746 = vmatpush1.bf16.xpose.msra.mxu0 0
        %1747 = vmatprep.subr.bf16.mxu0 0
        %1748 = vmatpush1.bf16.xpose.msra.mxu0 0
        %1749 = vmatprep.subr.bf16.mxu0 0
        %1750 = vmatpush1.bf16.xpose.msra.mxu0 0
        %1751 = vmatprep.subr.bf16.mxu0 0
        %1752 = vmatpush1.bf16.xpose.msra.mxu0 0
        %1753 = vmatprep.subr.bf16.mxu0 0
        %1754 = vmatpush1.bf16.xpose.msra.mxu0 0
        %1755 = vmatprep.subr.bf16.mxu0 0
        %1756 = vmatpush1.bf16.xpose.msra.mxu0 0
        %1757 = vmatprep.subr.bf16.mxu0 0
        %1758 = vmatpush1.bf16.xpose.msra.mxu0 0
        %1759 = vmatprep.mubr.bf16.mxu0 0
        %1760 = vmatmul.mubr.bf16.gmra.mrb[0].mxu0 %v1722
        %v1761 = vpop.f32.mrb[0].mxu0
        %v1762 = vadd.f32 0.0, %v1761
        %v1763 = vpop.f32.mrb[0].mxu0
        %v1764 = vpop.f32.mrb[0].mxu0
        %v1765 = vpop.f32.mrb[0].mxu0
        %1766 = vdwg.mxu0
        %v1767 = vsel %vm651, %v1762, -inf
        %1768 = vmax.xlane.f32.xlu0 %v1767
        %v1769 = vpop.xlane.xlu0 %1768
        %v1770 = vsub.f32 %v1762, %v1769
        %v1771 = vmul.f32 %v1770, 1.442695
        %v1772 = vpow.pop %v1771
        %v1773 = vsel %vm651, %v1772, 0.0
        %1774 = vadd.xlane.f32.xlu0 %v1773
        %v1775 = vpop.xlane.xlu0 %1774
        %v1776 = vrcp.pop %v1775
        %v1777 = vmul.f32 %v1772, %v1776
        %v1778 = vpack.c.bf16 %v1777, %v1777
        %1779 = vrot.lane.b32.xlu0 %v1498, 112
        %v1780 = vpop.permute.xlu0 %1779
        %v1783 = vsel %vm651, %v1778, 0
        %1785 = vmatprep.subr.bf16.mxu0 0
        %1786 = vmatpush1.bf16.msra.mxu0 %v1780
        %1787 = vmatprep.subr.bf16.mxu0 0
        %1788 = vmatpush1.bf16.msra.mxu0 0
        %1789 = vmatprep.subr.bf16.mxu0 0
        %1790 = vmatpush1.bf16.msra.mxu0 0
        %1791 = vmatprep.subr.bf16.mxu0 0
        %1792 = vmatpush1.bf16.msra.mxu0 0
        %1793 = vmatprep.subr.bf16.mxu0 0
        %1794 = vmatpush1.bf16.msra.mxu0 0
        %1795 = vmatprep.subr.bf16.mxu0 0
        %1796 = vmatpush1.bf16.msra.mxu0 0
        %1797 = vmatprep.subr.bf16.mxu0 0
        %1798 = vmatpush1.bf16.msra.mxu0 0
        %1799 = vmatprep.subr.bf16.mxu0 0
        %1800 = vmatpush1.bf16.msra.mxu0 0
        %1801 = vmatprep.subr.bf16.mxu0 0
        %1802 = vmatpush1.bf16.msra.mxu0 0
        %1803 = vmatprep.subr.bf16.mxu0 0
        %1804 = vmatpush1.bf16.msra.mxu0 0
        %1805 = vmatprep.subr.bf16.mxu0 0
        %1806 = vmatpush1.bf16.msra.mxu0 0
        %1807 = vmatprep.subr.bf16.mxu0 0
        %1808 = vmatpush1.bf16.msra.mxu0 0
        %1809 = vmatprep.subr.bf16.mxu0 0
        %1810 = vmatpush1.bf16.msra.mxu0 0
        %1811 = vmatprep.subr.bf16.mxu0 0
        %1812 = vmatpush1.bf16.msra.mxu0 0
        %1813 = vmatprep.subr.bf16.mxu0 0
        %1814 = vmatpush1.bf16.msra.mxu0 0
        %1815 = vmatprep.subr.bf16.mxu0 0
        %1816 = vmatpush1.bf16.msra.mxu0 0
        %1817 = vmatprep.mubr.bf16.mxu0 0
        %1818 = vmatmul.mubr.bf16.gmra.mrb[0].mxu0 %v1783
        %v1819 = vpop.f32.mrb[0].mxu0
        %v1820 = vadd.f32 0.0, %v1819
        %v1821 = vpop.f32.mrb[0].mxu0
        %v1822 = vpop.f32.mrb[0].mxu0
        %v1823 = vpop.f32.mrb[0].mxu0
        %1824 = vdwg.mxu0
        %1826 = vrot.lane.b32.xlu0 %v1820, 16
        %v1827 = vpop.permute.xlu0 %1826
        %1829 = vst.msk [vmem:[#allocation2] sm:$0xff] %vm937, %v1827
        %1830 = vrot.lane.b32.xlu0 %v1496, 104
        %v1831 = vpop.permute.xlu0 %1830
        %1832 = vrot.lane.b32.xlu0 %v1497, 104
        %v1833 = vpop.permute.xlu0 %1832
        %v1835 = vsel %vm604, %v1831, 0
        %v1838 = vsel %vm604, %v1833, 0
        %1840 = vmatprep.subr.bf16.mxu0 0
        %1841 = vmatpush1.bf16.xpose.msra.mxu0 %v1838
        %1842 = vmatprep.subr.bf16.mxu0 0
        %1843 = vmatpush1.bf16.xpose.msra.mxu0 0
        %1844 = vmatprep.subr.bf16.mxu0 0
        %1845 = vmatpush1.bf16.xpose.msra.mxu0 0
        %1846 = vmatprep.subr.bf16.mxu0 0
        %1847 = vmatpush1.bf16.xpose.msra.mxu0 0
        %1848 = vmatprep.subr.bf16.mxu0 0
        %1849 = vmatpush1.bf16.xpose.msra.mxu0 0
        %1850 = vmatprep.subr.bf16.mxu0 0
        %1851 = vmatpush1.bf16.xpose.msra.mxu0 0
        %1852 = vmatprep.subr.bf16.mxu0 0
        %1853 = vmatpush1.bf16.xpose.msra.mxu0 0
        %1854 = vmatprep.subr.bf16.mxu0 0
        %1855 = vmatpush1.bf16.xpose.msra.mxu0 0
        %1856 = vmatprep.subr.bf16.mxu0 0
        %1857 = vmatpush1.bf16.xpose.msra.mxu0 0
        %1858 = vmatprep.subr.bf16.mxu0 0
        %1859 = vmatpush1.bf16.xpose.msra.mxu0 0
        %1860 = vmatprep.subr.bf16.mxu0 0
        %1861 = vmatpush1.bf16.xpose.msra.mxu0 0
        %1862 = vmatprep.subr.bf16.mxu0 0
        %1863 = vmatpush1.bf16.xpose.msra.mxu0 0
        %1864 = vmatprep.subr.bf16.mxu0 0
        %1865 = vmatpush1.bf16.xpose.msra.mxu0 0
        %1866 = vmatprep.subr.bf16.mxu0 0
        %1867 = vmatpush1.bf16.xpose.msra.mxu0 0
        %1868 = vmatprep.subr.bf16.mxu0 0
        %1869 = vmatpush1.bf16.xpose.msra.mxu0 0
        %1870 = vmatprep.subr.bf16.mxu0 0
        %1871 = vmatpush1.bf16.xpose.msra.mxu0 0
        %1872 = vmatprep.mubr.bf16.mxu0 0
        %1873 = vmatmul.mubr.bf16.gmra.mrb[0].mxu0 %v1835
        %v1874 = vpop.f32.mrb[0].mxu0
        %v1875 = vadd.f32 0.0, %v1874
        %v1876 = vpop.f32.mrb[0].mxu0
        %v1877 = vpop.f32.mrb[0].mxu0
        %v1878 = vpop.f32.mrb[0].mxu0
        %1879 = vdwg.mxu0
        %v1880 = vsel %vm651, %v1875, -inf
        %1881 = vmax.xlane.f32.xlu0 %v1880
        %v1882 = vpop.xlane.xlu0 %1881
        %v1883 = vsub.f32 %v1875, %v1882
        %v1884 = vmul.f32 %v1883, 1.442695
        %v1885 = vpow.pop %v1884
        %v1886 = vsel %vm651, %v1885, 0.0
        %1887 = vadd.xlane.f32.xlu0 %v1886
        %v1888 = vpop.xlane.xlu0 %1887
        %v1889 = vrcp.pop %v1888
        %v1890 = vmul.f32 %v1885, %v1889
        %v1891 = vpack.c.bf16 %v1890, %v1890
        %1892 = vrot.lane.b32.xlu0 %v1498, 104
        %v1893 = vpop.permute.xlu0 %1892
        %v1896 = vsel %vm651, %v1891, 0
        %1898 = vmatprep.subr.bf16.mxu0 0
        %1899 = vmatpush1.bf16.msra.mxu0 %v1893
        %1900 = vmatprep.subr.bf16.mxu0 0
        %1901 = vmatpush1.bf16.msra.mxu0 0
        %1902 = vmatprep.subr.bf16.mxu0 0
        %1903 = vmatpush1.bf16.msra.mxu0 0
        %1904 = vmatprep.subr.bf16.mxu0 0
        %1905 = vmatpush1.bf16.msra.mxu0 0
        %1906 = vmatprep.subr.bf16.mxu0 0
        %1907 = vmatpush1.bf16.msra.mxu0 0
        %1908 = vmatprep.subr.bf16.mxu0 0
        %1909 = vmatpush1.bf16.msra.mxu0 0
        %1910 = vmatprep.subr.bf16.mxu0 0
        %1911 = vmatpush1.bf16.msra.mxu0 0
        %1912 = vmatprep.subr.bf16.mxu0 0
        %1913 = vmatpush1.bf16.msra.mxu0 0
        %1914 = vmatprep.subr.bf16.mxu0 0
        %1915 = vmatpush1.bf16.msra.mxu0 0
        %1916 = vmatprep.subr.bf16.mxu0 0
        %1917 = vmatpush1.bf16.msra.mxu0 0
        %1918 = vmatprep.subr.bf16.mxu0 0
        %1919 = vmatpush1.bf16.msra.mxu0 0
        %1920 = vmatprep.subr.bf16.mxu0 0
        %1921 = vmatpush1.bf16.msra.mxu0 0
        %1922 = vmatprep.subr.bf16.mxu0 0
        %1923 = vmatpush1.bf16.msra.mxu0 0
        %1924 = vmatprep.subr.bf16.mxu0 0
        %1925 = vmatpush1.bf16.msra.mxu0 0
        %1926 = vmatprep.subr.bf16.mxu0 0
        %1927 = vmatpush1.bf16.msra.mxu0 0
        %1928 = vmatprep.subr.bf16.mxu0 0
        %1929 = vmatpush1.bf16.msra.mxu0 0
        %1930 = vmatprep.mubr.bf16.mxu0 0
        %1931 = vmatmul.mubr.bf16.gmra.mrb[0].mxu0 %v1896
        %v1932 = vpop.f32.mrb[0].mxu0
        %v1933 = vadd.f32 0.0, %v1932
        %v1934 = vpop.f32.mrb[0].mxu0
        %v1935 = vpop.f32.mrb[0].mxu0
        %v1936 = vpop.f32.mrb[0].mxu0
        %1937 = vdwg.mxu0
        %1939 = vrot.lane.b32.xlu0 %v1933, 24
        %v1940 = vpop.permute.xlu0 %1939
        %1942 = vst.msk [vmem:[#allocation2] sm:$0xff] %vm1051, %v1940
        %v1943 = vld [vmem:[#allocation2] sm:$0xff]
        %v1944 = vpack.c.bf16 %v1943, %v1943
        %s1945 = scalar_lea.vmem [#allocation11], 144
        %v1946 = vld [vmem:[%s1945] sm:$0xf]
        %v1947 = vld [vmem:[%s1945 + $0x4] sm:$0xf]
        %v1948 = vld [vmem:[%s1945 + $0x8] sm:$0xf]
        %v1949 = vld [vmem:[%s1945 + $0xc] sm:$0xf]
        %v1950 = vlaneseq
        %v1951 = vshrl.u32 %v1950, 7
        %v1952 = vsub.s32 3, %v1951
        %v1953 = vrot.slane %v1305, %v1952
        %v1958 = vunpack.c.l.b16 %v1946
        %v1959 = vunpack.c.l.b16 %v1947
        %v1960 = vunpack.c.l.b16 %v1948
        %v1961 = vunpack.c.l.b16 %v1949
        %v1962 = vpack.c.b16 %v1959, %v1958
        %v1963 = vpack.c.b16 %v1961, %v1960
        %v1967 = vsel %vm427, %v1944, 0
        %1969 = vmatprep.subr.bf16.mxu0 0
        %1970 = vmatpush1.bf16.msra.mxu0 %v1962
        %1971 = vmatprep.subr.bf16.mxu0 0
        %1972 = vmatpush1.bf16.msra.mxu0 %v1963
        %1973 = vmatprep.subr.bf16.mxu0 0
        %1974 = vmatpush1.bf16.msra.mxu0 0
        %1975 = vmatprep.subr.bf16.mxu0 0
        %1976 = vmatpush1.bf16.msra.mxu0 0
        %1977 = vmatprep.subr.bf16.mxu0 0
        %1978 = vmatpush1.bf16.msra.mxu0 0
        %1979 = vmatprep.subr.bf16.mxu0 0
        %1980 = vmatpush1.bf16.msra.mxu0 0
        %1981 = vmatprep.subr.bf16.mxu0 0
        %1982 = vmatpush1.bf16.msra.mxu0 0
        %1983 = vmatprep.subr.bf16.mxu0 0
        %1984 = vmatpush1.bf16.msra.mxu0 0
        %1985 = vmatprep.subr.bf16.mxu0 0
        %1986 = vmatpush1.bf16.msra.mxu0 0
        %1987 = vmatprep.subr.bf16.mxu0 0
        %1988 = vmatpush1.bf16.msra.mxu0 0
        %1989 = vmatprep.subr.bf16.mxu0 0
        %1990 = vmatpush1.bf16.msra.mxu0 0
        %1991 = vmatprep.subr.bf16.mxu0 0
        %1992 = vmatpush1.bf16.msra.mxu0 0
        %1993 = vmatprep.subr.bf16.mxu0 0
        %1994 = vmatpush1.bf16.msra.mxu0 0
        %1995 = vmatprep.subr.bf16.mxu0 0
        %1996 = vmatpush1.bf16.msra.mxu0 0
        %1997 = vmatprep.subr.bf16.mxu0 0
        %1998 = vmatpush1.bf16.msra.mxu0 0
        %1999 = vmatprep.subr.bf16.mxu0 0
        %2000 = vmatpush1.bf16.msra.mxu0 0
        %2001 = vmatprep.mubr.bf16.mxu0 0
        %2002 = vmatmul.mubr.bf16.gmra.mrb[0].mxu0 %v1967
        %v2003 = vpop.f32.mrb[0].mxu0
        %v2004 = vadd.f32 %v1953, %v2003
        %v2005 = vpop.f32.mrb[0].mxu0
        %v2006 = vpop.f32.mrb[0].mxu0
        %v2007 = vpop.f32.mrb[0].mxu0
        %2008 = vdwg.mxu0
        %v2009 = vpack.c.bf16 %v2004, %v2004
        %s2010 = scalar_lea.vmem [#allocation11], 160
        %v2011 = vld [vmem:[%s2010] sm:$0xf]
        %v2012 = vld [vmem:[%s2010 + $0x4] sm:$0xf]
        %v2013 = vld [vmem:[%s2010 + $0x8] sm:$0xf]
        %v2014 = vld [vmem:[%s2010 + $0xc] sm:$0xf]
        %v2015 = vlaneseq
        %v2016 = vshrl.u32 %v2015, 7
        %v2017 = vsub.s32 4, %v2016
        %v2018 = vrot.slane %v1305, %v2017
        %v2023 = vunpack.c.l.b16 %v2011
        %v2024 = vunpack.c.l.b16 %v2012
        %v2025 = vunpack.c.l.b16 %v2013
        %v2026 = vunpack.c.l.b16 %v2014
        %v2027 = vpack.c.b16 %v2024, %v2023
        %v2028 = vpack.c.b16 %v2026, %v2025
        %v2032 = vsel %vm427, %v2009, 0
        %2034 = vmatprep.subr.bf16.mxu0 0
        %2035 = vmatpush1.bf16.msra.mxu0 %v2027
        %2036 = vmatprep.subr.bf16.mxu0 0
        %2037 = vmatpush1.bf16.msra.mxu0 %v2028
        %2038 = vmatprep.subr.bf16.mxu0 0
        %2039 = vmatpush1.bf16.msra.mxu0 0
        %2040 = vmatprep.subr.bf16.mxu0 0
        %2041 = vmatpush1.bf16.msra.mxu0 0
        %2042 = vmatprep.subr.bf16.mxu0 0
        %2043 = vmatpush1.bf16.msra.mxu0 0
        %2044 = vmatprep.subr.bf16.mxu0 0
        %2045 = vmatpush1.bf16.msra.mxu0 0
        %2046 = vmatprep.subr.bf16.mxu0 0
        %2047 = vmatpush1.bf16.msra.mxu0 0
        %2048 = vmatprep.subr.bf16.mxu0 0
        %2049 = vmatpush1.bf16.msra.mxu0 0
        %2050 = vmatprep.subr.bf16.mxu0 0
        %2051 = vmatpush1.bf16.msra.mxu0 0
        %2052 = vmatprep.subr.bf16.mxu0 0
        %2053 = vmatpush1.bf16.msra.mxu0 0
        %2054 = vmatprep.subr.bf16.mxu0 0
        %2055 = vmatpush1.bf16.msra.mxu0 0
        %2056 = vmatprep.subr.bf16.mxu0 0
        %2057 = vmatpush1.bf16.msra.mxu0 0
        %2058 = vmatprep.subr.bf16.mxu0 0
        %2059 = vmatpush1.bf16.msra.mxu0 0
        %2060 = vmatprep.subr.bf16.mxu0 0
        %2061 = vmatpush1.bf16.msra.mxu0 0
        %2062 = vmatprep.subr.bf16.mxu0 0
        %2063 = vmatpush1.bf16.msra.mxu0 0
        %2064 = vmatprep.subr.bf16.mxu0 0
        %2065 = vmatpush1.bf16.msra.mxu0 0
        %2066 = vmatprep.mubr.bf16.mxu0 0
        %2067 = vmatmul.mubr.bf16.gmra.mrb[0].mxu0 %v2032
        %v2068 = vpop.f32.mrb[0].mxu0
        %v2069 = vadd.f32 %v2018, %v2068
        %v2070 = vpop.f32.mrb[0].mxu0
        %v2071 = vpop.f32.mrb[0].mxu0
        %v2072 = vpop.f32.mrb[0].mxu0
        %2073 = vdwg.mxu0
        %v2074 = vmul.f32 %v2069, 0.5
        %v2075 = vmul.f32 %v2069, 0.70710677
        %v2076 = vmax.f32 %v2075, -4.0
        %v2077 = vmin.f32 %v2076, 4.0
        %v2078 = vmul.f32 %v2077, %v2077
        %v2079 = vmul.f32 %v2078, -2.7261424e-10
        %v2080 = vadd.f32 %v2079, 2.7706815e-08
        %v2081 = vmul.f32 %v2080, %v2078
        %v2082 = vadd.f32 %v2081, -2.101024e-06
        %v2083 = vmul.f32 %v2082, %v2078
        %v2084 = vadd.f32 %v2083, -5.6925062e-05
        %v2085 = vmul.f32 %v2084, %v2078
        %v2086 = vadd.f32 %v2085, -0.00073499064
        %v2087 = vmul.f32 %v2086, %v2078
        %v2088 = vadd.f32 %v2087, -0.0029546
        %v2089 = vmul.f32 %v2088, %v2078
        %v2090 = vadd.f32 %v2089, -0.016096033
        %v2091 = vmul.f32 %v2078, -1.45660715e-05
        %v2092 = vadd.f32 %v2091, -0.00021337405
        %v2093 = vmul.f32 %v2092, %v2078
        %v2094 = vadd.f32 %v2093, -0.001682827
        %v2095 = vmul.f32 %v2094, %v2078
        %v2096 = vadd.f32 %v2095, -0.0073733293
        %v2097 = vmul.f32 %v2096, %v2078
        %v2098 = vadd.f32 %v2097, -0.014264739
        %v2099 = vmul.f32 %v2077, %v2090
        %v2100 = vrcp.pop %v2098
        %v2101 = vmul.f32 %v2099, %v2100
        %v2102 = vadd.f32 %v2101, 1.0
        %v2103 = vmul.f32 %v2074, %v2102
        %v2104 = vpack.c.bf16 %v2103, %v2103
        %s2105 = scalar_lea.vmem [#allocation11], 176
        %v2106 = vld [vmem:[%s2105] sm:$0xf]
        %v2107 = vld [vmem:[%s2105 + $0x4] sm:$0xf]
        %v2108 = vld [vmem:[%s2105 + $0x8] sm:$0xf]
        %v2109 = vld [vmem:[%s2105 + $0xc] sm:$0xf]
        %v2110 = vlaneseq
        %v2111 = vshrl.u32 %v2110, 7
        %v2112 = vsub.s32 5, %v2111
        %v2113 = vrot.slane %v1305, %v2112
        %v2118 = vunpack.c.l.b16 %v2106
        %v2119 = vunpack.c.l.b16 %v2107
        %v2120 = vunpack.c.l.b16 %v2108
        %v2121 = vunpack.c.l.b16 %v2109
        %v2122 = vpack.c.b16 %v2119, %v2118
        %v2123 = vpack.c.b16 %v2121, %v2120
        %v2127 = vsel %vm427, %v2104, 0
        %2129 = vmatprep.subr.bf16.mxu0 0
        %2130 = vmatpush1.bf16.msra.mxu0 %v2122
        %2131 = vmatprep.subr.bf16.mxu0 0
        %2132 = vmatpush1.bf16.msra.mxu0 %v2123
        %2133 = vmatprep.subr.bf16.mxu0 0
        %2134 = vmatpush1.bf16.msra.mxu0 0
        %2135 = vmatprep.subr.bf16.mxu0 0
        %2136 = vmatpush1.bf16.msra.mxu0 0
        %2137 = vmatprep.subr.bf16.mxu0 0
        %2138 = vmatpush1.bf16.msra.mxu0 0
        %2139 = vmatprep.subr.bf16.mxu0 0
        %2140 = vmatpush1.bf16.msra.mxu0 0
        %2141 = vmatprep.subr.bf16.mxu0 0
        %2142 = vmatpush1.bf16.msra.mxu0 0
        %2143 = vmatprep.subr.bf16.mxu0 0
        %2144 = vmatpush1.bf16.msra.mxu0 0
        %2145 = vmatprep.subr.bf16.mxu0 0
        %2146 = vmatpush1.bf16.msra.mxu0 0
        %2147 = vmatprep.subr.bf16.mxu0 0
        %2148 = vmatpush1.bf16.msra.mxu0 0
        %2149 = vmatprep.subr.bf16.mxu0 0
        %2150 = vmatpush1.bf16.msra.mxu0 0
        %2151 = vmatprep.subr.bf16.mxu0 0
        %2152 = vmatpush1.bf16.msra.mxu0 0
        %2153 = vmatprep.subr.bf16.mxu0 0
        %2154 = vmatpush1.bf16.msra.mxu0 0
        %2155 = vmatprep.subr.bf16.mxu0 0
        %2156 = vmatpush1.bf16.msra.mxu0 0
        %2157 = vmatprep.subr.bf16.mxu0 0
        %2158 = vmatpush1.bf16.msra.mxu0 0
        %2159 = vmatprep.subr.bf16.mxu0 0
        %2160 = vmatpush1.bf16.msra.mxu0 0
        %2161 = vmatprep.mubr.bf16.mxu0 0
        %2162 = vmatmul.mubr.bf16.gmra.mrb[0].mxu0 %v2127
        %v2163 = vpop.f32.mrb[0].mxu0
        %v2164 = vadd.f32 %v2113, %v2163
        %v2165 = vpop.f32.mrb[0].mxu0
        %v2166 = vpop.f32.mrb[0].mxu0
        %v2167 = vpop.f32.mrb[0].mxu0
        %2168 = vdwg.mxu0
        %v2169 = vadd.f32 %v1303, %v2164
        %v2170 = vsel %vm427, %v2169, 0.0
        %2171 = vadd.xlane.f32.xlu0 %v2170
        %v2172 = vpop.xlane.xlu0 %2171
        %v2173 = vmul.f32 %v2172, %v1283
        %v2174 = vsub.f32 %v2169, %v2173
        %v2175 = vmul.f32 %v2174, %v2174
        %v2176 = vsel %vm427, %v2175, 0.0
        %2177 = vadd.xlane.f32.xlu0 %v2176
        %v2178 = vpop.xlane.xlu0 %2177
        %v2179 = vmul.f32 %v2178, %v1283
        %v2180 = vadd.f32 %v2179, 1e-05
        %v2181 = vrsqrt.pop %v2180
        %v2182 = vmul.f32 %v2174, %v2181
        %v2183 = vlaneseq
        %v2184 = vshrl.u32 %v2183, 7
        %v2185 = vsub.s32 6, %v2184
        %v2186 = vrot.slane %v1305, %v2185
        %v2187 = vmul.f32 %v2182, %v2186
        %v2188 = vlaneseq
        %v2189 = vshrl.u32 %v2188, 7
        %v2190 = vsub.s32 7, %v2189
        %v2191 = vrot.slane %v1305, %v2190
        %v2192 = vadd.f32 %v2187, %v2191
        %2193 = vst.msk [vmem:[%s394] sm:$0xff] %vm427, %v2192
        %s2194 = sand.u32 %s183, 1
        %s2195 = scalar_lea.sflag [#allocation5], %s2194
        %s2196 = sand.u32 %s183, 1
        %s2197 = smul.addr %s2196, 8
        %s2198 = scalar_lea.vmem [#allocation12], %s2197
        // Predicated region
        $region65: #{tpu_custom_call.1} parent=43 // pred_check
          %p2199 = pneg %p193
        $region66: #{tpu_custom_call.1} parent=43 // pred_check_branch
          %2201 = sbr.rel (%p2199) target = $region68
        $region67: #{tpu_custom_call.1} parent=43 // pred_region
          %s2203 = ssub.s32 128, 128
          %2204 = vsyncadd %s2195, %s2203
          %s2205 = smul.addr %s29, 128
          %s2206 = scalar_lea.hbm %s6, %s2205
          %s2208 = sshll.u32 %s2198, 4
          %s2209 = int_to_ptr.vmem [resolvable:$true] %s2208
          %2211 = dma.vmem_to_hbm [thread:$0]  %s2209, 128, %s2206, %s2195
        $region68: #{tpu_custom_call.1} parent=43 // pred_fallthru
          _
      $region44: #{tpu_custom_call.1} parent=5 // pred_fallthru
        _
      %p2212 = scmp.le.s32.totalorder 2, %s24
      // Predicated region
      $region69: #{tpu_custom_call.1} parent=5 // pred_check
        %p2213 = pneg %p2212
      $region70: #{tpu_custom_call.1} parent=5 // pred_check_branch
        %2215 = sbr.rel (%p2213) target = $region72
      $region71: #{tpu_custom_call.1} parent=5 // pred_region
        %s2216 = ssub.s32 %s24, 2
        // Predicated region
        $region73: #{tpu_custom_call.1} parent=71 // pred_check
          %p2217 = pneg %p199
        $region74: #{tpu_custom_call.1} parent=71 // pred_check_branch
          %2219 = sbr.rel (%p2217) target = $region76
        $region75: #{tpu_custom_call.1} parent=71 // pred_region
          %s2220 = sand.u32 %s184, 1
          %s2221 = scalar_lea.sflag [#allocation5], %s2220
          %s2222 = sand.u32 %s184, 1
          %s2223 = smul.addr %s2222, 8
          %s2224 = scalar_lea.vmem [#allocation12], %s2223
          %2225 = dma.done %s2221, 128
        $region76: #{tpu_custom_call.1} parent=71 // pred_fallthru
          _
      $region72: #{tpu_custom_call.1} parent=5 // pred_fallthru
        _
    $region6: #{tpu_custom_call.1} parent=1 // loop_footer
      %s28 = sadd.s32 1, %s24
    $region7: #{tpu_custom_call.1} parent=1 // loop_footer_branch
      %23 = sbr.rel target = $region3
    $region8: #{tpu_custom_call.1} parent=1 // loop_exit
      _
    %2226 = vsyncpa [#allocation4], 1
    %s2227 = scalar_lea.sflag [#allocation4], 1
    %2228 = vsyncpa %s2227, 1
    %2229 = vsyncpa [#allocation7], 1
    %s2230 = scalar_lea.sflag [#allocation7], 1
    %2231 = vsyncpa %s2230, 1
    %2232 = vsyncpa [#allocation10], 1
    %s2233 = scalar_lea.sflag [#allocation10], 1
    %2234 = vsyncpa %s2233, 1
    %2235 = vsyncpa [#allocation5], 1
    %s2236 = scalar_lea.sflag [#allocation5], 1
    %2237 = vsyncpa %s2236, 1

</llo_original>
